<compile_context>
chip_gen: v5e
topology: v5e:2x2
jax: 0.10.0
libtpu: 0.0.40
codegen_flags: <defaults>
</compile_context>

<pallas_src>
import functools

import jax
import jax.numpy as jnp
from jax.experimental import pallas as pl
from jax.experimental.pallas import tpu as pltpu


NUM_SEM = 6
HIDDEN = 512
MAP_C = NUM_SEM + 8          # 14
POINT_C = NUM_SEM + 5        # 11


def _round_up(x, m):
    return ((x + m - 1) // m) * m


# ----------------------------------------------------------------------------
# Pallas kernels
# ----------------------------------------------------------------------------

def _conv_mm_kernel(x_ref, w_ref, b_ref, o_ref):
    """Fused im2col conv: x (M, K) bf16, w (K, Cout) bf16, b (1, Cout) f32 -> relu(x@w+b)."""
    y = jnp.dot(x_ref[...], w_ref[...], preferred_element_type=jnp.float32)
    o_ref[...] = jnp.maximum(y + b_ref[...], 0.0).astype(o_ref.dtype)


def _tail_kernel(c3_ref, pts_ref, emb_ref,
                 w3_ref, b3_ref, w4_ref, b4_ref, w5_ref, b5_ref, wm_ref,
                 pw1_ref, pb1_ref, pw2_ref, pb2_ref, pw3_ref, pb3_ref, wp_ref,
                 b1_ref, w2_ref, b2_ref, wcr_ref, bcr_ref,
                 feat_ref, val_ref, *, S):
    """Fused tail:
      map:   conv3 -> MaxPool2d(2) -> conv4 -> conv5 -> Flatten -> (map_compress.linear1)
      point: per-point MLP (pn_conv1..3) -> max over points -> (point_compress.linear1)
      head:  +emb(prefolded) +bias -> ReLU -> linear2 -> ReLU -> critic
    Everything is batched (M >= B); no per-batch loops, no M=1 matmuls, no scratch.
    """
    bf = jnp.bfloat16
    B = feat_ref.shape[0]
    C3 = w3_ref.shape[1]
    H3 = 2 * S

    # ---- map tail ----
    y3 = jnp.dot(c3_ref[...], w3_ref[...], preferred_element_type=jnp.float32)
    y3 = jnp.maximum(y3 + b3_ref[...], 0.0)                      # (B*H3*H3, C3) f32
    y3 = y3.reshape(B, H3 * H3, C3)
    # MaxPool2d(2) vectorized over batch + densified conv4 as S*S K-sliced partial
    # matmuls (each M=B); with conv5 and the folded map_compress this realises the
    # review's "batched matmul" tail with no M=1 dots and no VMEM scratch.
    acc4 = b4_ref[...]                                           # (1, S*S*C4) f32
    for i in range(S):
        for j in range(S):
            p0 = (2 * i) * H3 + 2 * j
            top = jnp.max(y3[:, p0:p0 + 2, :], axis=1)           # (B, C3)
            bot = jnp.max(y3[:, p0 + H3:p0 + H3 + 2, :], axis=1)
            pooled = jnp.maximum(top, bot)                       # (B, C3)
            m = i * S + j
            acc4 = acc4 + jnp.dot(pooled.astype(bf),
                                  w4_ref[m * C3:(m + 1) * C3, :],
                                  preferred_element_type=jnp.float32)
    h4 = jnp.maximum(acc4, 0.0).astype(bf)                       # (B, S*S*64)
    h5 = jnp.dot(h4, w5_ref[...], preferred_element_type=jnp.float32) + b5_ref[...]
    h5 = jnp.maximum(h5, 0.0).astype(bf)                         # (B, S*S*32)
    z_map = jnp.dot(h5, wm_ref[...], preferred_element_type=jnp.float32)   # (B, 512)

    # ---- point branch ----
    h = jnp.dot(pts_ref[...], pw1_ref[...], preferred_element_type=jnp.float32)
    h = jnp.maximum(h + pb1_ref[...], 0.0).astype(bf)
    h = jnp.dot(h, pw2_ref[...], preferred_element_type=jnp.float32)
    h = jnp.maximum(h + pb2_ref[...], 0.0).astype(bf)
    # bf16 here halves the (B*N, 1024) live temporary (v7x VMEM headroom at large B);
    # the pn_conv3 bias is constant over points so it is added after the max (exact).
    h = jnp.dot(h, pw3_ref[...], preferred_element_type=jnp.float32).astype(bf)
    N = h.shape[0] // B
    g = jnp.max(h.reshape(B, N, h.shape[1]), axis=1).astype(jnp.float32) + pb3_ref[...]
    z_pt = jnp.dot(g.astype(bf), wp_ref[...], preferred_element_type=jnp.float32)  # (B, 512)

    # ---- head: concat folded into the two partial matmuls above + prefolded emb term ----
    x1 = jnp.maximum(z_map + z_pt + emb_ref[...] + b1_ref[...], 0.0).astype(bf)
    x2 = jnp.dot(x1, w2_ref[...], preferred_element_type=jnp.float32)
    x2 = jnp.maximum(x2 + b2_ref[...], 0.0)                      # (B, 256) f32
    feat_ref[...] = x2
    # critic (256 -> 1) as a lane reduction instead of an N=1 matmul.
    val_ref[...] = jnp.sum(x2 * wcr_ref[...], axis=1, keepdims=True) + bcr_ref[...]


# ----------------------------------------------------------------------------
# pallas_call wrappers (single invocation, whole operands resident in VMEM)
# ----------------------------------------------------------------------------

_VMEM = pltpu.MemorySpace.VMEM


def conv_relu_mm(x, w, b):
    # NOTE: output last dims are 32/64 (masked partial stores); left as-is because the
    # intermediates are <=32 KB and a lane-dense repack would need an in-kernel
    # sublane->lane relayout (review item acknowledged, not worth it at this size).
    M, K = x.shape
    N = w.shape[1]
    return pl.pallas_call(
        _conv_mm_kernel,
        out_shape=jax.ShapeDtypeStruct((M, N), jnp.bfloat16),
        in_specs=[pl.BlockSpec(memory_space=_VMEM)] * 3,
        out_specs=pl.BlockSpec(memory_space=_VMEM),
        compiler_params=pltpu.CompilerParams(vmem_limit_bytes=32 * 1024 * 1024),
        cost_estimate=pl.CostEstimate(
            flops=int(2 * M * K * N), transcendentals=0,
            bytes_accessed=int(2 * (M * K + K * N + M * N) + 4 * N)),
    )(x, w, b)


def tail_call(c3, pts, emb_contrib, q, S, B):
    args = (c3, pts, emb_contrib,
            q['conv3_wm'], q['conv3_b'], q['conv4_wd'], q['conv4_bd'],
            q['conv5_wd'], q['conv5_bd'], q['map_l1_w'],
            q['pn_conv1_w'], q['pn_conv1_b'], q['pn_conv2_w'], q['pn_conv2_b'],
            q['pn_conv3_w'], q['pn_conv3_b'], q['pt_l1_w'],
            q['b1_fused'], q['linear2_w'], q['linear2_b'],
            q['critic_w_row'], q['critic_b'])
    BN = pts.shape[0]
    flops = 2 * (c3.shape[0] * c3.shape[1] * q['conv3_wm'].shape[1]
                 + B * q['conv4_wd'].shape[0] * q['conv4_wd'].shape[1]
                 + B * q['conv5_wd'].shape[0] * q['conv5_wd'].shape[1]
                 + B * q['map_l1_w'].shape[0] * q['map_l1_w'].shape[1]
                 + BN * (q['pn_conv1_w'].shape[0] * q['pn_conv1_w'].shape[1]
                         + q['pn_conv2_w'].shape[0] * q['pn_conv2_w'].shape[1]
                         + q['pn_conv3_w'].shape[0] * q['pn_conv3_w'].shape[1])
                 + B * q['pt_l1_w'].shape[0] * q['pt_l1_w'].shape[1]
                 + B * q['linear2_w'].shape[0] * q['linear2_w'].shape[1])
    bytes_accessed = sum(int(a.size) * a.dtype.itemsize for a in args) + B * (256 + 1) * 4
    feat, val = pl.pallas_call(
        functools.partial(_tail_kernel, S=S),
        out_shape=(jax.ShapeDtypeStruct((B, q['linear2_w'].shape[1]), jnp.float32),
                   jax.ShapeDtypeStruct((B, 1), jnp.float32)),
        in_specs=[pl.BlockSpec(memory_space=_VMEM)] * len(args),
        out_specs=(pl.BlockSpec(memory_space=_VMEM),
                   pl.BlockSpec(memory_space=_VMEM)),
        compiler_params=pltpu.CompilerParams(vmem_limit_bytes=32 * 1024 * 1024),
        cost_estimate=pl.CostEstimate(flops=int(flops), transcendentals=0,
                                      bytes_accessed=int(bytes_accessed)),
    )(*args)
    return feat, val


# ----------------------------------------------------------------------------
# XLA glue (cheap layout work only; all FLOPs live in the kernels)
# ----------------------------------------------------------------------------

def pool2_nhwc(x):
    """2x2 max-pool, stride 2, NHWC."""
    return jnp.maximum(jnp.maximum(x[:, 0::2, 0::2, :], x[:, 0::2, 1::2, :]),
                       jnp.maximum(x[:, 1::2, 0::2, :], x[:, 1::2, 1::2, :]))


def im2col3x3(x):
    """(B, H, W, C) -> (B*H*W, 9*C) for a stride-1 pad-1 3x3 conv (tap-major columns)."""
    B, H, W, C = x.shape
    xp = jnp.pad(x, ((0, 0), (1, 1), (1, 1), (0, 0)))
    cols = [xp[:, dy:dy + H, dx:dx + W, :].reshape(B * H * W, C)
            for dy in range(3) for dx in range(3)]
    return jnp.concatenate(cols, axis=1)


# ----------------------------------------------------------------------------
# Parameters (deterministic synthetic init; replaces torch.load of PointNet.pth)
# ----------------------------------------------------------------------------

def init_params(key, map_hw):
    out_size = (map_hw // 16) * (map_hw // 16)

    def lin(k, fan_in, fan_out):
        s = 1.0 / jnp.sqrt(fan_in)
        kw, kb = jax.random.split(k)
        return (jax.random.uniform(kw, (fan_in, fan_out), jnp.float32, -s, s),
                jax.random.uniform(kb, (fan_out,), jnp.float32, -s, s))

    def conv(k, cin, cout):
        s = 1.0 / jnp.sqrt(cin * 9)
        kw, kb = jax.random.split(k)
        return (jax.random.uniform(kw, (3, 3, cin, cout), jnp.float32, -s, s),
                jax.random.uniform(kb, (cout,), jnp.float32, -s, s))

    ks = jax.random.split(key, 16)
    p = {}
    p['conv1_w'], p['conv1_b'] = conv(ks[0], MAP_C, 32)
    p['conv2_w'], p['conv2_b'] = conv(ks[1], 32, 64)
    p['conv3_w'], p['conv3_b'] = conv(ks[2], 64, 128)
    p['conv4_w'], p['conv4_b'] = conv(ks[3], 128, 64)
    p['conv5_w'], p['conv5_b'] = conv(ks[4], 64, 32)
    p['map_compress_w'], p['map_compress_b'] = lin(ks[5], out_size * 32, 512)
    # PointNetEncoder (1x1 conv1d == per-point linear).
    p['pn_conv1_w'], p['pn_conv1_b'] = lin(ks[6], POINT_C, 64)
    p['pn_conv2_w'], p['pn_conv2_b'] = lin(ks[7], 64, 128)
    p['pn_conv3_w'], p['pn_conv3_b'] = lin(ks[8], 128, 1024)
    p['point_compress_w'], p['point_compress_b'] = lin(ks[9], 1024, 512)
    p['orientation_emb'] = 0.1 * jax.random.normal(ks[10], (72, 8), jnp.float32)
    p['goal_emb'] = 0.1 * jax.random.normal(ks[11], (NUM_SEM, 8), jnp.float32)
    p['time_emb'] = 0.1 * jax.random.normal(ks[12], (500, 8), jnp.float32)
    p['linear1_w'], p['linear1_b'] = lin(ks[13], 512 + 512 + 8 * 3, HIDDEN)
    p['linear2_w'], p['linear2_b'] = lin(ks[14], HIDDEN, 256)
    p['critic_w'], p['critic_b'] = lin(ks[15], 256, 1)
    return p


def _densify_conv3x3(w, S):
    """Express a stride-1 pad-1 3x3 conv on an SxS map as a dense matmul over the
    NHWC-flattened map: (S*S*Cin, S*S*Cout)."""
    Cin, Cout = w.shape[2], w.shape[3]
    wd = jnp.zeros((S * S * Cin, S * S * Cout), w.dtype)
    for oi in range(S):
        for oj in range(S):
            for ky in range(3):
                for kx in range(3):
                    ii, ij = oi + ky - 1, oj + kx - 1
                    if 0 <= ii < S and 0 <= ij < S:
                        wd = wd.at[(ii * S + ij) * Cin:(ii * S + ij + 1) * Cin,
                                   (oi * S + oj) * Cout:(oi * S + oj + 1) * Cout].set(w[ky, kx])
    return wd


def prepare_pallas_params(p, map_hw):
    """One-time transform of the (PyTorch-layout) params into kernel-ready form."""
    assert map_hw % 16 == 0, "map side must be a multiple of 16 (4 MaxPool2d(2) stages)"
    S = map_hw // 16
    bf = jnp.bfloat16
    f32 = jnp.float32

    def b_row(b):
        return b.reshape(1, -1).astype(f32)

    q = {}
    # conv1/conv2/conv3 as fused im2col matmul weights (9*Cin, Cout); conv1 K padded to 128.
    w1 = p['conv1_w'].reshape(9 * MAP_C, -1)
    q['conv1_wm'] = jnp.pad(w1, ((0, _round_up(9 * MAP_C, 128) - 9 * MAP_C), (0, 0))).astype(bf)
    q['conv1_b'] = b_row(p['conv1_b'])
    q['conv2_wm'] = p['conv2_w'].reshape(9 * 32, -1).astype(bf)
    q['conv2_b'] = b_row(p['conv2_b'])
    q['conv3_wm'] = p['conv3_w'].reshape(9 * 64, -1).astype(bf)
    q['conv3_b'] = b_row(p['conv3_b'])
    # conv4/conv5 densified for the SxS tail; bias tiled over spatial positions.
    q['conv4_wd'] = _densify_conv3x3(p['conv4_w'], S).astype(bf)
    q['conv4_bd'] = b_row(jnp.tile(p['conv4_b'], S * S))
    q['conv5_wd'] = _densify_conv3x3(p['conv5_w'], S).astype(bf)
    q['conv5_bd'] = b_row(jnp.tile(p['conv5_b'], S * S))

    W1 = p['linear1_w']                                   # (1048, 512): [map | point | emb*3]
    W1_map, W1_pt = W1[0:512, :], W1[512:1024, :]
    # NCHW Flatten order folded into a row permutation of map_compress, then map_compress
    # (no activation after it) algebraically folded into linear1's map rows (exact).
    c5 = p['conv5_w'].shape[3]
    perm = jnp.array([c * (S * S) + h * S + w
                      for h in range(S) for w in range(S) for c in range(c5)], jnp.int32)
    wc_perm = p['map_compress_w'][perm, :]                # (S*S*32, 512)
    q['map_l1_w'] = (wc_perm @ W1_map).astype(bf)         # (S*S*32, 512)
    # point_compress folded into linear1's point rows (exact, no activation between).
    q['pt_l1_w'] = (p['point_compress_w'] @ W1_pt).astype(bf)     # (1024, 512)
    q['b1_fused'] = b_row(p['linear1_b']
                          + p['map_compress_b'] @ W1_map
                          + p['point_compress_b'] @ W1_pt)
    # Embedding tables pre-folded through linear1 (embedding -> concat -> linear is linear),
    # removing the odd 24-row K slice from the kernel entirely.
    q['ori_l1'] = (p['orientation_emb'] @ W1[1024:1032, :]).astype(f32)   # (72, 512)
    q['goal_l1'] = (p['goal_emb'] @ W1[1032:1040, :]).astype(f32)         # (6, 512)
    q['time_l1'] = (p['time_emb'] @ W1[1040:1048, :]).astype(f32)         # (500, 512)

    # PointNet branch; input-channel dim padded to a multiple of 8.
    kp = _round_up(POINT_C, 8)
    q['pn_conv1_w'] = jnp.pad(p['pn_conv1_w'], ((0, kp - POINT_C), (0, 0))).astype(bf)
    q['pn_conv1_b'] = b_row(p['pn_conv1_b'])
    q['pn_conv2_w'] = p['pn_conv2_w'].astype(bf)
    q['pn_conv2_b'] = b_row(p['pn_conv2_b'])
    q['pn_conv3_w'] = p['pn_conv3_w'].astype(bf)
    q['pn_conv3_b'] = b_row(p['pn_conv3_b'])

    q['linear2_w'] = p['linear2_w'].astype(bf)
    q['linear2_b'] = b_row(p['linear2_b'])
    q['critic_w_row'] = p['critic_w'].reshape(1, -1).astype(f32)   # (1, 256)
    q['critic_b'] = p['critic_b'].reshape(1, 1).astype(f32)
    return q


# ----------------------------------------------------------------------------
# Forward pass (Explore_Network / RL_Explore_Policy, non-recurrent)
# ----------------------------------------------------------------------------

def explore_network_forward(q, inputs_map, input_points, rnn_hxs, masks, extras):
    B = inputs_map.shape[0]
    S = inputs_map.shape[2] // 16
    bf = jnp.bfloat16

    # --- map branch front: MaxPool2d(2) -> conv1 -> ReLU -> MaxPool2d(2) -> conv2 -> ReLU ---
    x = jnp.transpose(inputs_map, (0, 2, 3, 1)).astype(bf)          # NCHW -> NHWC
    x = pool2_nhwc(x)                                               # MaxPool2d(2)
    H1 = x.shape[1]
    c1 = im2col3x3(x)                                               # (B*H1*H1, 9*Cin)
    c1 = jnp.pad(c1, ((0, 0), (0, q['conv1_wm'].shape[0] - c1.shape[1])))
    y1 = conv_relu_mm(c1, q['conv1_wm'], q['conv1_b'])              # conv1 + ReLU
    x = pool2_nhwc(y1.reshape(B, H1, H1, y1.shape[1]))              # MaxPool2d(2)
    H2 = x.shape[1]
    y2 = conv_relu_mm(im2col3x3(x), q['conv2_wm'], q['conv2_b'])    # conv2 + ReLU
    x = pool2_nhwc(y2.reshape(B, H2, H2, y2.shape[1]))              # MaxPool2d(2)
    c3 = im2col3x3(x)                                               # (B*(2S)^2, 9*64)

    # --- point branch input (PointNet 1x1 conv1d == per-point linear) ---
    # TODO(synk): PointNetEncoder's STN3d input transform and BatchNorm layers are omitted
    #             (synthetic weights replace pretrained/PointNet.pth; BN is identity at
    #             default running stats).
    N = input_points.shape[2]
    pts = jnp.transpose(input_points, (0, 2, 1)).reshape(B * N, POINT_C)
    pts = jnp.pad(pts, ((0, 0), (0, q['pn_conv1_w'].shape[0] - POINT_C))).astype(bf)

    # --- embeddings: tiny gathers from tables pre-folded through linear1 (exact) ---
    emb_contrib = (q['ori_l1'][extras[:, 0]] + q['goal_l1'][extras[:, 1]]
                   + q['time_l1'][extras[:, 2]])                    # (B, 512) f32

    # --- fused tail kernel: conv3..map_compress + PointNet + head (not recurrent -> no GRU) ---
    actor_features, value = tail_call(c3, pts, emb_contrib, q, S, B)
    return value[:, 0], actor_features, rnn_hxs


def rl_explore_policy_forward(params, inputs_map, inputs_points, rnn_hxs, masks, extras):
    # model_type == 1 -> Explore_Network; extras is not None path.
    return explore_network_forward(params, inputs_map, inputs_points, rnn_hxs, masks, extras)


# ----------------------------------------------------------------------------
# Main
# ----------------------------------------------------------------------------

if __name__ == "__main__":
    B, HW_MAP, N_PTS = 2, 32, 64

    key = jax.random.PRNGKey(0)
    kp, k1, k2, k3, k4, k5 = jax.random.split(key, 6)

    params = init_params(kp, HW_MAP)
    q = prepare_pallas_params(params, HW_MAP)

    inputs_map = jax.random.normal(k1, (B, MAP_C, HW_MAP, HW_MAP), jnp.float32)   # NCHW
    input_points = jax.random.normal(k2, (B, POINT_C, N_PTS), jnp.float32)        # (B, C, N)
    extras = jnp.stack([jax.random.randint(k3, (B,), 0, 72),
                        jax.random.randint(k4, (B,), 0, NUM_SEM),
                        jax.random.randint(k5, (B,), 0, 500)], axis=1).astype(jnp.int32)
    rnn_hxs = jnp.zeros((B, 1), jnp.float32)
    masks = jnp.ones((B, 1), jnp.float32)

    fwd = jax.jit(rl_explore_policy_forward)
    value, actor_features, rnn_hxs_out = fwd(
        q, inputs_map, input_points, rnn_hxs, masks, extras)

    jax.block_until_ready((value, actor_features, rnn_hxs_out))
    assert value.shape == (B,)
    assert actor_features.shape == (B, 256)
    assert bool(jnp.isfinite(value).all()) and bool(jnp.isfinite(actor_features).all())
    print("KERNEL_OK")
</pallas_src>

<mosaic_0001>
module attributes {stable_mosaic.version = 11 : i64} {
  func.func @_conv_mm_kernel(%arg0: memref<512x128xbf16, #tpu.memory_space<vmem>>, %arg1: memref<128x32xbf16, #tpu.memory_space<vmem>>, %arg2: memref<1x32xf32, #tpu.memory_space<vmem>>, %arg3: memref<512x32xbf16, #tpu.memory_space<vmem>>) attributes {dimension_semantics = [], scalar_prefetch = 0 : i64, scratch_operands = 0 : i64, tpu.core_type = #tpu.core_type<tc>} {
    %c0 = arith.constant 0 : index
    %c0_0 = arith.constant 0 : index
    %0 = vector.load %arg0[%c0, %c0_0] : memref<512x128xbf16, #tpu.memory_space<vmem>>, vector<512x128xbf16>
    %c0_1 = arith.constant 0 : index
    %c0_2 = arith.constant 0 : index
    %1 = vector.load %arg1[%c0_1, %c0_2] : memref<128x32xbf16, #tpu.memory_space<vmem>>, vector<128x32xbf16>
    %cst = arith.constant dense<0.000000e+00> : vector<512x32xf32>
    %2 = tpu.matmul %0, %1, %cst {dimension_numbers = #tpu.dot_dimension_numbers<[1], [0], [0], [1], [0, 0, 1, 1], [], []>} : vector<512x128xbf16>, vector<128x32xbf16>, vector<512x32xf32> -> vector<512x32xf32>
    %c0_3 = arith.constant 0 : index
    %c0_4 = arith.constant 0 : index
    %3 = vector.load %arg2[%c0_3, %c0_4] : memref<1x32xf32, #tpu.memory_space<vmem>>, vector<1x32xf32>
    %4 = vector.broadcast %3 : vector<1x32xf32> to vector<512x32xf32>
    %5 = arith.addf %2, %4 : vector<512x32xf32>
    %cst_5 = arith.constant 0.000000e+00 : f32
    %6 = vector.broadcast %cst_5 : f32 to vector<512x32xf32>
    %7 = arith.maximumf %5, %6 : vector<512x32xf32>
    %8 = arith.truncf %7 : vector<512x32xf32> to vector<512x32xbf16>
    %c0_6 = arith.constant 0 : index
    %c0_7 = arith.constant 0 : index
    %9 = vector.load %arg3[%c0_6, %c0_7] : memref<512x32xbf16, #tpu.memory_space<vmem>>, vector<512x32xbf16>
    tpu.vector_store %arg3[%c0_6, %c0_7], %8 {strides = array<i32>} : memref<512x32xbf16, #tpu.memory_space<vmem>>, vector<512x32xbf16>,
    return
  }
}

module attributes {stable_mosaic.version = 11 : i64} {
  func.func @_conv_mm_kernel(%arg0: memref<128x288xbf16, #tpu.memory_space<vmem>>, %arg1: memref<288x64xbf16, #tpu.memory_space<vmem>>, %arg2: memref<1x64xf32, #tpu.memory_space<vmem>>, %arg3: memref<128x64xbf16, #tpu.memory_space<vmem>>) attributes {dimension_semantics = [], scalar_prefetch = 0 : i64, scratch_operands = 0 : i64, tpu.core_type = #tpu.core_type<tc>} {
    %c0 = arith.constant 0 : index
    %c0_0 = arith.constant 0 : index
    %0 = vector.load %arg0[%c0, %c0_0] : memref<128x288xbf16, #tpu.memory_space<vmem>>, vector<128x288xbf16>
    %c0_1 = arith.constant 0 : index
    %c0_2 = arith.constant 0 : index
    %1 = vector.load %arg1[%c0_1, %c0_2] : memref<288x64xbf16, #tpu.memory_space<vmem>>, vector<288x64xbf16>
    %cst = arith.constant dense<0.000000e+00> : vector<128x64xf32>
    %2 = tpu.matmul %0, %1, %cst {dimension_numbers = #tpu.dot_dimension_numbers<[1], [0], [0], [1], [0, 0, 1, 1], [], []>} : vector<128x288xbf16>, vector<288x64xbf16>, vector<128x64xf32> -> vector<128x64xf32>
    %c0_3 = arith.constant 0 : index
    %c0_4 = arith.constant 0 : index
    %3 = vector.load %arg2[%c0_3, %c0_4] : memref<1x64xf32, #tpu.memory_space<vmem>>, vector<1x64xf32>
    %4 = vector.broadcast %3 : vector<1x64xf32> to vector<128x64xf32>
    %5 = arith.addf %2, %4 : vector<128x64xf32>
    %cst_5 = arith.constant 0.000000e+00 : f32
    %6 = vector.broadcast %cst_5 : f32 to vector<128x64xf32>
    %7 = arith.maximumf %5, %6 : vector<128x64xf32>
    %8 = arith.truncf %7 : vector<128x64xf32> to vector<128x64xbf16>
    %c0_6 = arith.constant 0 : index
    %c0_7 = arith.constant 0 : index
    %9 = vector.load %arg3[%c0_6, %c0_7] : memref<128x64xbf16, #tpu.memory_space<vmem>>, vector<128x64xbf16>
    tpu.vector_store %arg3[%c0_6, %c0_7], %8 {strides = array<i32>} : memref<128x64xbf16, #tpu.memory_space<vmem>>, vector<128x64xbf16>,
    return
  }
}

module attributes {stable_mosaic.version = 11 : i64} {
  func.func @_tail_kernel(%arg0: memref<32x576xbf16, #tpu.memory_space<vmem>>, %arg1: memref<128x16xbf16, #tpu.memory_space<vmem>>, %arg2: memref<2x512xf32, #tpu.memory_space<vmem>>, %arg3: memref<576x128xbf16, #tpu.memory_space<vmem>>, %arg4: memref<1x128xf32, #tpu.memory_space<vmem>>, %arg5: memref<512x256xbf16, #tpu.memory_space<vmem>>, %arg6: memref<1x256xf32, #tpu.memory_space<vmem>>, %arg7: memref<256x128xbf16, #tpu.memory_space<vmem>>, %arg8: memref<1x128xf32, #tpu.memory_space<vmem>>, %arg9: memref<128x512xbf16, #tpu.memory_space<vmem>>, %arg10: memref<16x64xbf16, #tpu.memory_space<vmem>>, %arg11: memref<1x64xf32, #tpu.memory_space<vmem>>, %arg12: memref<64x128xbf16, #tpu.memory_space<vmem>>, %arg13: memref<1x128xf32, #tpu.memory_space<vmem>>, %arg14: memref<128x1024xbf16, #tpu.memory_space<vmem>>, %arg15: memref<1x1024xf32, #tpu.memory_space<vmem>>, %arg16: memref<1024x512xbf16, #tpu.memory_space<vmem>>, %arg17: memref<1x512xf32, #tpu.memory_space<vmem>>, %arg18: memref<512x256xbf16, #tpu.memory_space<vmem>>, %arg19: memref<1x256xf32, #tpu.memory_space<vmem>>, %arg20: memref<1x256xf32, #tpu.memory_space<vmem>>, %arg21: memref<1x1xf32, #tpu.memory_space<vmem>>, %arg22: memref<2x256xf32, #tpu.memory_space<vmem>>, %arg23: memref<2x1xf32, #tpu.memory_space<vmem>>) attributes {dimension_semantics = [], scalar_prefetch = 0 : i64, scratch_operands = 0 : i64, tpu.core_type = #tpu.core_type<tc>} {
    %c0 = arith.constant 0 : index
    %c0_0 = arith.constant 0 : index
    %0 = vector.load %arg0[%c0, %c0_0] : memref<32x576xbf16, #tpu.memory_space<vmem>>, vector<32x576xbf16>
    %c0_1 = arith.constant 0 : index
    %c0_2 = arith.constant 0 : index
    %1 = vector.load %arg3[%c0_1, %c0_2] : memref<576x128xbf16, #tpu.memory_space<vmem>>, vector<576x128xbf16>
    %cst = arith.constant dense<0.000000e+00> : vector<32x128xf32>
    %2 = tpu.matmul %0, %1, %cst {dimension_numbers = #tpu.dot_dimension_numbers<[1], [0], [0], [1], [0, 0, 1, 1], [], []>} : vector<32x576xbf16>, vector<576x128xbf16>, vector<32x128xf32> -> vector<32x128xf32>
    %c0_3 = arith.constant 0 : index
    %c0_4 = arith.constant 0 : index
    %3 = vector.load %arg4[%c0_3, %c0_4] : memref<1x128xf32, #tpu.memory_space<vmem>>, vector<1x128xf32>
    %4 = vector.broadcast %3 : vector<1x128xf32> to vector<32x128xf32>
    %5 = arith.addf %2, %4 : vector<32x128xf32>
    %cst_5 = arith.constant 0.000000e+00 : f32
    %6 = vector.broadcast %cst_5 : f32 to vector<32x128xf32>
    %7 = arith.maximumf %5, %6 : vector<32x128xf32>
    %8 = vector.shape_cast %7 : vector<32x128xf32> to vector<2x16x128xf32>
    %c0_6 = arith.constant 0 : index
    %c0_7 = arith.constant 0 : index
    %9 = vector.load %arg6[%c0_6, %c0_7] : memref<1x256xf32, #tpu.memory_space<vmem>>, vector<1x256xf32>
    %10 = vector.extract_strided_slice %8 {offsets = [0, 0, 0], sizes = [2, 2, 128], strides = [1, 1, 1]} : vector<2x16x128xf32> to vector<2x2x128xf32>
    %cst_8 = arith.constant dense<0xFF800000> : vector<2x128xf32>
    %11 = vector.multi_reduction <maximumf>, %10, %cst_8 [1] : vector<2x2x128xf32> to vector<2x128xf32>
    %12 = vector.extract_strided_slice %8 {offsets = [0, 4, 0], sizes = [2, 2, 128], strides = [1, 1, 1]} : vector<2x16x128xf32> to vector<2x2x128xf32>
    %cst_9 = arith.constant dense<0xFF800000> : vector<2x128xf32>
    %13 = vector.multi_reduction <maximumf>, %12, %cst_9 [1] : vector<2x2x128xf32> to vector<2x128xf32>
    %14 = arith.maximumf %11, %13 : vector<2x128xf32>
    %15 = arith.truncf %14 : vector<2x128xf32> to vector<2x128xbf16>
    %c0_10 = arith.constant 0 : index
    %c0_11 = arith.constant 0 : index
    %16 = vector.load %arg5[%c0_10, %c0_11] : memref<512x256xbf16, #tpu.memory_space<vmem>>, vector<128x256xbf16>
    %cst_12 = arith.constant dense<0.000000e+00> : vector<2x256xf32>
    %17 = tpu.matmul %15, %16, %cst_12 {dimension_numbers = #tpu.dot_dimension_numbers<[1], [0], [0], [1], [0, 0, 1, 1], [], []>} : vector<2x128xbf16>, vector<128x256xbf16>, vector<2x256xf32> -> vector<2x256xf32>
    %18 = vector.broadcast %9 : vector<1x256xf32> to vector<2x256xf32>
    %19 = arith.addf %18, %17 : vector<2x256xf32>
    %20 = vector.extract_strided_slice %8 {offsets = [0, 2, 0], sizes = [2, 2, 128], strides = [1, 1, 1]} : vector<2x16x128xf32> to vector<2x2x128xf32>
    %cst_13 = arith.constant dense<0xFF800000> : vector<2x128xf32>
    %21 = vector.multi_reduction <maximumf>, %20, %cst_13 [1] : vector<2x2x128xf32> to vector<2x128xf32>
    %22 = vector.extract_strided_slice %8 {offsets = [0, 6, 0], sizes = [2, 2, 128], strides = [1, 1, 1]} : vector<2x16x128xf32> to vector<2x2x128xf32>
    %cst_14 = arith.constant dense<0xFF800000> : vector<2x128xf32>
    %23 = vector.multi_reduction <maximumf>, %22, %cst_14 [1] : vector<2x2x128xf32> to vector<2x128xf32>
    %24 = arith.maximumf %21, %23 : vector<2x128xf32>
    %25 = arith.truncf %24 : vector<2x128xf32> to vector<2x128xbf16>
    %c128 = arith.constant 128 : index
    %c0_15 = arith.constant 0 : index
    %26 = vector.load %arg5[%c128, %c0_15] : memref<512x256xbf16, #tpu.memory_space<vmem>>, vector<128x256xbf16>
    %cst_16 = arith.constant dense<0.000000e+00> : vector<2x256xf32>
    %27 = tpu.matmul %25, %26, %cst_16 {dimension_numbers = #tpu.dot_dimension_numbers<[1], [0], [0], [1], [0, 0, 1, 1], [], []>} : vector<2x128xbf16>, vector<128x256xbf16>, vector<2x256xf32> -> vector<2x256xf32>
    %28 = arith.addf %19, %27 : vector<2x256xf32>
    %29 = vector.extract_strided_slice %8 {offsets = [0, 8, 0], sizes = [2, 2, 128], strides = [1, 1, 1]} : vector<2x16x128xf32> to vector<2x2x128xf32>
    %cst_17 = arith.constant dense<0xFF800000> : vector<2x128xf32>
    %30 = vector.multi_reduction <maximumf>, %29, %cst_17 [1] : vector<2x2x128xf32> to vector<2x128xf32>
    %31 = vector.extract_strided_slice %8 {offsets = [0, 12, 0], sizes = [2, 2, 128], strides = [1, 1, 1]} : vector<2x16x128xf32> to vector<2x2x128xf32>
    %cst_18 = arith.constant dense<0xFF800000> : vector<2x128xf32>
    %32 = vector.multi_reduction <maximumf>, %31, %cst_18 [1] : vector<2x2x128xf32> to vector<2x128xf32>
    %33 = arith.maximumf %30, %32 : vector<2x128xf32>
    %34 = arith.truncf %33 : vector<2x128xf32> to vector<2x128xbf16>
    %c256 = arith.constant 256 : index
    %c0_19 = arith.constant 0 : index
    %35 = vector.load %arg5[%c256, %c0_19] : memref<512x256xbf16, #tpu.memory_space<vmem>>, vector<128x256xbf16>
    %cst_20 = arith.constant dense<0.000000e+00> : vector<2x256xf32>
    %36 = tpu.matmul %34, %35, %cst_20 {dimension_numbers = #tpu.dot_dimension_numbers<[1], [0], [0], [1], [0, 0, 1, 1], [], []>} : vector<2x128xbf16>, vector<128x256xbf16>, vector<2x256xf32> -> vector<2x256xf32>
    %37 = arith.addf %28, %36 : vector<2x256xf32>
    %38 = vector.extract_strided_slice %8 {offsets = [0, 10, 0], sizes = [2, 2, 128], strides = [1, 1, 1]} : vector<2x16x128xf32> to vector<2x2x128xf32>
    %cst_21 = arith.constant dense<0xFF800000> : vector<2x128xf32>
    %39 = vector.multi_reduction <maximumf>, %38, %cst_21 [1] : vector<2x2x128xf32> to vector<2x128xf32>
    %40 = vector.extract_strided_slice %8 {offsets = [0, 14, 0], sizes = [2, 2, 128], strides = [1, 1, 1]} : vector<2x16x128xf32> to vector<2x2x128xf32>
    %cst_22 = arith.constant dense<0xFF800000> : vector<2x128xf32>
    %41 = vector.multi_reduction <maximumf>, %40, %cst_22 [1] : vector<2x2x128xf32> to vector<2x128xf32>
    %42 = arith.maximumf %39, %41 : vector<2x128xf32>
    %43 = arith.truncf %42 : vector<2x128xf32> to vector<2x128xbf16>
    %c384 = arith.constant 384 : index
    %c0_23 = arith.constant 0 : index
    %44 = vector.load %arg5[%c384, %c0_23] : memref<512x256xbf16, #tpu.memory_space<vmem>>, vector<128x256xbf16>
    %cst_24 = arith.constant dense<0.000000e+00> : vector<2x256xf32>
    %45 = tpu.matmul %43, %44, %cst_24 {dimension_numbers = #tpu.dot_dimension_numbers<[1], [0], [0], [1], [0, 0, 1, 1], [], []>} : vector<2x128xbf16>, vector<128x256xbf16>, vector<2x256xf32> -> vector<2x256xf32>
    %46 = arith.addf %37, %45 : vector<2x256xf32>
    %cst_25 = arith.constant 0.000000e+00 : f32
    %47 = vector.broadcast %cst_25 : f32 to vector<2x256xf32>
    %48 = arith.maximumf %46, %47 : vector<2x256xf32>
    %49 = arith.truncf %48 : vector<2x256xf32> to vector<2x256xbf16>
    %c0_26 = arith.constant 0 : index
    %c0_27 = arith.constant 0 : index
    %50 = vector.load %arg7[%c0_26, %c0_27] : memref<256x128xbf16, #tpu.memory_space<vmem>>, vector<256x128xbf16>
    %cst_28 = arith.constant dense<0.000000e+00> : vector<2x128xf32>
    %51 = tpu.matmul %49, %50, %cst_28 {dimension_numbers = #tpu.dot_dimension_numbers<[1], [0], [0], [1], [0, 0, 1, 1], [], []>} : vector<2x256xbf16>, vector<256x128xbf16>, vector<2x128xf32> -> vector<2x128xf32>
    %c0_29 = arith.constant 0 : index
    %c0_30 = arith.constant 0 : index
    %52 = vector.load %arg8[%c0_29, %c0_30] : memref<1x128xf32, #tpu.memory_space<vmem>>, vector<1x128xf32>
    %53 = vector.broadcast %52 : vector<1x128xf32> to vector<2x128xf32>
    %54 = arith.addf %51, %53 : vector<2x128xf32>
    %cst_31 = arith.constant 0.000000e+00 : f32
    %55 = vector.broadcast %cst_31 : f32 to vector<2x128xf32>
    %56 = arith.maximumf %54, %55 : vector<2x128xf32>
    %57 = arith.truncf %56 : vector<2x128xf32> to vector<2x128xbf16>
    %c0_32 = arith.constant 0 : index
    %c0_33 = arith.constant 0 : index
    %58 = vector.load %arg9[%c0_32, %c0_33] : memref<128x512xbf16, #tpu.memory_space<vmem>>, vector<128x512xbf16>
    %cst_34 = arith.constant dense<0.000000e+00> : vector<2x512xf32>
    %59 = tpu.matmul %57, %58, %cst_34 {dimension_numbers = #tpu.dot_dimension_numbers<[1], [0], [0], [1], [0, 0, 1, 1], [], []>} : vector<2x128xbf16>, vector<128x512xbf16>, vector<2x512xf32> -> vector<2x512xf32>
    %c0_35 = arith.constant 0 : index
    %c0_36 = arith.constant 0 : index
    %60 = vector.load %arg1[%c0_35, %c0_36] : memref<128x16xbf16, #tpu.memory_space<vmem>>, vector<128x16xbf16>
    %c0_37 = arith.constant 0 : index
    %c0_38 = arith.constant 0 : index
    %61 = vector.load %arg10[%c0_37, %c0_38] : memref<16x64xbf16, #tpu.memory_space<vmem>>, vector<16x64xbf16>
    %cst_39 = arith.constant dense<0.000000e+00> : vector<128x64xf32>
    %62 = tpu.matmul %60, %61, %cst_39 {dimension_numbers = #tpu.dot_dimension_numbers<[1], [0], [0], [1], [0, 0, 1, 1], [], []>} : vector<128x16xbf16>, vector<16x64xbf16>, vector<128x64xf32> -> vector<128x64xf32>
    %c0_40 = arith.constant 0 : index
    %c0_41 = arith.constant 0 : index
    %63 = vector.load %arg11[%c0_40, %c0_41] : memref<1x64xf32, #tpu.memory_space<vmem>>, vector<1x64xf32>
    %64 = vector.broadcast %63 : vector<1x64xf32> to vector<128x64xf32>
    %65 = arith.addf %62, %64 : vector<128x64xf32>
    %cst_42 = arith.constant 0.000000e+00 : f32
    %66 = vector.broadcast %cst_42 : f32 to vector<128x64xf32>
    %67 = arith.maximumf %65, %66 : vector<128x64xf32>
    %68 = arith.truncf %67 : vector<128x64xf32> to vector<128x64xbf16>
    %c0_43 = arith.constant 0 : index
    %c0_44 = arith.constant 0 : index
    %69 = vector.load %arg12[%c0_43, %c0_44] : memref<64x128xbf16, #tpu.memory_space<vmem>>, vector<64x128xbf16>
    %cst_45 = arith.constant dense<0.000000e+00> : vector<128x128xf32>
    %70 = tpu.matmul %68, %69, %cst_45 {dimension_numbers = #tpu.dot_dimension_numbers<[1], [0], [0], [1], [0, 0, 1, 1], [], []>} : vector<128x64xbf16>, vector<64x128xbf16>, vector<128x128xf32> -> vector<128x128xf32>
    %c0_46 = arith.constant 0 : index
    %c0_47 = arith.constant 0 : index
    %71 = vector.load %arg13[%c0_46, %c0_47] : memref<1x128xf32, #tpu.memory_space<vmem>>, vector<1x128xf32>
    %72 = vector.broadcast %71 : vector<1x128xf32> to vector<128x128xf32>
    %73 = arith.addf %70, %72 : vector<128x128xf32>
    %cst_48 = arith.constant 0.000000e+00 : f32
    %74 = vector.broadcast %cst_48 : f32 to vector<128x128xf32>
    %75 = arith.maximumf %73, %74 : vector<128x128xf32>
    %76 = arith.truncf %75 : vector<128x128xf32> to vector<128x128xbf16>
    %c0_49 = arith.constant 0 : index
    %c0_50 = arith.constant 0 : index
    %77 = vector.load %arg14[%c0_49, %c0_50] : memref<128x1024xbf16, #tpu.memory_space<vmem>>, vector<128x1024xbf16>
    %cst_51 = arith.constant dense<0.000000e+00> : vector<128x1024xf32>
    %78 = tpu.matmul %76, %77, %cst_51 {dimension_numbers = #tpu.dot_dimension_numbers<[1], [0], [0], [1], [0, 0, 1, 1], [], []>} : vector<128x128xbf16>, vector<128x1024xbf16>, vector<128x1024xf32> -> vector<128x1024xf32>
    %79 = arith.truncf %78 : vector<128x1024xf32> to vector<128x1024xbf16>
    %80 = vector.shape_cast %79 : vector<128x1024xbf16> to vector<2x64x1024xbf16>
    %cst_52 = arith.constant dense<0xFF80> : vector<2x1024xbf16>
    %81 = vector.multi_reduction <maximumf>, %80, %cst_52 [1] : vector<2x64x1024xbf16> to vector<2x1024xbf16>
    %82 = arith.extf %81 : vector<2x1024xbf16> to vector<2x1024xf32>
    %c0_53 = arith.constant 0 : index
    %c0_54 = arith.constant 0 : index
    %83 = vector.load %arg15[%c0_53, %c0_54] : memref<1x1024xf32, #tpu.memory_space<vmem>>, vector<1x1024xf32>
    %84 = vector.broadcast %83 : vector<1x1024xf32> to vector<2x1024xf32>
    %85 = arith.addf %82, %84 : vector<2x1024xf32>
    %86 = arith.truncf %85 : vector<2x1024xf32> to vector<2x1024xbf16>
    %c0_55 = arith.constant 0 : index
    %c0_56 = arith.constant 0 : index
    %87 = vector.load %arg16[%c0_55, %c0_56] : memref<1024x512xbf16, #tpu.memory_space<vmem>>, vector<1024x512xbf16>
    %cst_57 = arith.constant dense<0.000000e+00> : vector<2x512xf32>
    %88 = tpu.matmul %86, %87, %cst_57 {dimension_numbers = #tpu.dot_dimension_numbers<[1], [0], [0], [1], [0, 0, 1, 1], [], []>} : vector<2x1024xbf16>, vector<1024x512xbf16>, vector<2x512xf32> -> vector<2x512xf32>
    %89 = arith.addf %59, %88 : vector<2x512xf32>
    %c0_58 = arith.constant 0 : index
    %c0_59 = arith.constant 0 : index
    %90 = vector.load %arg2[%c0_58, %c0_59] : memref<2x512xf32, #tpu.memory_space<vmem>>, vector<2x512xf32>
    %91 = arith.addf %89, %90 : vector<2x512xf32>
    %c0_60 = arith.constant 0 : index
    %c0_61 = arith.constant 0 : index
    %92 = vector.load %arg17[%c0_60, %c0_61] : memref<1x512xf32, #tpu.memory_space<vmem>>, vector<1x512xf32>
    %93 = vector.broadcast %92 : vector<1x512xf32> to vector<2x512xf32>
    %94 = arith.addf %91, %93 : vector<2x512xf32>
    %cst_62 = arith.constant 0.000000e+00 : f32
    %95 = vector.broadcast %cst_62 : f32 to vector<2x512xf32>
    %96 = arith.maximumf %94, %95 : vector<2x512xf32>
    %97 = arith.truncf %96 : vector<2x512xf32> to vector<2x512xbf16>
    %c0_63 = arith.constant 0 : index
    %c0_64 = arith.constant 0 : index
    %98 = vector.load %arg18[%c0_63, %c0_64] : memref<512x256xbf16, #tpu.memory_space<vmem>>, vector<512x256xbf16>
    %cst_65 = arith.constant dense<0.000000e+00> : vector<2x256xf32>
    %99 = tpu.matmul %97, %98, %cst_65 {dimension_numbers = #tpu.dot_dimension_numbers<[1], [0], [0], [1], [0, 0, 1, 1], [], []>} : vector<2x512xbf16>, vector<512x256xbf16>, vector<2x256xf32> -> vector<2x256xf32>
    %c0_66 = arith.constant 0 : index
    %c0_67 = arith.constant 0 : index
    %100 = vector.load %arg19[%c0_66, %c0_67] : memref<1x256xf32, #tpu.memory_space<vmem>>, vector<1x256xf32>
    %101 = vector.broadcast %100 : vector<1x256xf32> to vector<2x256xf32>
    %102 = arith.addf %99, %101 : vector<2x256xf32>
    %cst_68 = arith.constant 0.000000e+00 : f32
    %103 = vector.broadcast %cst_68 : f32 to vector<2x256xf32>
    %104 = arith.maximumf %102, %103 : vector<2x256xf32>
    %c0_69 = arith.constant 0 : index
    %c0_70 = arith.constant 0 : index
    %105 = vector.load %arg22[%c0_69, %c0_70] : memref<2x256xf32, #tpu.memory_space<vmem>>, vector<2x256xf32>
    tpu.vector_store %arg22[%c0_69, %c0_70], %104 {strides = array<i32>} : memref<2x256xf32, #tpu.memory_space<vmem>>, vector<2x256xf32>,
    %c0_71 = arith.constant 0 : index
    %c0_72 = arith.constant 0 : index
    %106 = vector.load %arg20[%c0_71, %c0_72] : memref<1x256xf32, #tpu.memory_space<vmem>>, vector<1x256xf32>
    %107 = vector.broadcast %106 : vector<1x256xf32> to vector<2x256xf32>
    %108 = arith.mulf %104, %107 : vector<2x256xf32>
    %cst_73 = arith.constant dense<0.000000e+00> : vector<2xf32>
    %109 = vector.multi_reduction <add>, %108, %cst_73 [1] : vector<2x256xf32> to vector<2xf32>
    %110 = vector.shape_cast %109 : vector<2xf32> to vector<2x1xf32>
    %c0_74 = arith.constant 0 : index
    %c0_75 = arith.constant 0 : index
    %111 = vector.load %arg21[%c0_74, %c0_75] : memref<1x1xf32, #tpu.memory_space<vmem>>, vector<1x1xf32>
    %112 = vector.broadcast %111 : vector<1x1xf32> to vector<2x1xf32>
    %113 = arith.addf %110, %112 : vector<2x1xf32>
    %c0_76 = arith.constant 0 : index
    %c0_77 = arith.constant 0 : index
    %114 = vector.load %arg23[%c0_76, %c0_77] : memref<2x1xf32, #tpu.memory_space<vmem>>, vector<2x1xf32>
    tpu.vector_store %arg23[%c0_76, %c0_77], %113 {strides = array<i32>} : memref<2x1xf32, #tpu.memory_space<vmem>>, vector<2x1xf32>,
    return
  }
}

</mosaic_0001>

<llo_original>
// kernel: rl_explore_policy_forward.3
$region0: #{rl_explore_policy_forward.3}
  #allocation0 [shape = 'u32[]', space=smem, size = 0x4, offset = 0x4, fixed_abs, tag = 'smem constant byte address 0x4 - core index']
  #allocation1 [shape = 'u32[72,128]{1,0:T(1,128)}', space=vmem, size = 0x9000, scoped, tag = 'internal scratch']
  %s0 = inlined_call_operand.vmem [shape: bf16[512,128], index: 0, kind: input, shape index: {}]
  %s1 = inlined_call_operand.vmem [shape: bf16[128,32], index: 1, kind: input, shape index: {}]
  %s2 = inlined_call_operand.vmem [shape: f32[1,32], index: 2, kind: input, shape index: {}]
  %s3 = inlined_call_operand.vmem [shape: bf16[512,32], index: 3, kind: output, shape index: {}]
  %s4 = sld [smem:[#allocation0]]
  $region22: #{rl_explore_policy_forward.3} parent=0
    _
  %s6 = ssub.s32 1, %s4
  %s7 = scalar_select 0, %s6, %s4
  // Predicated region
  $region2: #{rl_explore_policy_forward.3} parent=0 // pred_check
    _
  $region3: #{rl_explore_policy_forward.3} parent=0 // pred_check_branch
    %9 = sbr.rel (0) target = $region5
  $region4: #{rl_explore_policy_forward.3} parent=0 // pred_region
    _
  $region5: #{rl_explore_policy_forward.3} parent=0 // pred_fallthru
    _
  // Predicated region
  $region6: #{rl_explore_policy_forward.3} parent=0 // pred_check
    _
  $region7: #{rl_explore_policy_forward.3} parent=0 // pred_check_branch
    %11 = sbr.rel (0) target = $region9
  $region8: #{rl_explore_policy_forward.3} parent=0 // pred_region
    _
  $region9: #{rl_explore_policy_forward.3} parent=0 // pred_fallthru
    _
  // Predicated region
  $region10: #{rl_explore_policy_forward.3} parent=0 // pred_check
    _
  $region11: #{rl_explore_policy_forward.3} parent=0 // pred_check_branch
    %13 = sbr.rel (0) target = $region13
  $region12: #{rl_explore_policy_forward.3} parent=0 // pred_region
    _
  $region13: #{rl_explore_policy_forward.3} parent=0 // pred_fallthru
    _
  %v14 = vld [vmem:[%s0] sm:$0xf]
  %v15 = vld [vmem:[%s0 + $0x4] sm:$0xf]
  %v16 = vld [vmem:[%s0 + $0x8] sm:$0xf]
  %v17 = vld [vmem:[%s0 + $0xc] sm:$0xf]
  %v18 = vld [vmem:[%s0 + $0x10] sm:$0xf]
  %v19 = vld [vmem:[%s0 + $0x14] sm:$0xf]
  %v20 = vld [vmem:[%s0 + $0x18] sm:$0xf]
  %v21 = vld [vmem:[%s0 + $0x1c] sm:$0xf]
  %v22 = vld [vmem:[%s0 + $0x20] sm:$0xf]
  %v23 = vld [vmem:[%s0 + $0x24] sm:$0xf]
  %v24 = vld [vmem:[%s0 + $0x28] sm:$0xf]
  %v25 = vld [vmem:[%s0 + $0x2c] sm:$0xf]
  %v26 = vld [vmem:[%s0 + $0x30] sm:$0xf]
  %v27 = vld [vmem:[%s0 + $0x34] sm:$0xf]
  %v28 = vld [vmem:[%s0 + $0x38] sm:$0xf]
  %v29 = vld [vmem:[%s0 + $0x3c] sm:$0xf]
  %v30 = vld [vmem:[%s0 + $0x40] sm:$0xf]
  %v31 = vld [vmem:[%s0 + $0x44] sm:$0xf]
  %v32 = vld [vmem:[%s0 + $0x48] sm:$0xf]
  %v33 = vld [vmem:[%s0 + $0x4c] sm:$0xf]
  %v34 = vld [vmem:[%s0 + $0x50] sm:$0xf]
  %v35 = vld [vmem:[%s0 + $0x54] sm:$0xf]
  %v36 = vld [vmem:[%s0 + $0x58] sm:$0xf]
  %v37 = vld [vmem:[%s0 + $0x5c] sm:$0xf]
  %v38 = vld [vmem:[%s0 + $0x60] sm:$0xf]
  %v39 = vld [vmem:[%s0 + $0x64] sm:$0xf]
  %v40 = vld [vmem:[%s0 + $0x68] sm:$0xf]
  %v41 = vld [vmem:[%s0 + $0x6c] sm:$0xf]
  %v42 = vld [vmem:[%s0 + $0x70] sm:$0xf]
  %v43 = vld [vmem:[%s0 + $0x74] sm:$0xf]
  %v44 = vld [vmem:[%s0 + $0x78] sm:$0xf]
  %v45 = vld [vmem:[%s0 + $0x7c] sm:$0xf]
  %v46 = vld [vmem:[%s0 + $0x80] sm:$0xf]
  %v47 = vld [vmem:[%s0 + $0x84] sm:$0xf]
  %v48 = vld [vmem:[%s0 + $0x88] sm:$0xf]
  %v49 = vld [vmem:[%s0 + $0x8c] sm:$0xf]
  %v50 = vld [vmem:[%s0 + $0x90] sm:$0xf]
  %v51 = vld [vmem:[%s0 + $0x94] sm:$0xf]
  %v52 = vld [vmem:[%s0 + $0x98] sm:$0xf]
  %v53 = vld [vmem:[%s0 + $0x9c] sm:$0xf]
  %v54 = vld [vmem:[%s0 + $0xa0] sm:$0xf]
  %v55 = vld [vmem:[%s0 + $0xa4] sm:$0xf]
  %v56 = vld [vmem:[%s0 + $0xa8] sm:$0xf]
  %v57 = vld [vmem:[%s0 + $0xac] sm:$0xf]
  %v58 = vld [vmem:[%s0 + $0xb0] sm:$0xf]
  %v59 = vld [vmem:[%s0 + $0xb4] sm:$0xf]
  %v60 = vld [vmem:[%s0 + $0xb8] sm:$0xf]
  %v61 = vld [vmem:[%s0 + $0xbc] sm:$0xf]
  %v62 = vld [vmem:[%s0 + $0xc0] sm:$0xf]
  %v63 = vld [vmem:[%s0 + $0xc4] sm:$0xf]
  %v64 = vld [vmem:[%s0 + $0xc8] sm:$0xf]
  %v65 = vld [vmem:[%s0 + $0xcc] sm:$0xf]
  %v66 = vld [vmem:[%s0 + $0xd0] sm:$0xf]
  %v67 = vld [vmem:[%s0 + $0xd4] sm:$0xf]
  %v68 = vld [vmem:[%s0 + $0xd8] sm:$0xf]
  %v69 = vld [vmem:[%s0 + $0xdc] sm:$0xf]
  %v70 = vld [vmem:[%s0 + $0xe0] sm:$0xf]
  %v71 = vld [vmem:[%s0 + $0xe4] sm:$0xf]
  %v72 = vld [vmem:[%s0 + $0xe8] sm:$0xf]
  %v73 = vld [vmem:[%s0 + $0xec] sm:$0xf]
  %v74 = vld [vmem:[%s0 + $0xf0] sm:$0xf]
  %v75 = vld [vmem:[%s0 + $0xf4] sm:$0xf]
  %v76 = vld [vmem:[%s0 + $0xf8] sm:$0xf]
  %v77 = vld [vmem:[%s0 + $0xfc] sm:$0xf]
  %v78 = vld [vmem:[%s1] sm:$0xf]
  %v79 = vld [vmem:[%s1 + $0x4] sm:$0xf]
  %v80 = vld [vmem:[%s1 + $0x8] sm:$0xf]
  %v81 = vld [vmem:[%s1 + $0xc] sm:$0xf]
  %v82 = vld [vmem:[%s1 + $0x10] sm:$0xf]
  %v83 = vld [vmem:[%s1 + $0x14] sm:$0xf]
  %v84 = vld [vmem:[%s1 + $0x18] sm:$0xf]
  %v85 = vld [vmem:[%s1 + $0x1c] sm:$0xf]
  %v86 = vld [vmem:[%s1 + $0x20] sm:$0xf]
  %v87 = vld [vmem:[%s1 + $0x24] sm:$0xf]
  %v88 = vld [vmem:[%s1 + $0x28] sm:$0xf]
  %v89 = vld [vmem:[%s1 + $0x2c] sm:$0xf]
  %v90 = vld [vmem:[%s1 + $0x30] sm:$0xf]
  %v91 = vld [vmem:[%s1 + $0x34] sm:$0xf]
  %v92 = vld [vmem:[%s1 + $0x38] sm:$0xf]
  %v93 = vld [vmem:[%s1 + $0x3c] sm:$0xf]
  %v94 = vld [vmem:[%s2] sm:$0x1]
  %v96 = vperm.slane %v94, 0
  %v162 = vunpack.c.l.b16 %v14
  %v163 = vunpack.c.l.b16 %v15
  %v164 = vunpack.c.l.b16 %v16
  %v165 = vunpack.c.l.b16 %v17
  %v166 = vunpack.c.l.b16 %v18
  %v167 = vunpack.c.l.b16 %v19
  %v168 = vunpack.c.l.b16 %v20
  %v169 = vunpack.c.l.b16 %v21
  %v170 = vunpack.c.l.b16 %v22
  %v171 = vunpack.c.l.b16 %v23
  %v172 = vunpack.c.l.b16 %v24
  %v173 = vunpack.c.l.b16 %v25
  %v174 = vunpack.c.l.b16 %v26
  %v175 = vunpack.c.l.b16 %v27
  %v176 = vunpack.c.l.b16 %v28
  %v177 = vunpack.c.l.b16 %v29
  %v178 = vunpack.c.l.b16 %v30
  %v179 = vunpack.c.l.b16 %v31
  %v180 = vunpack.c.l.b16 %v32
  %v181 = vunpack.c.l.b16 %v33
  %v182 = vunpack.c.l.b16 %v34
  %v183 = vunpack.c.l.b16 %v35
  %v184 = vunpack.c.l.b16 %v36
  %v185 = vunpack.c.l.b16 %v37
  %v186 = vunpack.c.l.b16 %v38
  %v187 = vunpack.c.l.b16 %v39
  %v188 = vunpack.c.l.b16 %v40
  %v189 = vunpack.c.l.b16 %v41
  %v190 = vunpack.c.l.b16 %v42
  %v191 = vunpack.c.l.b16 %v43
  %v192 = vunpack.c.l.b16 %v44
  %v193 = vunpack.c.l.b16 %v45
  %v194 = vunpack.c.l.b16 %v46
  %v195 = vunpack.c.l.b16 %v47
  %v196 = vunpack.c.l.b16 %v48
  %v197 = vunpack.c.l.b16 %v49
  %v198 = vunpack.c.l.b16 %v50
  %v199 = vunpack.c.l.b16 %v51
  %v200 = vunpack.c.l.b16 %v52
  %v201 = vunpack.c.l.b16 %v53
  %v202 = vunpack.c.l.b16 %v54
  %v203 = vunpack.c.l.b16 %v55
  %v204 = vunpack.c.l.b16 %v56
  %v205 = vunpack.c.l.b16 %v57
  %v206 = vunpack.c.l.b16 %v58
  %v207 = vunpack.c.l.b16 %v59
  %v208 = vunpack.c.l.b16 %v60
  %v209 = vunpack.c.l.b16 %v61
  %v210 = vunpack.c.l.b16 %v62
  %v211 = vunpack.c.l.b16 %v63
  %v212 = vunpack.c.l.b16 %v64
  %v213 = vunpack.c.l.b16 %v65
  %v214 = vunpack.c.l.b16 %v66
  %v215 = vunpack.c.l.b16 %v67
  %v216 = vunpack.c.l.b16 %v68
  %v217 = vunpack.c.l.b16 %v69
  %v218 = vunpack.c.l.b16 %v70
  %v219 = vunpack.c.l.b16 %v71
  %v220 = vunpack.c.l.b16 %v72
  %v221 = vunpack.c.l.b16 %v73
  %v222 = vunpack.c.l.b16 %v74
  %v223 = vunpack.c.l.b16 %v75
  %v224 = vunpack.c.l.b16 %v76
  %v225 = vunpack.c.l.b16 %v77
  %v226 = vpack.c.b16 %v163, %v162
  %v227 = vpack.c.b16 %v165, %v164
  %v228 = vpack.c.b16 %v167, %v166
  %v229 = vpack.c.b16 %v169, %v168
  %v230 = vpack.c.b16 %v171, %v170
  %v231 = vpack.c.b16 %v173, %v172
  %v232 = vpack.c.b16 %v175, %v174
  %v233 = vpack.c.b16 %v177, %v176
  %v234 = vpack.c.b16 %v179, %v178
  %v235 = vpack.c.b16 %v181, %v180
  %v236 = vpack.c.b16 %v183, %v182
  %v237 = vpack.c.b16 %v185, %v184
  %v238 = vpack.c.b16 %v187, %v186
  %v239 = vpack.c.b16 %v189, %v188
  %v240 = vpack.c.b16 %v191, %v190
  %v241 = vpack.c.b16 %v193, %v192
  %v242 = vpack.c.b16 %v195, %v194
  %v243 = vpack.c.b16 %v197, %v196
  %v244 = vpack.c.b16 %v199, %v198
  %v245 = vpack.c.b16 %v201, %v200
  %v246 = vpack.c.b16 %v203, %v202
  %v247 = vpack.c.b16 %v205, %v204
  %v248 = vpack.c.b16 %v207, %v206
  %v249 = vpack.c.b16 %v209, %v208
  %v250 = vpack.c.b16 %v211, %v210
  %v251 = vpack.c.b16 %v213, %v212
  %v252 = vpack.c.b16 %v215, %v214
  %v253 = vpack.c.b16 %v217, %v216
  %v254 = vpack.c.b16 %v219, %v218
  %v255 = vpack.c.b16 %v221, %v220
  %v256 = vpack.c.b16 %v223, %v222
  %v257 = vpack.c.b16 %v225, %v224
  %v306 = vunpack.c.l.b16 %v78
  %v307 = vunpack.c.l.b16 %v79
  %v308 = vunpack.c.l.b16 %v80
  %v309 = vunpack.c.l.b16 %v81
  %v310 = vunpack.c.l.b16 %v82
  %v311 = vunpack.c.l.b16 %v83
  %v312 = vunpack.c.l.b16 %v84
  %v313 = vunpack.c.l.b16 %v85
  %v314 = vunpack.c.l.b16 %v86
  %v315 = vunpack.c.l.b16 %v87
  %v316 = vunpack.c.l.b16 %v88
  %v317 = vunpack.c.l.b16 %v89
  %v318 = vunpack.c.l.b16 %v90
  %v319 = vunpack.c.l.b16 %v91
  %v320 = vunpack.c.l.b16 %v92
  %v321 = vunpack.c.l.b16 %v93
  %v322 = vpack.c.b16 %v307, %v306
  %v323 = vpack.c.b16 %v309, %v308
  %v324 = vpack.c.b16 %v311, %v310
  %v325 = vpack.c.b16 %v313, %v312
  %v326 = vpack.c.b16 %v315, %v314
  %v327 = vpack.c.b16 %v317, %v316
  %v328 = vpack.c.b16 %v319, %v318
  %v329 = vpack.c.b16 %v321, %v320
  %338 = vmatpush.bf16.msra.mxu0 %v329
  %339 = vmatpush.bf16.msra.mxu0 %v328
  %340 = vmatpush.bf16.msra.mxu0 %v327
  %341 = vmatpush.bf16.msra.mxu0 %v326
  %342 = vmatpush.bf16.msra.mxu0 %v325
  %343 = vmatpush.bf16.msra.mxu0 %v324
  %344 = vmatpush.bf16.msra.mxu0 %v323
  %345 = vmatpush.bf16.msra.mxu0 %v322
  %346 = vmatmul.bf16.gmra.mxu0 %v226
  %v347 = vpop.f32.mrf.mxu0
  %v348 = vadd.f32 %v96, %v347
  %v349 = vpop.f32.mrf.mxu0
  %v350 = vadd.f32 %v96, %v349
  %351 = vmatmul.bf16.gmra.mxu0 %v227
  %v352 = vpop.f32.mrf.mxu0
  %v353 = vadd.f32 %v96, %v352
  %v354 = vpop.f32.mrf.mxu0
  %v355 = vadd.f32 %v96, %v354
  %356 = vmatmul.bf16.gmra.mxu0 %v228
  %v357 = vpop.f32.mrf.mxu0
  %v358 = vadd.f32 %v96, %v357
  %v359 = vpop.f32.mrf.mxu0
  %v360 = vadd.f32 %v96, %v359
  %361 = vmatmul.bf16.gmra.mxu0 %v229
  %v362 = vpop.f32.mrf.mxu0
  %v363 = vadd.f32 %v96, %v362
  %v364 = vpop.f32.mrf.mxu0
  %v365 = vadd.f32 %v96, %v364
  %366 = vmatmul.bf16.gmra.mxu0 %v230
  %v367 = vpop.f32.mrf.mxu0
  %v368 = vadd.f32 %v96, %v367
  %v369 = vpop.f32.mrf.mxu0
  %v370 = vadd.f32 %v96, %v369
  %371 = vmatmul.bf16.gmra.mxu0 %v231
  %v372 = vpop.f32.mrf.mxu0
  %v373 = vadd.f32 %v96, %v372
  %v374 = vpop.f32.mrf.mxu0
  %v375 = vadd.f32 %v96, %v374
  %376 = vmatmul.bf16.gmra.mxu0 %v232
  %v377 = vpop.f32.mrf.mxu0
  %v378 = vadd.f32 %v96, %v377
  %v379 = vpop.f32.mrf.mxu0
  %v380 = vadd.f32 %v96, %v379
  %381 = vmatmul.bf16.gmra.mxu0 %v233
  %v382 = vpop.f32.mrf.mxu0
  %v383 = vadd.f32 %v96, %v382
  %v384 = vpop.f32.mrf.mxu0
  %v385 = vadd.f32 %v96, %v384
  %386 = vmatmul.bf16.gmra.mxu0 %v234
  %v387 = vpop.f32.mrf.mxu0
  %v388 = vadd.f32 %v96, %v387
  %v389 = vpop.f32.mrf.mxu0
  %v390 = vadd.f32 %v96, %v389
  %391 = vmatmul.bf16.gmra.mxu0 %v235
  %v392 = vpop.f32.mrf.mxu0
  %v393 = vadd.f32 %v96, %v392
  %v394 = vpop.f32.mrf.mxu0
  %v395 = vadd.f32 %v96, %v394
  %396 = vmatmul.bf16.gmra.mxu0 %v236
  %v397 = vpop.f32.mrf.mxu0
  %v398 = vadd.f32 %v96, %v397
  %v399 = vpop.f32.mrf.mxu0
  %v400 = vadd.f32 %v96, %v399
  %401 = vmatmul.bf16.gmra.mxu0 %v237
  %v402 = vpop.f32.mrf.mxu0
  %v403 = vadd.f32 %v96, %v402
  %v404 = vpop.f32.mrf.mxu0
  %v405 = vadd.f32 %v96, %v404
  %406 = vmatmul.bf16.gmra.mxu0 %v238
  %v407 = vpop.f32.mrf.mxu0
  %v408 = vadd.f32 %v96, %v407
  %v409 = vpop.f32.mrf.mxu0
  %v410 = vadd.f32 %v96, %v409
  %411 = vmatmul.bf16.gmra.mxu0 %v239
  %v412 = vpop.f32.mrf.mxu0
  %v413 = vadd.f32 %v96, %v412
  %v414 = vpop.f32.mrf.mxu0
  %v415 = vadd.f32 %v96, %v414
  %416 = vmatmul.bf16.gmra.mxu0 %v240
  %v417 = vpop.f32.mrf.mxu0
  %v418 = vadd.f32 %v96, %v417
  %v419 = vpop.f32.mrf.mxu0
  %v420 = vadd.f32 %v96, %v419
  %421 = vmatmul.bf16.gmra.mxu0 %v241
  %v422 = vpop.f32.mrf.mxu0
  %v423 = vadd.f32 %v96, %v422
  %v424 = vpop.f32.mrf.mxu0
  %v425 = vadd.f32 %v96, %v424
  %426 = vmatmul.bf16.gmra.mxu0 %v242
  %v427 = vpop.f32.mrf.mxu0
  %v428 = vadd.f32 %v96, %v427
  %v429 = vpop.f32.mrf.mxu0
  %v430 = vadd.f32 %v96, %v429
  %431 = vmatmul.bf16.gmra.mxu0 %v243
  %v432 = vpop.f32.mrf.mxu0
  %v433 = vadd.f32 %v96, %v432
  %v434 = vpop.f32.mrf.mxu0
  %v435 = vadd.f32 %v96, %v434
  %436 = vmatmul.bf16.gmra.mxu0 %v244
  %v437 = vpop.f32.mrf.mxu0
  %v438 = vadd.f32 %v96, %v437
  %v439 = vpop.f32.mrf.mxu0
  %v440 = vadd.f32 %v96, %v439
  %441 = vmatmul.bf16.gmra.mxu0 %v245
  %v442 = vpop.f32.mrf.mxu0
  %v443 = vadd.f32 %v96, %v442
  %v444 = vpop.f32.mrf.mxu0
  %v445 = vadd.f32 %v96, %v444
  %446 = vmatmul.bf16.gmra.mxu0 %v246
  %v447 = vpop.f32.mrf.mxu0
  %v448 = vadd.f32 %v96, %v447
  %v449 = vpop.f32.mrf.mxu0
  %v450 = vadd.f32 %v96, %v449
  %451 = vmatmul.bf16.gmra.mxu0 %v247
  %v452 = vpop.f32.mrf.mxu0
  %v453 = vadd.f32 %v96, %v452
  %v454 = vpop.f32.mrf.mxu0
  %v455 = vadd.f32 %v96, %v454
  %456 = vmatmul.bf16.gmra.mxu0 %v248
  %v457 = vpop.f32.mrf.mxu0
  %v458 = vadd.f32 %v96, %v457
  %v459 = vpop.f32.mrf.mxu0
  %v460 = vadd.f32 %v96, %v459
  %461 = vmatmul.bf16.gmra.mxu0 %v249
  %v462 = vpop.f32.mrf.mxu0
  %v463 = vadd.f32 %v96, %v462
  %v464 = vpop.f32.mrf.mxu0
  %v465 = vadd.f32 %v96, %v464
  %466 = vmatmul.bf16.gmra.mxu0 %v250
  %v467 = vpop.f32.mrf.mxu0
  %v468 = vadd.f32 %v96, %v467
  %v469 = vpop.f32.mrf.mxu0
  %v470 = vadd.f32 %v96, %v469
  %471 = vmatmul.bf16.gmra.mxu0 %v251
  %v472 = vpop.f32.mrf.mxu0
  %v473 = vadd.f32 %v96, %v472
  %v474 = vpop.f32.mrf.mxu0
  %v475 = vadd.f32 %v96, %v474
  %476 = vmatmul.bf16.gmra.mxu0 %v252
  %v477 = vpop.f32.mrf.mxu0
  %v478 = vadd.f32 %v96, %v477
  %v479 = vpop.f32.mrf.mxu0
  %v480 = vadd.f32 %v96, %v479
  %481 = vmatmul.bf16.gmra.mxu0 %v253
  %v482 = vpop.f32.mrf.mxu0
  %v483 = vadd.f32 %v96, %v482
  %v484 = vpop.f32.mrf.mxu0
  %v485 = vadd.f32 %v96, %v484
  %486 = vmatmul.bf16.gmra.mxu0 %v254
  %v487 = vpop.f32.mrf.mxu0
  %v488 = vadd.f32 %v96, %v487
  %v489 = vpop.f32.mrf.mxu0
  %v490 = vadd.f32 %v96, %v489
  %491 = vmatmul.bf16.gmra.mxu0 %v255
  %v492 = vpop.f32.mrf.mxu0
  %v493 = vadd.f32 %v96, %v492
  %v494 = vpop.f32.mrf.mxu0
  %v495 = vadd.f32 %v96, %v494
  %496 = vmatmul.bf16.gmra.mxu0 %v256
  %v497 = vpop.f32.mrf.mxu0
  %v498 = vadd.f32 %v96, %v497
  %v499 = vpop.f32.mrf.mxu0
  %v500 = vadd.f32 %v96, %v499
  %501 = vmatmul.bf16.gmra.mxu0 %v257
  %v502 = vpop.f32.mrf.mxu0
  %v503 = vadd.f32 %v96, %v502
  %v504 = vpop.f32.mrf.mxu0
  %v505 = vadd.f32 %v96, %v504
  %506 = vdwg.mxu0
  %v507 = vmax.f32 %v348, 0.0
  %v508 = vmax.f32 %v350, 0.0
  %v509 = vmax.f32 %v353, 0.0
  %v510 = vmax.f32 %v355, 0.0
  %v511 = vmax.f32 %v358, 0.0
  %v512 = vmax.f32 %v360, 0.0
  %v513 = vmax.f32 %v363, 0.0
  %v514 = vmax.f32 %v365, 0.0
  %v515 = vmax.f32 %v368, 0.0
  %v516 = vmax.f32 %v370, 0.0
  %v517 = vmax.f32 %v373, 0.0
  %v518 = vmax.f32 %v375, 0.0
  %v519 = vmax.f32 %v378, 0.0
  %v520 = vmax.f32 %v380, 0.0
  %v521 = vmax.f32 %v383, 0.0
  %v522 = vmax.f32 %v385, 0.0
  %v523 = vmax.f32 %v388, 0.0
  %v524 = vmax.f32 %v390, 0.0
  %v525 = vmax.f32 %v393, 0.0
  %v526 = vmax.f32 %v395, 0.0
  %v527 = vmax.f32 %v398, 0.0
  %v528 = vmax.f32 %v400, 0.0
  %v529 = vmax.f32 %v403, 0.0
  %v530 = vmax.f32 %v405, 0.0
  %v531 = vmax.f32 %v408, 0.0
  %v532 = vmax.f32 %v410, 0.0
  %v533 = vmax.f32 %v413, 0.0
  %v534 = vmax.f32 %v415, 0.0
  %v535 = vmax.f32 %v418, 0.0
  %v536 = vmax.f32 %v420, 0.0
  %v537 = vmax.f32 %v423, 0.0
  %v538 = vmax.f32 %v425, 0.0
  %v539 = vmax.f32 %v428, 0.0
  %v540 = vmax.f32 %v430, 0.0
  %v541 = vmax.f32 %v433, 0.0
  %v542 = vmax.f32 %v435, 0.0
  %v543 = vmax.f32 %v438, 0.0
  %v544 = vmax.f32 %v440, 0.0
  %v545 = vmax.f32 %v443, 0.0
  %v546 = vmax.f32 %v445, 0.0
  %v547 = vmax.f32 %v448, 0.0
  %v548 = vmax.f32 %v450, 0.0
  %v549 = vmax.f32 %v453, 0.0
  %v550 = vmax.f32 %v455, 0.0
  %v551 = vmax.f32 %v458, 0.0
  %v552 = vmax.f32 %v460, 0.0
  %v553 = vmax.f32 %v463, 0.0
  %v554 = vmax.f32 %v465, 0.0
  %v555 = vmax.f32 %v468, 0.0
  %v556 = vmax.f32 %v470, 0.0
  %v557 = vmax.f32 %v473, 0.0
  %v558 = vmax.f32 %v475, 0.0
  %v559 = vmax.f32 %v478, 0.0
  %v560 = vmax.f32 %v480, 0.0
  %v561 = vmax.f32 %v483, 0.0
  %v562 = vmax.f32 %v485, 0.0
  %v563 = vmax.f32 %v488, 0.0
  %v564 = vmax.f32 %v490, 0.0
  %v565 = vmax.f32 %v493, 0.0
  %v566 = vmax.f32 %v495, 0.0
  %v567 = vmax.f32 %v498, 0.0
  %v568 = vmax.f32 %v500, 0.0
  %v569 = vmax.f32 %v503, 0.0
  %v570 = vmax.f32 %v505, 0.0
  %v571 = vpack.c.bf16 %v507, %v507
  %v572 = vpack.c.bf16 %v508, %v508
  %v573 = vpack.c.bf16 %v509, %v509
  %v574 = vpack.c.bf16 %v510, %v510
  %v575 = vpack.c.bf16 %v511, %v511
  %v576 = vpack.c.bf16 %v512, %v512
  %v577 = vpack.c.bf16 %v513, %v513
  %v578 = vpack.c.bf16 %v514, %v514
  %v579 = vpack.c.bf16 %v515, %v515
  %v580 = vpack.c.bf16 %v516, %v516
  %v581 = vpack.c.bf16 %v517, %v517
  %v582 = vpack.c.bf16 %v518, %v518
  %v583 = vpack.c.bf16 %v519, %v519
  %v584 = vpack.c.bf16 %v520, %v520
  %v585 = vpack.c.bf16 %v521, %v521
  %v586 = vpack.c.bf16 %v522, %v522
  %v587 = vpack.c.bf16 %v523, %v523
  %v588 = vpack.c.bf16 %v524, %v524
  %v589 = vpack.c.bf16 %v525, %v525
  %v590 = vpack.c.bf16 %v526, %v526
  %v591 = vpack.c.bf16 %v527, %v527
  %v592 = vpack.c.bf16 %v528, %v528
  %v593 = vpack.c.bf16 %v529, %v529
  %v594 = vpack.c.bf16 %v530, %v530
  %v595 = vpack.c.bf16 %v531, %v531
  %v596 = vpack.c.bf16 %v532, %v532
  %v597 = vpack.c.bf16 %v533, %v533
  %v598 = vpack.c.bf16 %v534, %v534
  %v599 = vpack.c.bf16 %v535, %v535
  %v600 = vpack.c.bf16 %v536, %v536
  %v601 = vpack.c.bf16 %v537, %v537
  %v602 = vpack.c.bf16 %v538, %v538
  %v603 = vpack.c.bf16 %v539, %v539
  %v604 = vpack.c.bf16 %v540, %v540
  %v605 = vpack.c.bf16 %v541, %v541
  %v606 = vpack.c.bf16 %v542, %v542
  %v607 = vpack.c.bf16 %v543, %v543
  %v608 = vpack.c.bf16 %v544, %v544
  %v609 = vpack.c.bf16 %v545, %v545
  %v610 = vpack.c.bf16 %v546, %v546
  %v611 = vpack.c.bf16 %v547, %v547
  %v612 = vpack.c.bf16 %v548, %v548
  %v613 = vpack.c.bf16 %v549, %v549
  %v614 = vpack.c.bf16 %v550, %v550
  %v615 = vpack.c.bf16 %v551, %v551
  %v616 = vpack.c.bf16 %v552, %v552
  %v617 = vpack.c.bf16 %v553, %v553
  %v618 = vpack.c.bf16 %v554, %v554
  %v619 = vpack.c.bf16 %v555, %v555
  %v620 = vpack.c.bf16 %v556, %v556
  %v621 = vpack.c.bf16 %v557, %v557
  %v622 = vpack.c.bf16 %v558, %v558
  %v623 = vpack.c.bf16 %v559, %v559
  %v624 = vpack.c.bf16 %v560, %v560
  %v625 = vpack.c.bf16 %v561, %v561
  %v626 = vpack.c.bf16 %v562, %v562
  %v627 = vpack.c.bf16 %v563, %v563
  %v628 = vpack.c.bf16 %v564, %v564
  %v629 = vpack.c.bf16 %v565, %v565
  %v630 = vpack.c.bf16 %v566, %v566
  %v631 = vpack.c.bf16 %v567, %v567
  %v632 = vpack.c.bf16 %v568, %v568
  %v633 = vpack.c.bf16 %v569, %v569
  %v634 = vpack.c.bf16 %v570, %v570
  %vm635 = vcmask 257024
  %636 = vst.msk [vmem:[%s3] sm:$0xf] %vm635, %v571
  %637 = vst.msk [vmem:[%s3 + $0x4] sm:$0xf] %vm635, %v572
  %638 = vst.msk [vmem:[%s3 + $0x8] sm:$0xf] %vm635, %v573
  %639 = vst.msk [vmem:[%s3 + $0xc] sm:$0xf] %vm635, %v574
  %640 = vst.msk [vmem:[%s3 + $0x10] sm:$0xf] %vm635, %v575
  %641 = vst.msk [vmem:[%s3 + $0x14] sm:$0xf] %vm635, %v576
  %642 = vst.msk [vmem:[%s3 + $0x18] sm:$0xf] %vm635, %v577
  %643 = vst.msk [vmem:[%s3 + $0x1c] sm:$0xf] %vm635, %v578
  %644 = vst.msk [vmem:[%s3 + $0x20] sm:$0xf] %vm635, %v579
  %645 = vst.msk [vmem:[%s3 + $0x24] sm:$0xf] %vm635, %v580
  %646 = vst.msk [vmem:[%s3 + $0x28] sm:$0xf] %vm635, %v581
  %647 = vst.msk [vmem:[%s3 + $0x2c] sm:$0xf] %vm635, %v582
  %648 = vst.msk [vmem:[%s3 + $0x30] sm:$0xf] %vm635, %v583
  %649 = vst.msk [vmem:[%s3 + $0x34] sm:$0xf] %vm635, %v584
  %650 = vst.msk [vmem:[%s3 + $0x38] sm:$0xf] %vm635, %v585
  %651 = vst.msk [vmem:[%s3 + $0x3c] sm:$0xf] %vm635, %v586
  %652 = vst.msk [vmem:[%s3 + $0x40] sm:$0xf] %vm635, %v587
  %653 = vst.msk [vmem:[%s3 + $0x44] sm:$0xf] %vm635, %v588
  %654 = vst.msk [vmem:[%s3 + $0x48] sm:$0xf] %vm635, %v589
  %655 = vst.msk [vmem:[%s3 + $0x4c] sm:$0xf] %vm635, %v590
  %656 = vst.msk [vmem:[%s3 + $0x50] sm:$0xf] %vm635, %v591
  %657 = vst.msk [vmem:[%s3 + $0x54] sm:$0xf] %vm635, %v592
  %658 = vst.msk [vmem:[%s3 + $0x58] sm:$0xf] %vm635, %v593
  %659 = vst.msk [vmem:[%s3 + $0x5c] sm:$0xf] %vm635, %v594
  %660 = vst.msk [vmem:[%s3 + $0x60] sm:$0xf] %vm635, %v595
  %661 = vst.msk [vmem:[%s3 + $0x64] sm:$0xf] %vm635, %v596
  %662 = vst.msk [vmem:[%s3 + $0x68] sm:$0xf] %vm635, %v597
  %663 = vst.msk [vmem:[%s3 + $0x6c] sm:$0xf] %vm635, %v598
  %664 = vst.msk [vmem:[%s3 + $0x70] sm:$0xf] %vm635, %v599
  %665 = vst.msk [vmem:[%s3 + $0x74] sm:$0xf] %vm635, %v600
  %666 = vst.msk [vmem:[%s3 + $0x78] sm:$0xf] %vm635, %v601
  %667 = vst.msk [vmem:[%s3 + $0x7c] sm:$0xf] %vm635, %v602
  %668 = vst.msk [vmem:[%s3 + $0x80] sm:$0xf] %vm635, %v603
  %669 = vst.msk [vmem:[%s3 + $0x84] sm:$0xf] %vm635, %v604
  %670 = vst.msk [vmem:[%s3 + $0x88] sm:$0xf] %vm635, %v605
  %671 = vst.msk [vmem:[%s3 + $0x8c] sm:$0xf] %vm635, %v606
  %672 = vst.msk [vmem:[%s3 + $0x90] sm:$0xf] %vm635, %v607
  %673 = vst.msk [vmem:[%s3 + $0x94] sm:$0xf] %vm635, %v608
  %674 = vst.msk [vmem:[%s3 + $0x98] sm:$0xf] %vm635, %v609
  %675 = vst.msk [vmem:[%s3 + $0x9c] sm:$0xf] %vm635, %v610
  %676 = vst.msk [vmem:[%s3 + $0xa0] sm:$0xf] %vm635, %v611
  %677 = vst.msk [vmem:[%s3 + $0xa4] sm:$0xf] %vm635, %v612
  %678 = vst.msk [vmem:[%s3 + $0xa8] sm:$0xf] %vm635, %v613
  %679 = vst.msk [vmem:[%s3 + $0xac] sm:$0xf] %vm635, %v614
  %680 = vst.msk [vmem:[%s3 + $0xb0] sm:$0xf] %vm635, %v615
  %681 = vst.msk [vmem:[%s3 + $0xb4] sm:$0xf] %vm635, %v616
  %682 = vst.msk [vmem:[%s3 + $0xb8] sm:$0xf] %vm635, %v617
  %683 = vst.msk [vmem:[%s3 + $0xbc] sm:$0xf] %vm635, %v618
  %684 = vst.msk [vmem:[%s3 + $0xc0] sm:$0xf] %vm635, %v619
  %685 = vst.msk [vmem:[%s3 + $0xc4] sm:$0xf] %vm635, %v620
  %686 = vst.msk [vmem:[%s3 + $0xc8] sm:$0xf] %vm635, %v621
  %687 = vst.msk [vmem:[%s3 + $0xcc] sm:$0xf] %vm635, %v622
  %688 = vst.msk [vmem:[%s3 + $0xd0] sm:$0xf] %vm635, %v623
  %689 = vst.msk [vmem:[%s3 + $0xd4] sm:$0xf] %vm635, %v624
  %690 = vst.msk [vmem:[%s3 + $0xd8] sm:$0xf] %vm635, %v625
  %691 = vst.msk [vmem:[%s3 + $0xdc] sm:$0xf] %vm635, %v626
  %692 = vst.msk [vmem:[%s3 + $0xe0] sm:$0xf] %vm635, %v627
  %693 = vst.msk [vmem:[%s3 + $0xe4] sm:$0xf] %vm635, %v628
  %694 = vst.msk [vmem:[%s3 + $0xe8] sm:$0xf] %vm635, %v629
  %695 = vst.msk [vmem:[%s3 + $0xec] sm:$0xf] %vm635, %v630
  %696 = vst.msk [vmem:[%s3 + $0xf0] sm:$0xf] %vm635, %v631
  %697 = vst.msk [vmem:[%s3 + $0xf4] sm:$0xf] %vm635, %v632
  %698 = vst.msk [vmem:[%s3 + $0xf8] sm:$0xf] %vm635, %v633
  %699 = vst.msk [vmem:[%s3 + $0xfc] sm:$0xf] %vm635, %v634
  // Predicated region
  $region14: #{rl_explore_policy_forward.3} parent=0 // pred_check
    _
  $region15: #{rl_explore_policy_forward.3} parent=0 // pred_check_branch
    %701 = sbr.rel (0) target = $region17
  $region16: #{rl_explore_policy_forward.3} parent=0 // pred_region
    _
  $region17: #{rl_explore_policy_forward.3} parent=0 // pred_fallthru
    _
  // Predicated region
  $region18: #{rl_explore_policy_forward.3} parent=0 // pred_check
    _
  $region19: #{rl_explore_policy_forward.3} parent=0 // pred_check_branch
    %703 = sbr.rel (0) target = $region21
  $region20: #{rl_explore_policy_forward.3} parent=0 // pred_region
    _
  $region21: #{rl_explore_policy_forward.3} parent=0 // pred_fallthru
    _

// kernel: rl_explore_policy_forward.4
$region0: #{rl_explore_policy_forward.4}
  #allocation0 [shape = 'u32[]', space=smem, size = 0x4, offset = 0x4, fixed_abs, tag = 'smem constant byte address 0x4 - core index']
  #allocation1 [shape = 'u32[72,128]{1,0:T(1,128)}', space=vmem, size = 0x9000, scoped, tag = 'internal scratch']
  %s0 = inlined_call_operand.vmem [shape: bf16[128,288], index: 0, kind: input, shape index: {}]
  %s1 = inlined_call_operand.vmem [shape: bf16[288,64], index: 1, kind: input, shape index: {}]
  %s2 = inlined_call_operand.vmem [shape: f32[1,64], index: 2, kind: input, shape index: {}]
  %s3 = inlined_call_operand.vmem [shape: bf16[128,64], index: 3, kind: output, shape index: {}]
  %s4 = sld [smem:[#allocation0]]
  $region22: #{rl_explore_policy_forward.4} parent=0
    _
  %s6 = ssub.s32 1, %s4
  %s7 = scalar_select 0, %s6, %s4
  // Predicated region
  $region2: #{rl_explore_policy_forward.4} parent=0 // pred_check
    _
  $region3: #{rl_explore_policy_forward.4} parent=0 // pred_check_branch
    %9 = sbr.rel (0) target = $region5
  $region4: #{rl_explore_policy_forward.4} parent=0 // pred_region
    _
  $region5: #{rl_explore_policy_forward.4} parent=0 // pred_fallthru
    _
  // Predicated region
  $region6: #{rl_explore_policy_forward.4} parent=0 // pred_check
    _
  $region7: #{rl_explore_policy_forward.4} parent=0 // pred_check_branch
    %11 = sbr.rel (0) target = $region9
  $region8: #{rl_explore_policy_forward.4} parent=0 // pred_region
    _
  $region9: #{rl_explore_policy_forward.4} parent=0 // pred_fallthru
    _
  // Predicated region
  $region10: #{rl_explore_policy_forward.4} parent=0 // pred_check
    _
  $region11: #{rl_explore_policy_forward.4} parent=0 // pred_check_branch
    %13 = sbr.rel (0) target = $region13
  $region12: #{rl_explore_policy_forward.4} parent=0 // pred_region
    _
  $region13: #{rl_explore_policy_forward.4} parent=0 // pred_fallthru
    _
  %v15 = vld [vmem:[%s0] sm:$0xff]
  %v16 = vld [vmem:[%s0 + $0x8] sm:$0xf]
  %v17 = vld [vmem:[%s0 + $0xc] sm:$0xff]
  %v18 = vld [vmem:[%s0 + $0x14] sm:$0xf]
  %v19 = vld [vmem:[%s0 + $0x18] sm:$0xff]
  %v20 = vld [vmem:[%s0 + $0x20] sm:$0xf]
  %v21 = vld [vmem:[%s0 + $0x24] sm:$0xff]
  %v22 = vld [vmem:[%s0 + $0x2c] sm:$0xf]
  %v23 = vld [vmem:[%s0 + $0x30] sm:$0xff]
  %v24 = vld [vmem:[%s0 + $0x38] sm:$0xf]
  %v25 = vld [vmem:[%s0 + $0x3c] sm:$0xff]
  %v26 = vld [vmem:[%s0 + $0x44] sm:$0xf]
  %v27 = vld [vmem:[%s0 + $0x48] sm:$0xff]
  %v28 = vld [vmem:[%s0 + $0x50] sm:$0xf]
  %v29 = vld [vmem:[%s0 + $0x54] sm:$0xff]
  %v30 = vld [vmem:[%s0 + $0x5c] sm:$0xf]
  %v31 = vld [vmem:[%s0 + $0x60] sm:$0xff]
  %v32 = vld [vmem:[%s0 + $0x68] sm:$0xf]
  %v33 = vld [vmem:[%s0 + $0x6c] sm:$0xff]
  %v34 = vld [vmem:[%s0 + $0x74] sm:$0xf]
  %v35 = vld [vmem:[%s0 + $0x78] sm:$0xff]
  %v36 = vld [vmem:[%s0 + $0x80] sm:$0xf]
  %v37 = vld [vmem:[%s0 + $0x84] sm:$0xff]
  %v38 = vld [vmem:[%s0 + $0x8c] sm:$0xf]
  %v39 = vld [vmem:[%s0 + $0x90] sm:$0xff]
  %v40 = vld [vmem:[%s0 + $0x98] sm:$0xf]
  %v41 = vld [vmem:[%s0 + $0x9c] sm:$0xff]
  %v42 = vld [vmem:[%s0 + $0xa4] sm:$0xf]
  %v43 = vld [vmem:[%s0 + $0xa8] sm:$0xff]
  %v44 = vld [vmem:[%s0 + $0xb0] sm:$0xf]
  %v45 = vld [vmem:[%s0 + $0xb4] sm:$0xff]
  %v46 = vld [vmem:[%s0 + $0xbc] sm:$0xf]
  %v47 = vld [vmem:[%s1] sm:$0xf]
  %v48 = vld [vmem:[%s1 + $0x4] sm:$0xf]
  %v49 = vld [vmem:[%s1 + $0x8] sm:$0xf]
  %v50 = vld [vmem:[%s1 + $0xc] sm:$0xf]
  %v51 = vld [vmem:[%s1 + $0x10] sm:$0xf]
  %v52 = vld [vmem:[%s1 + $0x14] sm:$0xf]
  %v53 = vld [vmem:[%s1 + $0x18] sm:$0xf]
  %v54 = vld [vmem:[%s1 + $0x1c] sm:$0xf]
  %v55 = vld [vmem:[%s1 + $0x20] sm:$0xf]
  %v56 = vld [vmem:[%s1 + $0x24] sm:$0xf]
  %v57 = vld [vmem:[%s1 + $0x28] sm:$0xf]
  %v58 = vld [vmem:[%s1 + $0x2c] sm:$0xf]
  %v59 = vld [vmem:[%s1 + $0x30] sm:$0xf]
  %v60 = vld [vmem:[%s1 + $0x34] sm:$0xf]
  %v61 = vld [vmem:[%s1 + $0x38] sm:$0xf]
  %v62 = vld [vmem:[%s1 + $0x3c] sm:$0xf]
  %v63 = vld [vmem:[%s1 + $0x40] sm:$0xf]
  %v64 = vld [vmem:[%s1 + $0x44] sm:$0xf]
  %v65 = vld [vmem:[%s1 + $0x48] sm:$0xf]
  %v66 = vld [vmem:[%s1 + $0x4c] sm:$0xf]
  %v67 = vld [vmem:[%s1 + $0x50] sm:$0xf]
  %v68 = vld [vmem:[%s1 + $0x54] sm:$0xf]
  %v69 = vld [vmem:[%s1 + $0x58] sm:$0xf]
  %v70 = vld [vmem:[%s1 + $0x5c] sm:$0xf]
  %v71 = vld [vmem:[%s1 + $0x60] sm:$0xf]
  %v72 = vld [vmem:[%s1 + $0x64] sm:$0xf]
  %v73 = vld [vmem:[%s1 + $0x68] sm:$0xf]
  %v74 = vld [vmem:[%s1 + $0x6c] sm:$0xf]
  %v75 = vld [vmem:[%s1 + $0x70] sm:$0xf]
  %v76 = vld [vmem:[%s1 + $0x74] sm:$0xf]
  %v77 = vld [vmem:[%s1 + $0x78] sm:$0xf]
  %v78 = vld [vmem:[%s1 + $0x7c] sm:$0xf]
  %v79 = vld [vmem:[%s1 + $0x80] sm:$0xf]
  %v80 = vld [vmem:[%s1 + $0x84] sm:$0xf]
  %v81 = vld [vmem:[%s1 + $0x88] sm:$0xf]
  %v82 = vld [vmem:[%s1 + $0x8c] sm:$0xf]
  %v83 = vld [vmem:[%s2] sm:$0x1]
  %v85 = vperm.slane %v83, 0
  %v119 = vunpack.c.l.b16 %v15
  %v120 = vunpack.c.h.b16 %v15
  %v121 = vunpack.c.l.b16 %v16
  %v122 = vunpack.c.l.b16 %v17
  %v123 = vunpack.c.h.b16 %v17
  %v124 = vunpack.c.l.b16 %v18
  %v125 = vunpack.c.l.b16 %v19
  %v126 = vunpack.c.h.b16 %v19
  %v127 = vunpack.c.l.b16 %v20
  %v128 = vunpack.c.l.b16 %v21
  %v129 = vunpack.c.h.b16 %v21
  %v130 = vunpack.c.l.b16 %v22
  %v131 = vunpack.c.l.b16 %v23
  %v132 = vunpack.c.h.b16 %v23
  %v133 = vunpack.c.l.b16 %v24
  %v134 = vunpack.c.l.b16 %v25
  %v135 = vunpack.c.h.b16 %v25
  %v136 = vunpack.c.l.b16 %v26
  %v137 = vunpack.c.l.b16 %v27
  %v138 = vunpack.c.h.b16 %v27
  %v139 = vunpack.c.l.b16 %v28
  %v140 = vunpack.c.l.b16 %v29
  %v141 = vunpack.c.h.b16 %v29
  %v142 = vunpack.c.l.b16 %v30
  %v143 = vunpack.c.l.b16 %v31
  %v144 = vunpack.c.h.b16 %v31
  %v145 = vunpack.c.l.b16 %v32
  %v146 = vunpack.c.l.b16 %v33
  %v147 = vunpack.c.h.b16 %v33
  %v148 = vunpack.c.l.b16 %v34
  %v149 = vunpack.c.l.b16 %v35
  %v150 = vunpack.c.h.b16 %v35
  %v151 = vunpack.c.l.b16 %v36
  %v152 = vunpack.c.l.b16 %v37
  %v153 = vunpack.c.h.b16 %v37
  %v154 = vunpack.c.l.b16 %v38
  %v155 = vunpack.c.l.b16 %v39
  %v156 = vunpack.c.h.b16 %v39
  %v157 = vunpack.c.l.b16 %v40
  %v158 = vunpack.c.l.b16 %v41
  %v159 = vunpack.c.h.b16 %v41
  %v160 = vunpack.c.l.b16 %v42
  %v161 = vunpack.c.l.b16 %v43
  %v162 = vunpack.c.h.b16 %v43
  %v163 = vunpack.c.l.b16 %v44
  %v164 = vunpack.c.l.b16 %v45
  %v165 = vunpack.c.h.b16 %v45
  %v166 = vunpack.c.l.b16 %v46
  %v167 = vpack.c.b16 %v122, %v119
  %v168 = vpack.c.b16 %v123, %v120
  %v169 = vpack.c.b16 %v124, %v121
  %v170 = vpack.c.b16 %v128, %v125
  %v171 = vpack.c.b16 %v129, %v126
  %v172 = vpack.c.b16 %v130, %v127
  %v173 = vpack.c.b16 %v134, %v131
  %v174 = vpack.c.b16 %v135, %v132
  %v175 = vpack.c.b16 %v136, %v133
  %v176 = vpack.c.b16 %v140, %v137
  %v177 = vpack.c.b16 %v141, %v138
  %v178 = vpack.c.b16 %v142, %v139
  %v179 = vpack.c.b16 %v146, %v143
  %v180 = vpack.c.b16 %v147, %v144
  %v181 = vpack.c.b16 %v148, %v145
  %v182 = vpack.c.b16 %v152, %v149
  %v183 = vpack.c.b16 %v153, %v150
  %v184 = vpack.c.b16 %v154, %v151
  %v185 = vpack.c.b16 %v158, %v155
  %v186 = vpack.c.b16 %v159, %v156
  %v187 = vpack.c.b16 %v160, %v157
  %v188 = vpack.c.b16 %v164, %v161
  %v189 = vpack.c.b16 %v165, %v162
  %v190 = vpack.c.b16 %v166, %v163
  %v243 = vunpack.c.l.b16 %v47
  %v244 = vunpack.c.l.b16 %v48
  %v245 = vunpack.c.l.b16 %v49
  %v246 = vunpack.c.l.b16 %v50
  %v247 = vunpack.c.l.b16 %v51
  %v248 = vunpack.c.l.b16 %v52
  %v249 = vunpack.c.l.b16 %v53
  %v250 = vunpack.c.l.b16 %v54
  %v251 = vunpack.c.l.b16 %v55
  %v252 = vunpack.c.l.b16 %v56
  %v253 = vunpack.c.l.b16 %v57
  %v254 = vunpack.c.l.b16 %v58
  %v255 = vunpack.c.l.b16 %v59
  %v256 = vunpack.c.l.b16 %v60
  %v257 = vunpack.c.l.b16 %v61
  %v258 = vunpack.c.l.b16 %v62
  %v259 = vunpack.c.l.b16 %v63
  %v260 = vunpack.c.l.b16 %v64
  %v261 = vunpack.c.l.b16 %v65
  %v262 = vunpack.c.l.b16 %v66
  %v263 = vunpack.c.l.b16 %v67
  %v264 = vunpack.c.l.b16 %v68
  %v265 = vunpack.c.l.b16 %v69
  %v266 = vunpack.c.l.b16 %v70
  %v267 = vunpack.c.l.b16 %v71
  %v268 = vunpack.c.l.b16 %v72
  %v269 = vunpack.c.l.b16 %v73
  %v270 = vunpack.c.l.b16 %v74
  %v271 = vunpack.c.l.b16 %v75
  %v272 = vunpack.c.l.b16 %v76
  %v273 = vunpack.c.l.b16 %v77
  %v274 = vunpack.c.l.b16 %v78
  %v275 = vunpack.c.l.b16 %v79
  %v276 = vunpack.c.l.b16 %v80
  %v277 = vunpack.c.l.b16 %v81
  %v278 = vunpack.c.l.b16 %v82
  %v279 = vpack.c.b16 %v244, %v243
  %v280 = vpack.c.b16 %v246, %v245
  %v281 = vpack.c.b16 %v248, %v247
  %v282 = vpack.c.b16 %v250, %v249
  %v283 = vpack.c.b16 %v252, %v251
  %v284 = vpack.c.b16 %v254, %v253
  %v285 = vpack.c.b16 %v256, %v255
  %v286 = vpack.c.b16 %v258, %v257
  %v287 = vpack.c.b16 %v260, %v259
  %v288 = vpack.c.b16 %v262, %v261
  %v289 = vpack.c.b16 %v264, %v263
  %v290 = vpack.c.b16 %v266, %v265
  %v291 = vpack.c.b16 %v268, %v267
  %v292 = vpack.c.b16 %v270, %v269
  %v293 = vpack.c.b16 %v272, %v271
  %v294 = vpack.c.b16 %v274, %v273
  %v295 = vpack.c.b16 %v276, %v275
  %v296 = vpack.c.b16 %v278, %v277
  %vm315 = vcmask 261120
  %v317 = vsel %vm315, %v169, 0
  %v320 = vsel %vm315, %v172, 0
  %v323 = vsel %vm315, %v175, 0
  %v326 = vsel %vm315, %v178, 0
  %v329 = vsel %vm315, %v181, 0
  %v332 = vsel %vm315, %v184, 0
  %v335 = vsel %vm315, %v187, 0
  %v338 = vsel %vm315, %v190, 0
  %340 = vmatpush.bf16.msra.mxu0 %v286
  %341 = vmatpush.bf16.msra.mxu0 %v285
  %342 = vmatpush.bf16.msra.mxu0 %v284
  %343 = vmatpush.bf16.msra.mxu0 %v283
  %344 = vmatpush.bf16.msra.mxu0 %v282
  %345 = vmatpush.bf16.msra.mxu0 %v281
  %346 = vmatpush.bf16.msra.mxu0 %v280
  %347 = vmatpush.bf16.msra.mxu0 %v279
  %348 = vmatmul.bf16.gmra.mxu0 %v167
  %v349 = vpop.f32.mrf.mxu0
  %v350 = vadd.f32 %v85, %v349
  %v351 = vpop.f32.mrf.mxu0
  %v352 = vadd.f32 %v85, %v351
  %353 = vmatmul.bf16.gmra.mxu0 %v170
  %v354 = vpop.f32.mrf.mxu0
  %v355 = vadd.f32 %v85, %v354
  %v356 = vpop.f32.mrf.mxu0
  %v357 = vadd.f32 %v85, %v356
  %358 = vmatmul.bf16.gmra.mxu0 %v173
  %v359 = vpop.f32.mrf.mxu0
  %v360 = vadd.f32 %v85, %v359
  %v361 = vpop.f32.mrf.mxu0
  %v362 = vadd.f32 %v85, %v361
  %363 = vmatmul.bf16.gmra.mxu0 %v176
  %v364 = vpop.f32.mrf.mxu0
  %v365 = vadd.f32 %v85, %v364
  %v366 = vpop.f32.mrf.mxu0
  %v367 = vadd.f32 %v85, %v366
  %368 = vmatmul.bf16.gmra.mxu0 %v179
  %v369 = vpop.f32.mrf.mxu0
  %v370 = vadd.f32 %v85, %v369
  %v371 = vpop.f32.mrf.mxu0
  %v372 = vadd.f32 %v85, %v371
  %373 = vmatmul.bf16.gmra.mxu0 %v182
  %v374 = vpop.f32.mrf.mxu0
  %v375 = vadd.f32 %v85, %v374
  %v376 = vpop.f32.mrf.mxu0
  %v377 = vadd.f32 %v85, %v376
  %378 = vmatmul.bf16.gmra.mxu0 %v185
  %v379 = vpop.f32.mrf.mxu0
  %v380 = vadd.f32 %v85, %v379
  %v381 = vpop.f32.mrf.mxu0
  %v382 = vadd.f32 %v85, %v381
  %383 = vmatmul.bf16.gmra.mxu0 %v188
  %v384 = vpop.f32.mrf.mxu0
  %v385 = vadd.f32 %v85, %v384
  %v386 = vpop.f32.mrf.mxu0
  %v387 = vadd.f32 %v85, %v386
  %388 = vdwg.mxu0
  %389 = vmatpush.bf16.msra.mxu0 %v294
  %390 = vmatpush.bf16.msra.mxu0 %v293
  %391 = vmatpush.bf16.msra.mxu0 %v292
  %392 = vmatpush.bf16.msra.mxu0 %v291
  %393 = vmatpush.bf16.msra.mxu0 %v290
  %394 = vmatpush.bf16.msra.mxu0 %v289
  %395 = vmatpush.bf16.msra.mxu0 %v288
  %396 = vmatpush.bf16.msra.mxu0 %v287
  %397 = vmatmul.bf16.gmra.mxu0 %v168
  %v398 = vpop.f32.mrf.mxu0
  %v399 = vadd.f32 %v350, %v398
  %v400 = vpop.f32.mrf.mxu0
  %v401 = vadd.f32 %v352, %v400
  %402 = vmatmul.bf16.gmra.mxu0 %v171
  %v403 = vpop.f32.mrf.mxu0
  %v404 = vadd.f32 %v355, %v403
  %v405 = vpop.f32.mrf.mxu0
  %v406 = vadd.f32 %v357, %v405
  %407 = vmatmul.bf16.gmra.mxu0 %v174
  %v408 = vpop.f32.mrf.mxu0
  %v409 = vadd.f32 %v360, %v408
  %v410 = vpop.f32.mrf.mxu0
  %v411 = vadd.f32 %v362, %v410
  %412 = vmatmul.bf16.gmra.mxu0 %v177
  %v413 = vpop.f32.mrf.mxu0
  %v414 = vadd.f32 %v365, %v413
  %v415 = vpop.f32.mrf.mxu0
  %v416 = vadd.f32 %v367, %v415
  %417 = vmatmul.bf16.gmra.mxu0 %v180
  %v418 = vpop.f32.mrf.mxu0
  %v419 = vadd.f32 %v370, %v418
  %v420 = vpop.f32.mrf.mxu0
  %v421 = vadd.f32 %v372, %v420
  %422 = vmatmul.bf16.gmra.mxu0 %v183
  %v423 = vpop.f32.mrf.mxu0
  %v424 = vadd.f32 %v375, %v423
  %v425 = vpop.f32.mrf.mxu0
  %v426 = vadd.f32 %v377, %v425
  %427 = vmatmul.bf16.gmra.mxu0 %v186
  %v428 = vpop.f32.mrf.mxu0
  %v429 = vadd.f32 %v380, %v428
  %v430 = vpop.f32.mrf.mxu0
  %v431 = vadd.f32 %v382, %v430
  %432 = vmatmul.bf16.gmra.mxu0 %v189
  %v433 = vpop.f32.mrf.mxu0
  %v434 = vadd.f32 %v385, %v433
  %v435 = vpop.f32.mrf.mxu0
  %v436 = vadd.f32 %v387, %v435
  %437 = vdwg.mxu0
  %438 = vmatpush.bf16.msra.mxu0 0
  %439 = vmatpush.bf16.msra.mxu0 0
  %440 = vmatpush.bf16.msra.mxu0 0
  %441 = vmatpush.bf16.msra.mxu0 0
  %442 = vmatpush.bf16.msra.mxu0 0
  %443 = vmatpush.bf16.msra.mxu0 0
  %444 = vmatpush.bf16.msra.mxu0 %v296
  %445 = vmatpush.bf16.msra.mxu0 %v295
  %446 = vmatmul.bf16.gmra.mxu0 %v317
  %v447 = vpop.f32.mrf.mxu0
  %v448 = vadd.f32 %v399, %v447
  %v449 = vpop.f32.mrf.mxu0
  %v450 = vadd.f32 %v401, %v449
  %451 = vmatmul.bf16.gmra.mxu0 %v320
  %v452 = vpop.f32.mrf.mxu0
  %v453 = vadd.f32 %v404, %v452
  %v454 = vpop.f32.mrf.mxu0
  %v455 = vadd.f32 %v406, %v454
  %456 = vmatmul.bf16.gmra.mxu0 %v323
  %v457 = vpop.f32.mrf.mxu0
  %v458 = vadd.f32 %v409, %v457
  %v459 = vpop.f32.mrf.mxu0
  %v460 = vadd.f32 %v411, %v459
  %461 = vmatmul.bf16.gmra.mxu0 %v326
  %v462 = vpop.f32.mrf.mxu0
  %v463 = vadd.f32 %v414, %v462
  %v464 = vpop.f32.mrf.mxu0
  %v465 = vadd.f32 %v416, %v464
  %466 = vmatmul.bf16.gmra.mxu0 %v329
  %v467 = vpop.f32.mrf.mxu0
  %v468 = vadd.f32 %v419, %v467
  %v469 = vpop.f32.mrf.mxu0
  %v470 = vadd.f32 %v421, %v469
  %471 = vmatmul.bf16.gmra.mxu0 %v332
  %v472 = vpop.f32.mrf.mxu0
  %v473 = vadd.f32 %v424, %v472
  %v474 = vpop.f32.mrf.mxu0
  %v475 = vadd.f32 %v426, %v474
  %476 = vmatmul.bf16.gmra.mxu0 %v335
  %v477 = vpop.f32.mrf.mxu0
  %v478 = vadd.f32 %v429, %v477
  %v479 = vpop.f32.mrf.mxu0
  %v480 = vadd.f32 %v431, %v479
  %481 = vmatmul.bf16.gmra.mxu0 %v338
  %v482 = vpop.f32.mrf.mxu0
  %v483 = vadd.f32 %v434, %v482
  %v484 = vpop.f32.mrf.mxu0
  %v485 = vadd.f32 %v436, %v484
  %486 = vdwg.mxu0
  %v487 = vmax.f32 %v448, 0.0
  %v488 = vmax.f32 %v450, 0.0
  %v489 = vmax.f32 %v453, 0.0
  %v490 = vmax.f32 %v455, 0.0
  %v491 = vmax.f32 %v458, 0.0
  %v492 = vmax.f32 %v460, 0.0
  %v493 = vmax.f32 %v463, 0.0
  %v494 = vmax.f32 %v465, 0.0
  %v495 = vmax.f32 %v468, 0.0
  %v496 = vmax.f32 %v470, 0.0
  %v497 = vmax.f32 %v473, 0.0
  %v498 = vmax.f32 %v475, 0.0
  %v499 = vmax.f32 %v478, 0.0
  %v500 = vmax.f32 %v480, 0.0
  %v501 = vmax.f32 %v483, 0.0
  %v502 = vmax.f32 %v485, 0.0
  %v503 = vpack.c.bf16 %v487, %v487
  %v504 = vpack.c.bf16 %v488, %v488
  %v505 = vpack.c.bf16 %v489, %v489
  %v506 = vpack.c.bf16 %v490, %v490
  %v507 = vpack.c.bf16 %v491, %v491
  %v508 = vpack.c.bf16 %v492, %v492
  %v509 = vpack.c.bf16 %v493, %v493
  %v510 = vpack.c.bf16 %v494, %v494
  %v511 = vpack.c.bf16 %v495, %v495
  %v512 = vpack.c.bf16 %v496, %v496
  %v513 = vpack.c.bf16 %v497, %v497
  %v514 = vpack.c.bf16 %v498, %v498
  %v515 = vpack.c.bf16 %v499, %v499
  %v516 = vpack.c.bf16 %v500, %v500
  %v517 = vpack.c.bf16 %v501, %v501
  %v518 = vpack.c.bf16 %v502, %v502
  %vm519 = vcmask 519168
  %520 = vst.msk [vmem:[%s3] sm:$0xf] %vm519, %v503
  %521 = vst.msk [vmem:[%s3 + $0x4] sm:$0xf] %vm519, %v504
  %522 = vst.msk [vmem:[%s3 + $0x8] sm:$0xf] %vm519, %v505
  %523 = vst.msk [vmem:[%s3 + $0xc] sm:$0xf] %vm519, %v506
  %524 = vst.msk [vmem:[%s3 + $0x10] sm:$0xf] %vm519, %v507
  %525 = vst.msk [vmem:[%s3 + $0x14] sm:$0xf] %vm519, %v508
  %526 = vst.msk [vmem:[%s3 + $0x18] sm:$0xf] %vm519, %v509
  %527 = vst.msk [vmem:[%s3 + $0x1c] sm:$0xf] %vm519, %v510
  %528 = vst.msk [vmem:[%s3 + $0x20] sm:$0xf] %vm519, %v511
  %529 = vst.msk [vmem:[%s3 + $0x24] sm:$0xf] %vm519, %v512
  %530 = vst.msk [vmem:[%s3 + $0x28] sm:$0xf] %vm519, %v513
  %531 = vst.msk [vmem:[%s3 + $0x2c] sm:$0xf] %vm519, %v514
  %532 = vst.msk [vmem:[%s3 + $0x30] sm:$0xf] %vm519, %v515
  %533 = vst.msk [vmem:[%s3 + $0x34] sm:$0xf] %vm519, %v516
  %534 = vst.msk [vmem:[%s3 + $0x38] sm:$0xf] %vm519, %v517
  %535 = vst.msk [vmem:[%s3 + $0x3c] sm:$0xf] %vm519, %v518
  // Predicated region
  $region14: #{rl_explore_policy_forward.4} parent=0 // pred_check
    _
  $region15: #{rl_explore_policy_forward.4} parent=0 // pred_check_branch
    %537 = sbr.rel (0) target = $region17
  $region16: #{rl_explore_policy_forward.4} parent=0 // pred_region
    _
  $region17: #{rl_explore_policy_forward.4} parent=0 // pred_fallthru
    _
  // Predicated region
  $region18: #{rl_explore_policy_forward.4} parent=0 // pred_check
    _
  $region19: #{rl_explore_policy_forward.4} parent=0 // pred_check_branch
    %539 = sbr.rel (0) target = $region21
  $region20: #{rl_explore_policy_forward.4} parent=0 // pred_region
    _
  $region21: #{rl_explore_policy_forward.4} parent=0 // pred_fallthru
    _

// kernel: rl_explore_policy_forward.5
$region0: #{rl_explore_policy_forward.5}
  #allocation0 [shape = 'u32[]', space=smem, size = 0x4, offset = 0x4, fixed_abs, tag = 'smem constant byte address 0x4 - core index']
  #allocation1 [shape = 'u32[72,128]{1,0:T(1,128)}', space=vmem, size = 0x9000, scoped, tag = 'internal scratch']
  #allocation2 [shape = 'f32[1,1]{1,0:T(1,128)S(1)}', space=vmem, size = 0x200, scoped, tag = 'scoped memory for rl_explore_policy_forward.5']
  %s0 = inlined_call_operand.vmem [shape: bf16[32,576], index: 0, kind: input, shape index: {}]
  %s1 = inlined_call_operand.vmem [shape: bf16[128,16], index: 1, kind: input, shape index: {}]
  %s2 = inlined_call_operand.vmem [shape: f32[2,512], index: 2, kind: input, shape index: {}]
  %s3 = inlined_call_operand.vmem [shape: bf16[576,128], index: 3, kind: input, shape index: {}]
  %s4 = inlined_call_operand.vmem [shape: f32[1,128], index: 4, kind: input, shape index: {}]
  %s5 = inlined_call_operand.vmem [shape: bf16[512,256], index: 5, kind: input, shape index: {}]
  %s6 = inlined_call_operand.vmem [shape: f32[1,256], index: 6, kind: input, shape index: {}]
  %s7 = inlined_call_operand.vmem [shape: bf16[256,128], index: 7, kind: input, shape index: {}]
  %s8 = inlined_call_operand.vmem [shape: f32[1,128], index: 8, kind: input, shape index: {}]
  %s9 = inlined_call_operand.vmem [shape: bf16[128,512], index: 9, kind: input, shape index: {}]
  %s10 = inlined_call_operand.vmem [shape: bf16[16,64], index: 10, kind: input, shape index: {}]
  %s11 = inlined_call_operand.vmem [shape: f32[1,64], index: 11, kind: input, shape index: {}]
  %s12 = inlined_call_operand.vmem [shape: bf16[64,128], index: 12, kind: input, shape index: {}]
  %s13 = inlined_call_operand.vmem [shape: f32[1,128], index: 13, kind: input, shape index: {}]
  %s14 = inlined_call_operand.vmem [shape: bf16[128,1024], index: 14, kind: input, shape index: {}]
  %s15 = inlined_call_operand.vmem [shape: f32[1,1024], index: 15, kind: input, shape index: {}]
  %s16 = inlined_call_operand.vmem [shape: bf16[1024,512], index: 16, kind: input, shape index: {}]
  %s17 = inlined_call_operand.vmem [shape: f32[1,512], index: 17, kind: input, shape index: {}]
  %s18 = inlined_call_operand.vmem [shape: bf16[512,256], index: 18, kind: input, shape index: {}]
  %s19 = inlined_call_operand.vmem [shape: f32[1,256], index: 19, kind: input, shape index: {}]
  %s20 = inlined_call_operand.vmem [shape: f32[1,256], index: 20, kind: input, shape index: {}]
  %s21 = inlined_call_operand.<no memory space> [shape: f32[1,1], index: 21, kind: input, shape index: {}]
  %s22 = inlined_call_operand.hbm [shape: f32[2,256], index: 22, kind: output, shape index: {0}]
  %s23 = inlined_call_operand.vmem [shape: f32[2,1], index: 23, kind: output, shape index: {1}]
  %24 = xla_tuple %s22, %s23
  %s25 = sld [smem:[#allocation0]]
  $region106: #{rl_explore_policy_forward.5} parent=0
    _
  %s27 = ssub.s32 1, %s25
  %s28 = scalar_select 0, %s27, %s25
  %v29 = vstv %s21
  %30 = vst [vmem:[#allocation2] sm:$0x1] %v29
  $region1: #{rl_explore_policy_forward.5} parent=0
    #allocation3 [shape = 'u8[2048]{0}', space=vmem, size = 0x800, scoped, tag = 'output window, operand 0, single buffered']
    #allocation4 [shape = 's32[1]{0}', space=sflag, size = 0x4, scoped, tag = 'scoped memory for rl_explore_policy_forward.5']
    %31 = vsyncpa [#allocation4], 0
    // Predicated region
    $region2: #{rl_explore_policy_forward.5} parent=1 // pred_check
      _
    $region3: #{rl_explore_policy_forward.5} parent=1 // pred_check_branch
      %33 = sbr.rel (0) target = $region5
    $region4: #{rl_explore_policy_forward.5} parent=1 // pred_region
      _
    $region5: #{rl_explore_policy_forward.5} parent=1 // pred_fallthru
      _
    // Predicated region
    $region6: #{rl_explore_policy_forward.5} parent=1 // pred_check
      _
    $region7: #{rl_explore_policy_forward.5} parent=1 // pred_check_branch
      %35 = sbr.rel (0) target = $region9
    $region8: #{rl_explore_policy_forward.5} parent=1 // pred_region
      _
    $region9: #{rl_explore_policy_forward.5} parent=1 // pred_fallthru
      _
    // Predicated region
    $region10: #{rl_explore_policy_forward.5} parent=1 // pred_check
      _
    $region11: #{rl_explore_policy_forward.5} parent=1 // pred_check_branch
      %37 = sbr.rel (0) target = $region13
    $region12: #{rl_explore_policy_forward.5} parent=1 // pred_region
      _
    $region13: #{rl_explore_policy_forward.5} parent=1 // pred_fallthru
      _
    // Predicated region
    $region14: #{rl_explore_policy_forward.5} parent=1 // pred_check
      _
    $region15: #{rl_explore_policy_forward.5} parent=1 // pred_check_branch
      %39 = sbr.rel (0) target = $region17
    $region16: #{rl_explore_policy_forward.5} parent=1 // pred_region
      _
    $region17: #{rl_explore_policy_forward.5} parent=1 // pred_fallthru
      _
    // Predicated region
    $region18: #{rl_explore_policy_forward.5} parent=1 // pred_check
      _
    $region19: #{rl_explore_policy_forward.5} parent=1 // pred_check_branch
      %41 = sbr.rel (0) target = $region21
    $region20: #{rl_explore_policy_forward.5} parent=1 // pred_region
      _
    $region21: #{rl_explore_policy_forward.5} parent=1 // pred_fallthru
      _
    // Predicated region
    $region22: #{rl_explore_policy_forward.5} parent=1 // pred_check
      _
    $region23: #{rl_explore_policy_forward.5} parent=1 // pred_check_branch
      %43 = sbr.rel (0) target = $region25
    $region24: #{rl_explore_policy_forward.5} parent=1 // pred_region
      _
    $region25: #{rl_explore_policy_forward.5} parent=1 // pred_fallthru
      _
    // Predicated region
    $region26: #{rl_explore_policy_forward.5} parent=1 // pred_check
      _
    $region27: #{rl_explore_policy_forward.5} parent=1 // pred_check_branch
      %45 = sbr.rel (0) target = $region29
    $region28: #{rl_explore_policy_forward.5} parent=1 // pred_region
      _
    $region29: #{rl_explore_policy_forward.5} parent=1 // pred_fallthru
      _
    // Predicated region
    $region30: #{rl_explore_policy_forward.5} parent=1 // pred_check
      _
    $region31: #{rl_explore_policy_forward.5} parent=1 // pred_check_branch
      %47 = sbr.rel (0) target = $region33
    $region32: #{rl_explore_policy_forward.5} parent=1 // pred_region
      _
    $region33: #{rl_explore_policy_forward.5} parent=1 // pred_fallthru
      _
    // Predicated region
    $region34: #{rl_explore_policy_forward.5} parent=1 // pred_check
      _
    $region35: #{rl_explore_policy_forward.5} parent=1 // pred_check_branch
      %49 = sbr.rel (0) target = $region37
    $region36: #{rl_explore_policy_forward.5} parent=1 // pred_region
      _
    $region37: #{rl_explore_policy_forward.5} parent=1 // pred_fallthru
      _
    // Predicated region
    $region38: #{rl_explore_policy_forward.5} parent=1 // pred_check
      _
    $region39: #{rl_explore_policy_forward.5} parent=1 // pred_check_branch
      %51 = sbr.rel (0) target = $region41
    $region40: #{rl_explore_policy_forward.5} parent=1 // pred_region
      _
    $region41: #{rl_explore_policy_forward.5} parent=1 // pred_fallthru
      _
    // Predicated region
    $region42: #{rl_explore_policy_forward.5} parent=1 // pred_check
      _
    $region43: #{rl_explore_policy_forward.5} parent=1 // pred_check_branch
      %53 = sbr.rel (0) target = $region45
    $region44: #{rl_explore_policy_forward.5} parent=1 // pred_region
      _
    $region45: #{rl_explore_policy_forward.5} parent=1 // pred_fallthru
      _
    // Predicated region
    $region46: #{rl_explore_policy_forward.5} parent=1 // pred_check
      _
    $region47: #{rl_explore_policy_forward.5} parent=1 // pred_check_branch
      %55 = sbr.rel (0) target = $region49
    $region48: #{rl_explore_policy_forward.5} parent=1 // pred_region
      _
    $region49: #{rl_explore_policy_forward.5} parent=1 // pred_fallthru
      _
    // Predicated region
    $region50: #{rl_explore_policy_forward.5} parent=1 // pred_check
      _
    $region51: #{rl_explore_policy_forward.5} parent=1 // pred_check_branch
      %57 = sbr.rel (0) target = $region53
    $region52: #{rl_explore_policy_forward.5} parent=1 // pred_region
      _
    $region53: #{rl_explore_policy_forward.5} parent=1 // pred_fallthru
      _
    // Predicated region
    $region54: #{rl_explore_policy_forward.5} parent=1 // pred_check
      _
    $region55: #{rl_explore_policy_forward.5} parent=1 // pred_check_branch
      %59 = sbr.rel (0) target = $region57
    $region56: #{rl_explore_policy_forward.5} parent=1 // pred_region
      _
    $region57: #{rl_explore_policy_forward.5} parent=1 // pred_fallthru
      _
    // Predicated region
    $region58: #{rl_explore_policy_forward.5} parent=1 // pred_check
      _
    $region59: #{rl_explore_policy_forward.5} parent=1 // pred_check_branch
      %61 = sbr.rel (0) target = $region61
    $region60: #{rl_explore_policy_forward.5} parent=1 // pred_region
      _
    $region61: #{rl_explore_policy_forward.5} parent=1 // pred_fallthru
      _
    // Predicated region
    $region62: #{rl_explore_policy_forward.5} parent=1 // pred_check
      _
    $region63: #{rl_explore_policy_forward.5} parent=1 // pred_check_branch
      %63 = sbr.rel (0) target = $region65
    $region64: #{rl_explore_policy_forward.5} parent=1 // pred_region
      _
    $region65: #{rl_explore_policy_forward.5} parent=1 // pred_fallthru
      _
    // Predicated region
    $region66: #{rl_explore_policy_forward.5} parent=1 // pred_check
      _
    $region67: #{rl_explore_policy_forward.5} parent=1 // pred_check_branch
      %65 = sbr.rel (0) target = $region69
    $region68: #{rl_explore_policy_forward.5} parent=1 // pred_region
      _
    $region69: #{rl_explore_policy_forward.5} parent=1 // pred_fallthru
      _
    // Predicated region
    $region70: #{rl_explore_policy_forward.5} parent=1 // pred_check
      _
    $region71: #{rl_explore_policy_forward.5} parent=1 // pred_check_branch
      %67 = sbr.rel (0) target = $region73
    $region72: #{rl_explore_policy_forward.5} parent=1 // pred_region
      _
    $region73: #{rl_explore_policy_forward.5} parent=1 // pred_fallthru
      _
    // Predicated region
    $region74: #{rl_explore_policy_forward.5} parent=1 // pred_check
      _
    $region75: #{rl_explore_policy_forward.5} parent=1 // pred_check_branch
      %69 = sbr.rel (0) target = $region77
    $region76: #{rl_explore_policy_forward.5} parent=1 // pred_region
      _
    $region77: #{rl_explore_policy_forward.5} parent=1 // pred_fallthru
      _
    // Predicated region
    $region78: #{rl_explore_policy_forward.5} parent=1 // pred_check
      _
    $region79: #{rl_explore_policy_forward.5} parent=1 // pred_check_branch
      %71 = sbr.rel (0) target = $region81
    $region80: #{rl_explore_policy_forward.5} parent=1 // pred_region
      _
    $region81: #{rl_explore_policy_forward.5} parent=1 // pred_fallthru
      _
    // Predicated region
    $region82: #{rl_explore_policy_forward.5} parent=1 // pred_check
      _
    $region83: #{rl_explore_policy_forward.5} parent=1 // pred_check_branch
      %73 = sbr.rel (0) target = $region85
    $region84: #{rl_explore_policy_forward.5} parent=1 // pred_region
      _
    $region85: #{rl_explore_policy_forward.5} parent=1 // pred_fallthru
      _
    // Predicated region
    $region86: #{rl_explore_policy_forward.5} parent=1 // pred_check
      _
    $region87: #{rl_explore_policy_forward.5} parent=1 // pred_check_branch
      %75 = sbr.rel (0) target = $region89
    $region88: #{rl_explore_policy_forward.5} parent=1 // pred_region
      _
    $region89: #{rl_explore_policy_forward.5} parent=1 // pred_fallthru
      _
    %v77 = vld [vmem:[%s0] sm:$0xff]
    %v78 = vld [vmem:[%s0 + $0x8] sm:$0xff]
    %v79 = vld [vmem:[%s0 + $0x10] sm:$0xf]
    %v80 = vld [vmem:[%s0 + $0x14] sm:$0xff]
    %v81 = vld [vmem:[%s0 + $0x1c] sm:$0xff]
    %v82 = vld [vmem:[%s0 + $0x24] sm:$0xf]
    %v83 = vld [vmem:[%s0 + $0x28] sm:$0xff]
    %v84 = vld [vmem:[%s0 + $0x30] sm:$0xff]
    %v85 = vld [vmem:[%s0 + $0x38] sm:$0xf]
    %v86 = vld [vmem:[%s0 + $0x3c] sm:$0xff]
    %v87 = vld [vmem:[%s0 + $0x44] sm:$0xff]
    %v88 = vld [vmem:[%s0 + $0x4c] sm:$0xf]
    %v89 = vld [vmem:[%s3] sm:$0xf]
    %v90 = vld [vmem:[%s3 + $0x4] sm:$0xf]
    %v91 = vld [vmem:[%s3 + $0x8] sm:$0xf]
    %v92 = vld [vmem:[%s3 + $0xc] sm:$0xf]
    %v93 = vld [vmem:[%s3 + $0x10] sm:$0xf]
    %v94 = vld [vmem:[%s3 + $0x14] sm:$0xf]
    %v95 = vld [vmem:[%s3 + $0x18] sm:$0xf]
    %v96 = vld [vmem:[%s3 + $0x1c] sm:$0xf]
    %v97 = vld [vmem:[%s3 + $0x20] sm:$0xf]
    %v98 = vld [vmem:[%s3 + $0x24] sm:$0xf]
    %v99 = vld [vmem:[%s3 + $0x28] sm:$0xf]
    %v100 = vld [vmem:[%s3 + $0x2c] sm:$0xf]
    %v101 = vld [vmem:[%s3 + $0x30] sm:$0xf]
    %v102 = vld [vmem:[%s3 + $0x34] sm:$0xf]
    %v103 = vld [vmem:[%s3 + $0x38] sm:$0xf]
    %v104 = vld [vmem:[%s3 + $0x3c] sm:$0xf]
    %v105 = vld [vmem:[%s3 + $0x40] sm:$0xf]
    %v106 = vld [vmem:[%s3 + $0x44] sm:$0xf]
    %v107 = vld [vmem:[%s3 + $0x48] sm:$0xf]
    %v108 = vld [vmem:[%s3 + $0x4c] sm:$0xf]
    %v109 = vld [vmem:[%s3 + $0x50] sm:$0xf]
    %v110 = vld [vmem:[%s3 + $0x54] sm:$0xf]
    %v111 = vld [vmem:[%s3 + $0x58] sm:$0xf]
    %v112 = vld [vmem:[%s3 + $0x5c] sm:$0xf]
    %v113 = vld [vmem:[%s3 + $0x60] sm:$0xf]
    %v114 = vld [vmem:[%s3 + $0x64] sm:$0xf]
    %v115 = vld [vmem:[%s3 + $0x68] sm:$0xf]
    %v116 = vld [vmem:[%s3 + $0x6c] sm:$0xf]
    %v117 = vld [vmem:[%s3 + $0x70] sm:$0xf]
    %v118 = vld [vmem:[%s3 + $0x74] sm:$0xf]
    %v119 = vld [vmem:[%s3 + $0x78] sm:$0xf]
    %v120 = vld [vmem:[%s3 + $0x7c] sm:$0xf]
    %v121 = vld [vmem:[%s3 + $0x80] sm:$0xf]
    %v122 = vld [vmem:[%s3 + $0x84] sm:$0xf]
    %v123 = vld [vmem:[%s3 + $0x88] sm:$0xf]
    %v124 = vld [vmem:[%s3 + $0x8c] sm:$0xf]
    %v125 = vld [vmem:[%s3 + $0x90] sm:$0xf]
    %v126 = vld [vmem:[%s3 + $0x94] sm:$0xf]
    %v127 = vld [vmem:[%s3 + $0x98] sm:$0xf]
    %v128 = vld [vmem:[%s3 + $0x9c] sm:$0xf]
    %v129 = vld [vmem:[%s3 + $0xa0] sm:$0xf]
    %v130 = vld [vmem:[%s3 + $0xa4] sm:$0xf]
    %v131 = vld [vmem:[%s3 + $0xa8] sm:$0xf]
    %v132 = vld [vmem:[%s3 + $0xac] sm:$0xf]
    %v133 = vld [vmem:[%s3 + $0xb0] sm:$0xf]
    %v134 = vld [vmem:[%s3 + $0xb4] sm:$0xf]
    %v135 = vld [vmem:[%s3 + $0xb8] sm:$0xf]
    %v136 = vld [vmem:[%s3 + $0xbc] sm:$0xf]
    %v137 = vld [vmem:[%s3 + $0xc0] sm:$0xf]
    %v138 = vld [vmem:[%s3 + $0xc4] sm:$0xf]
    %v139 = vld [vmem:[%s3 + $0xc8] sm:$0xf]
    %v140 = vld [vmem:[%s3 + $0xcc] sm:$0xf]
    %v141 = vld [vmem:[%s3 + $0xd0] sm:$0xf]
    %v142 = vld [vmem:[%s3 + $0xd4] sm:$0xf]
    %v143 = vld [vmem:[%s3 + $0xd8] sm:$0xf]
    %v144 = vld [vmem:[%s3 + $0xdc] sm:$0xf]
    %v145 = vld [vmem:[%s3 + $0xe0] sm:$0xf]
    %v146 = vld [vmem:[%s3 + $0xe4] sm:$0xf]
    %v147 = vld [vmem:[%s3 + $0xe8] sm:$0xf]
    %v148 = vld [vmem:[%s3 + $0xec] sm:$0xf]
    %v149 = vld [vmem:[%s3 + $0xf0] sm:$0xf]
    %v150 = vld [vmem:[%s3 + $0xf4] sm:$0xf]
    %v151 = vld [vmem:[%s3 + $0xf8] sm:$0xf]
    %v152 = vld [vmem:[%s3 + $0xfc] sm:$0xf]
    %v153 = vld [vmem:[%s3 + $0x100] sm:$0xf]
    %v154 = vld [vmem:[%s3 + $0x104] sm:$0xf]
    %v155 = vld [vmem:[%s3 + $0x108] sm:$0xf]
    %v156 = vld [vmem:[%s3 + $0x10c] sm:$0xf]
    %v157 = vld [vmem:[%s3 + $0x110] sm:$0xf]
    %v158 = vld [vmem:[%s3 + $0x114] sm:$0xf]
    %v159 = vld [vmem:[%s3 + $0x118] sm:$0xf]
    %v160 = vld [vmem:[%s3 + $0x11c] sm:$0xf]
    %v161 = vld [vmem:[%s4] sm:$0x1]
    %v163 = vperm.slane %v161, 0
    %v177 = vunpack.c.l.b16 %v77
    %v178 = vunpack.c.h.b16 %v77
    %v179 = vunpack.c.l.b16 %v78
    %v180 = vunpack.c.h.b16 %v78
    %v181 = vunpack.c.l.b16 %v79
    %v182 = vunpack.c.l.b16 %v80
    %v183 = vunpack.c.h.b16 %v80
    %v184 = vunpack.c.l.b16 %v81
    %v185 = vunpack.c.h.b16 %v81
    %v186 = vunpack.c.l.b16 %v82
    %v187 = vunpack.c.l.b16 %v83
    %v188 = vunpack.c.h.b16 %v83
    %v189 = vunpack.c.l.b16 %v84
    %v190 = vunpack.c.h.b16 %v84
    %v191 = vunpack.c.l.b16 %v85
    %v192 = vunpack.c.l.b16 %v86
    %v193 = vunpack.c.h.b16 %v86
    %v194 = vunpack.c.l.b16 %v87
    %v195 = vunpack.c.h.b16 %v87
    %v196 = vunpack.c.l.b16 %v88
    %v197 = vpack.c.b16 %v182, %v177
    %v198 = vpack.c.b16 %v183, %v178
    %v199 = vpack.c.b16 %v184, %v179
    %v200 = vpack.c.b16 %v185, %v180
    %v201 = vpack.c.b16 %v186, %v181
    %v202 = vpack.c.b16 %v192, %v187
    %v203 = vpack.c.b16 %v193, %v188
    %v204 = vpack.c.b16 %v194, %v189
    %v205 = vpack.c.b16 %v195, %v190
    %v206 = vpack.c.b16 %v196, %v191
    %v287 = vunpack.c.l.b16 %v89
    %v288 = vunpack.c.l.b16 %v90
    %v289 = vunpack.c.l.b16 %v91
    %v290 = vunpack.c.l.b16 %v92
    %v291 = vunpack.c.l.b16 %v93
    %v292 = vunpack.c.l.b16 %v94
    %v293 = vunpack.c.l.b16 %v95
    %v294 = vunpack.c.l.b16 %v96
    %v295 = vunpack.c.l.b16 %v97
    %v296 = vunpack.c.l.b16 %v98
    %v297 = vunpack.c.l.b16 %v99
    %v298 = vunpack.c.l.b16 %v100
    %v299 = vunpack.c.l.b16 %v101
    %v300 = vunpack.c.l.b16 %v102
    %v301 = vunpack.c.l.b16 %v103
    %v302 = vunpack.c.l.b16 %v104
    %v303 = vunpack.c.l.b16 %v105
    %v304 = vunpack.c.l.b16 %v106
    %v305 = vunpack.c.l.b16 %v107
    %v306 = vunpack.c.l.b16 %v108
    %v307 = vunpack.c.l.b16 %v109
    %v308 = vunpack.c.l.b16 %v110
    %v309 = vunpack.c.l.b16 %v111
    %v310 = vunpack.c.l.b16 %v112
    %v311 = vunpack.c.l.b16 %v113
    %v312 = vunpack.c.l.b16 %v114
    %v313 = vunpack.c.l.b16 %v115
    %v314 = vunpack.c.l.b16 %v116
    %v315 = vunpack.c.l.b16 %v117
    %v316 = vunpack.c.l.b16 %v118
    %v317 = vunpack.c.l.b16 %v119
    %v318 = vunpack.c.l.b16 %v120
    %v319 = vunpack.c.l.b16 %v121
    %v320 = vunpack.c.l.b16 %v122
    %v321 = vunpack.c.l.b16 %v123
    %v322 = vunpack.c.l.b16 %v124
    %v323 = vunpack.c.l.b16 %v125
    %v324 = vunpack.c.l.b16 %v126
    %v325 = vunpack.c.l.b16 %v127
    %v326 = vunpack.c.l.b16 %v128
    %v327 = vunpack.c.l.b16 %v129
    %v328 = vunpack.c.l.b16 %v130
    %v329 = vunpack.c.l.b16 %v131
    %v330 = vunpack.c.l.b16 %v132
    %v331 = vunpack.c.l.b16 %v133
    %v332 = vunpack.c.l.b16 %v134
    %v333 = vunpack.c.l.b16 %v135
    %v334 = vunpack.c.l.b16 %v136
    %v335 = vunpack.c.l.b16 %v137
    %v336 = vunpack.c.l.b16 %v138
    %v337 = vunpack.c.l.b16 %v139
    %v338 = vunpack.c.l.b16 %v140
    %v339 = vunpack.c.l.b16 %v141
    %v340 = vunpack.c.l.b16 %v142
    %v341 = vunpack.c.l.b16 %v143
    %v342 = vunpack.c.l.b16 %v144
    %v343 = vunpack.c.l.b16 %v145
    %v344 = vunpack.c.l.b16 %v146
    %v345 = vunpack.c.l.b16 %v147
    %v346 = vunpack.c.l.b16 %v148
    %v347 = vunpack.c.l.b16 %v149
    %v348 = vunpack.c.l.b16 %v150
    %v349 = vunpack.c.l.b16 %v151
    %v350 = vunpack.c.l.b16 %v152
    %v351 = vunpack.c.l.b16 %v153
    %v352 = vunpack.c.l.b16 %v154
    %v353 = vunpack.c.l.b16 %v155
    %v354 = vunpack.c.l.b16 %v156
    %v355 = vunpack.c.l.b16 %v157
    %v356 = vunpack.c.l.b16 %v158
    %v357 = vunpack.c.l.b16 %v159
    %v358 = vunpack.c.l.b16 %v160
    %v359 = vpack.c.b16 %v288, %v287
    %v360 = vpack.c.b16 %v290, %v289
    %v361 = vpack.c.b16 %v292, %v291
    %v362 = vpack.c.b16 %v294, %v293
    %v363 = vpack.c.b16 %v296, %v295
    %v364 = vpack.c.b16 %v298, %v297
    %v365 = vpack.c.b16 %v300, %v299
    %v366 = vpack.c.b16 %v302, %v301
    %v367 = vpack.c.b16 %v304, %v303
    %v368 = vpack.c.b16 %v306, %v305
    %v369 = vpack.c.b16 %v308, %v307
    %v370 = vpack.c.b16 %v310, %v309
    %v371 = vpack.c.b16 %v312, %v311
    %v372 = vpack.c.b16 %v314, %v313
    %v373 = vpack.c.b16 %v316, %v315
    %v374 = vpack.c.b16 %v318, %v317
    %v375 = vpack.c.b16 %v320, %v319
    %v376 = vpack.c.b16 %v322, %v321
    %v377 = vpack.c.b16 %v324, %v323
    %v378 = vpack.c.b16 %v326, %v325
    %v379 = vpack.c.b16 %v328, %v327
    %v380 = vpack.c.b16 %v330, %v329
    %v381 = vpack.c.b16 %v332, %v331
    %v382 = vpack.c.b16 %v334, %v333
    %v383 = vpack.c.b16 %v336, %v335
    %v384 = vpack.c.b16 %v338, %v337
    %v385 = vpack.c.b16 %v340, %v339
    %v386 = vpack.c.b16 %v342, %v341
    %v387 = vpack.c.b16 %v344, %v343
    %v388 = vpack.c.b16 %v346, %v345
    %v389 = vpack.c.b16 %v348, %v347
    %v390 = vpack.c.b16 %v350, %v349
    %v391 = vpack.c.b16 %v352, %v351
    %v392 = vpack.c.b16 %v354, %v353
    %v393 = vpack.c.b16 %v356, %v355
    %v394 = vpack.c.b16 %v358, %v357
    %vm431 = vcmask 523264
    %v433 = vsel %vm431, %v201, 0
    %v436 = vsel %vm431, %v206, 0
    %438 = vmatpush.bf16.msra.mxu0 %v366
    %439 = vmatpush.bf16.msra.mxu0 %v365
    %440 = vmatpush.bf16.msra.mxu0 %v364
    %441 = vmatpush.bf16.msra.mxu0 %v363
    %442 = vmatpush.bf16.msra.mxu0 %v362
    %443 = vmatpush.bf16.msra.mxu0 %v361
    %444 = vmatpush.bf16.msra.mxu0 %v360
    %445 = vmatpush.bf16.msra.mxu0 %v359
    %446 = vmatmul.bf16.gmra.mxu0 %v197
    %v447 = vpop.f32.mrf.mxu0
    %v448 = vadd.f32 %v163, %v447
    %v449 = vpop.f32.mrf.mxu0
    %v450 = vadd.f32 %v163, %v449
    %451 = vmatmul.bf16.gmra.mxu0 %v202
    %v452 = vpop.f32.mrf.mxu0
    %v453 = vadd.f32 %v163, %v452
    %v454 = vpop.f32.mrf.mxu0
    %v455 = vadd.f32 %v163, %v454
    %456 = vdwg.mxu0
    %457 = vmatpush.bf16.msra.mxu0 %v374
    %458 = vmatpush.bf16.msra.mxu0 %v373
    %459 = vmatpush.bf16.msra.mxu0 %v372
    %460 = vmatpush.bf16.msra.mxu0 %v371
    %461 = vmatpush.bf16.msra.mxu0 %v370
    %462 = vmatpush.bf16.msra.mxu0 %v369
    %463 = vmatpush.bf16.msra.mxu0 %v368
    %464 = vmatpush.bf16.msra.mxu0 %v367
    %465 = vmatmul.bf16.gmra.mxu0 %v198
    %v466 = vpop.f32.mrf.mxu0
    %v467 = vadd.f32 %v448, %v466
    %v468 = vpop.f32.mrf.mxu0
    %v469 = vadd.f32 %v450, %v468
    %470 = vmatmul.bf16.gmra.mxu0 %v203
    %v471 = vpop.f32.mrf.mxu0
    %v472 = vadd.f32 %v453, %v471
    %v473 = vpop.f32.mrf.mxu0
    %v474 = vadd.f32 %v455, %v473
    %475 = vdwg.mxu0
    %476 = vmatpush.bf16.msra.mxu0 %v382
    %477 = vmatpush.bf16.msra.mxu0 %v381
    %478 = vmatpush.bf16.msra.mxu0 %v380
    %479 = vmatpush.bf16.msra.mxu0 %v379
    %480 = vmatpush.bf16.msra.mxu0 %v378
    %481 = vmatpush.bf16.msra.mxu0 %v377
    %482 = vmatpush.bf16.msra.mxu0 %v376
    %483 = vmatpush.bf16.msra.mxu0 %v375
    %484 = vmatmul.bf16.gmra.mxu0 %v199
    %v485 = vpop.f32.mrf.mxu0
    %v486 = vadd.f32 %v467, %v485
    %v487 = vpop.f32.mrf.mxu0
    %v488 = vadd.f32 %v469, %v487
    %489 = vmatmul.bf16.gmra.mxu0 %v204
    %v490 = vpop.f32.mrf.mxu0
    %v491 = vadd.f32 %v472, %v490
    %v492 = vpop.f32.mrf.mxu0
    %v493 = vadd.f32 %v474, %v492
    %494 = vdwg.mxu0
    %495 = vmatpush.bf16.msra.mxu0 %v390
    %496 = vmatpush.bf16.msra.mxu0 %v389
    %497 = vmatpush.bf16.msra.mxu0 %v388
    %498 = vmatpush.bf16.msra.mxu0 %v387
    %499 = vmatpush.bf16.msra.mxu0 %v386
    %500 = vmatpush.bf16.msra.mxu0 %v385
    %501 = vmatpush.bf16.msra.mxu0 %v384
    %502 = vmatpush.bf16.msra.mxu0 %v383
    %503 = vmatmul.bf16.gmra.mxu0 %v200
    %v504 = vpop.f32.mrf.mxu0
    %v505 = vadd.f32 %v486, %v504
    %v506 = vpop.f32.mrf.mxu0
    %v507 = vadd.f32 %v488, %v506
    %508 = vmatmul.bf16.gmra.mxu0 %v205
    %v509 = vpop.f32.mrf.mxu0
    %v510 = vadd.f32 %v491, %v509
    %v511 = vpop.f32.mrf.mxu0
    %v512 = vadd.f32 %v493, %v511
    %513 = vdwg.mxu0
    %514 = vmatpush.bf16.msra.mxu0 0
    %515 = vmatpush.bf16.msra.mxu0 0
    %516 = vmatpush.bf16.msra.mxu0 0
    %517 = vmatpush.bf16.msra.mxu0 0
    %518 = vmatpush.bf16.msra.mxu0 %v394
    %519 = vmatpush.bf16.msra.mxu0 %v393
    %520 = vmatpush.bf16.msra.mxu0 %v392
    %521 = vmatpush.bf16.msra.mxu0 %v391
    %522 = vmatmul.bf16.gmra.mxu0 %v433
    %v523 = vpop.f32.mrf.mxu0
    %v524 = vadd.f32 %v505, %v523
    %v525 = vpop.f32.mrf.mxu0
    %v526 = vadd.f32 %v507, %v525
    %527 = vmatmul.bf16.gmra.mxu0 %v436
    %v528 = vpop.f32.mrf.mxu0
    %v529 = vadd.f32 %v510, %v528
    %v530 = vpop.f32.mrf.mxu0
    %v531 = vadd.f32 %v512, %v530
    %532 = vdwg.mxu0
    %v533 = vmax.f32 %v524, 0.0
    %v534 = vmax.f32 %v526, 0.0
    %v535 = vmax.f32 %v529, 0.0
    %v536 = vmax.f32 %v531, 0.0
    %v537 = vld [vmem:[%s6] sm:$0x3]
    %vm538 = vcmask 1041408
    %v539 = vsel %vm538, %v533, -inf
    %v540 = vrot.slane %v539, 4
    %v541 = vmax.f32 %v539, %v540
    %v542 = vrot.slane %v541, 2
    %v543 = vmax.f32 %v541, %v542
    %v544 = vrot.slane %v543, 1
    %v545 = vmax.f32 %v543, %v544
    %v546 = vsel %vm538, %v535, -inf
    %v547 = vrot.slane %v546, 4
    %v548 = vmax.f32 %v546, %v547
    %v549 = vrot.slane %v548, 2
    %v550 = vmax.f32 %v548, %v549
    %v551 = vrot.slane %v550, 1
    %v552 = vmax.f32 %v550, %v551
    %vm553 = vcmask 1045508
    %v554 = vsel %vm553, %v533, -inf
    %v555 = vrot.slane %v554, 4
    %v556 = vmax.f32 %v554, %v555
    %v557 = vrot.slane %v556, 2
    %v558 = vmax.f32 %v556, %v557
    %v559 = vrot.slane %v558, 1
    %v560 = vmax.f32 %v558, %v559
    %v561 = vsel %vm553, %v535, -inf
    %v562 = vrot.slane %v561, 4
    %v563 = vmax.f32 %v561, %v562
    %v564 = vrot.slane %v563, 2
    %v565 = vmax.f32 %v563, %v564
    %v566 = vrot.slane %v565, 1
    %v567 = vmax.f32 %v565, %v566
    %v568 = vmax.f32 %v545, %v560
    %v569 = vmax.f32 %v552, %v567
    %v570 = vpack.c.bf16 %v568, %v568
    %v571 = vpack.c.bf16 %v569, %v569
    %v572 = vld [vmem:[%s5] sm:$0xff]
    %v573 = vld [vmem:[%s5 + $0x8] sm:$0xff]
    %v574 = vld [vmem:[%s5 + $0x10] sm:$0xff]
    %v575 = vld [vmem:[%s5 + $0x18] sm:$0xff]
    %v576 = vld [vmem:[%s5 + $0x20] sm:$0xff]
    %v577 = vld [vmem:[%s5 + $0x28] sm:$0xff]
    %v578 = vld [vmem:[%s5 + $0x30] sm:$0xff]
    %v579 = vld [vmem:[%s5 + $0x38] sm:$0xff]
    %v580 = vld [vmem:[%s5 + $0x40] sm:$0xff]
    %v581 = vld [vmem:[%s5 + $0x48] sm:$0xff]
    %v582 = vld [vmem:[%s5 + $0x50] sm:$0xff]
    %v583 = vld [vmem:[%s5 + $0x58] sm:$0xff]
    %v584 = vld [vmem:[%s5 + $0x60] sm:$0xff]
    %v585 = vld [vmem:[%s5 + $0x68] sm:$0xff]
    %v586 = vld [vmem:[%s5 + $0x70] sm:$0xff]
    %v587 = vld [vmem:[%s5 + $0x78] sm:$0xff]
    %v590 = vunpack.c.l.b16 %v570
    %v591 = vunpack.c.l.b16 %v571
    %vm592 = vcmask 1041409
    %v593 = vsel %vm592, %v591, %v590
    %v594 = vpack.c.b16 %v593, %v593
    %v612 = vunpack.c.l.b16 %v572
    %v613 = vunpack.c.h.b16 %v572
    %v614 = vunpack.c.l.b16 %v573
    %v615 = vunpack.c.h.b16 %v573
    %v616 = vunpack.c.l.b16 %v574
    %v617 = vunpack.c.h.b16 %v574
    %v618 = vunpack.c.l.b16 %v575
    %v619 = vunpack.c.h.b16 %v575
    %v620 = vunpack.c.l.b16 %v576
    %v621 = vunpack.c.h.b16 %v576
    %v622 = vunpack.c.l.b16 %v577
    %v623 = vunpack.c.h.b16 %v577
    %v624 = vunpack.c.l.b16 %v578
    %v625 = vunpack.c.h.b16 %v578
    %v626 = vunpack.c.l.b16 %v579
    %v627 = vunpack.c.h.b16 %v579
    %v628 = vunpack.c.l.b16 %v580
    %v629 = vunpack.c.h.b16 %v580
    %v630 = vunpack.c.l.b16 %v581
    %v631 = vunpack.c.h.b16 %v581
    %v632 = vunpack.c.l.b16 %v582
    %v633 = vunpack.c.h.b16 %v582
    %v634 = vunpack.c.l.b16 %v583
    %v635 = vunpack.c.h.b16 %v583
    %v636 = vunpack.c.l.b16 %v584
    %v637 = vunpack.c.h.b16 %v584
    %v638 = vunpack.c.l.b16 %v585
    %v639 = vunpack.c.h.b16 %v585
    %v640 = vunpack.c.l.b16 %v586
    %v641 = vunpack.c.h.b16 %v586
    %v642 = vunpack.c.l.b16 %v587
    %v643 = vunpack.c.h.b16 %v587
    %v644 = vpack.c.b16 %v614, %v612
    %v645 = vpack.c.b16 %v615, %v613
    %v646 = vpack.c.b16 %v618, %v616
    %v647 = vpack.c.b16 %v619, %v617
    %v648 = vpack.c.b16 %v622, %v620
    %v649 = vpack.c.b16 %v623, %v621
    %v650 = vpack.c.b16 %v626, %v624
    %v651 = vpack.c.b16 %v627, %v625
    %v652 = vpack.c.b16 %v630, %v628
    %v653 = vpack.c.b16 %v631, %v629
    %v654 = vpack.c.b16 %v634, %v632
    %v655 = vpack.c.b16 %v635, %v633
    %v656 = vpack.c.b16 %v638, %v636
    %v657 = vpack.c.b16 %v639, %v637
    %v658 = vpack.c.b16 %v642, %v640
    %v659 = vpack.c.b16 %v643, %v641
    %676 = vmatpush.bf16.msra.mxu0 %v658
    %677 = vmatpush.bf16.msra.mxu0 %v656
    %678 = vmatpush.bf16.msra.mxu0 %v654
    %679 = vmatpush.bf16.msra.mxu0 %v652
    %680 = vmatpush.bf16.msra.mxu0 %v650
    %681 = vmatpush.bf16.msra.mxu0 %v648
    %682 = vmatpush.bf16.msra.mxu0 %v646
    %683 = vmatpush.bf16.msra.mxu0 %v644
    %684 = vmatmul.bf16.gmra.mxu0 %v594
    %v685 = vpop.f32.mrf.mxu0
    %v686 = vadd.f32 0.0, %v685
    %v687 = vpop.f32.mrf.mxu0
    %688 = vdwg.mxu0
    %689 = vmatpush.bf16.msra.mxu0 %v659
    %690 = vmatpush.bf16.msra.mxu0 %v657
    %691 = vmatpush.bf16.msra.mxu0 %v655
    %692 = vmatpush.bf16.msra.mxu0 %v653
    %693 = vmatpush.bf16.msra.mxu0 %v651
    %694 = vmatpush.bf16.msra.mxu0 %v649
    %695 = vmatpush.bf16.msra.mxu0 %v647
    %696 = vmatpush.bf16.msra.mxu0 %v645
    %697 = vmatmul.bf16.gmra.mxu0 %v594
    %v698 = vpop.f32.mrf.mxu0
    %v699 = vadd.f32 0.0, %v698
    %v700 = vpop.f32.mrf.mxu0
    %701 = vdwg.mxu0
    %v703 = vperm.slane %v537, 0
    %v704 = vperm.slane %v537, 1
    %v707 = vadd.f32 %v703, %v686
    %v708 = vadd.f32 %v704, %v699
    %vm709 = vcmask 1043458
    %v710 = vsel %vm709, %v533, -inf
    %v711 = vrot.slane %v710, 4
    %v712 = vmax.f32 %v710, %v711
    %v713 = vrot.slane %v712, 2
    %v714 = vmax.f32 %v712, %v713
    %v715 = vrot.slane %v714, 1
    %v716 = vmax.f32 %v714, %v715
    %v717 = vsel %vm709, %v535, -inf
    %v718 = vrot.slane %v717, 4
    %v719 = vmax.f32 %v717, %v718
    %v720 = vrot.slane %v719, 2
    %v721 = vmax.f32 %v719, %v720
    %v722 = vrot.slane %v721, 1
    %v723 = vmax.f32 %v721, %v722
    %vm724 = vcmask 1047558
    %v725 = vsel %vm724, %v533, -inf
    %v726 = vrot.slane %v725, 4
    %v727 = vmax.f32 %v725, %v726
    %v728 = vrot.slane %v727, 2
    %v729 = vmax.f32 %v727, %v728
    %v730 = vrot.slane %v729, 1
    %v731 = vmax.f32 %v729, %v730
    %v732 = vsel %vm724, %v535, -inf
    %v733 = vrot.slane %v732, 4
    %v734 = vmax.f32 %v732, %v733
    %v735 = vrot.slane %v734, 2
    %v736 = vmax.f32 %v734, %v735
    %v737 = vrot.slane %v736, 1
    %v738 = vmax.f32 %v736, %v737
    %v739 = vmax.f32 %v716, %v731
    %v740 = vmax.f32 %v723, %v738
    %v741 = vpack.c.bf16 %v739, %v739
    %v742 = vpack.c.bf16 %v740, %v740
    %v743 = vld [vmem:[%s5 + $0x80] sm:$0xff]
    %v744 = vld [vmem:[%s5 + $0x88] sm:$0xff]
    %v745 = vld [vmem:[%s5 + $0x90] sm:$0xff]
    %v746 = vld [vmem:[%s5 + $0x98] sm:$0xff]
    %v747 = vld [vmem:[%s5 + $0xa0] sm:$0xff]
    %v748 = vld [vmem:[%s5 + $0xa8] sm:$0xff]
    %v749 = vld [vmem:[%s5 + $0xb0] sm:$0xff]
    %v750 = vld [vmem:[%s5 + $0xb8] sm:$0xff]
    %v751 = vld [vmem:[%s5 + $0xc0] sm:$0xff]
    %v752 = vld [vmem:[%s5 + $0xc8] sm:$0xff]
    %v753 = vld [vmem:[%s5 + $0xd0] sm:$0xff]
    %v754 = vld [vmem:[%s5 + $0xd8] sm:$0xff]
    %v755 = vld [vmem:[%s5 + $0xe0] sm:$0xff]
    %v756 = vld [vmem:[%s5 + $0xe8] sm:$0xff]
    %v757 = vld [vmem:[%s5 + $0xf0] sm:$0xff]
    %v758 = vld [vmem:[%s5 + $0xf8] sm:$0xff]
    %v761 = vunpack.c.l.b16 %v741
    %v762 = vunpack.c.l.b16 %v742
    %v763 = vsel %vm592, %v762, %v761
    %v764 = vpack.c.b16 %v763, %v763
    %v782 = vunpack.c.l.b16 %v743
    %v783 = vunpack.c.h.b16 %v743
    %v784 = vunpack.c.l.b16 %v744
    %v785 = vunpack.c.h.b16 %v744
    %v786 = vunpack.c.l.b16 %v745
    %v787 = vunpack.c.h.b16 %v745
    %v788 = vunpack.c.l.b16 %v746
    %v789 = vunpack.c.h.b16 %v746
    %v790 = vunpack.c.l.b16 %v747
    %v791 = vunpack.c.h.b16 %v747
    %v792 = vunpack.c.l.b16 %v748
    %v793 = vunpack.c.h.b16 %v748
    %v794 = vunpack.c.l.b16 %v749
    %v795 = vunpack.c.h.b16 %v749
    %v796 = vunpack.c.l.b16 %v750
    %v797 = vunpack.c.h.b16 %v750
    %v798 = vunpack.c.l.b16 %v751
    %v799 = vunpack.c.h.b16 %v751
    %v800 = vunpack.c.l.b16 %v752
    %v801 = vunpack.c.h.b16 %v752
    %v802 = vunpack.c.l.b16 %v753
    %v803 = vunpack.c.h.b16 %v753
    %v804 = vunpack.c.l.b16 %v754
    %v805 = vunpack.c.h.b16 %v754
    %v806 = vunpack.c.l.b16 %v755
    %v807 = vunpack.c.h.b16 %v755
    %v808 = vunpack.c.l.b16 %v756
    %v809 = vunpack.c.h.b16 %v756
    %v810 = vunpack.c.l.b16 %v757
    %v811 = vunpack.c.h.b16 %v757
    %v812 = vunpack.c.l.b16 %v758
    %v813 = vunpack.c.h.b16 %v758
    %v814 = vpack.c.b16 %v784, %v782
    %v815 = vpack.c.b16 %v785, %v783
    %v816 = vpack.c.b16 %v788, %v786
    %v817 = vpack.c.b16 %v789, %v787
    %v818 = vpack.c.b16 %v792, %v790
    %v819 = vpack.c.b16 %v793, %v791
    %v820 = vpack.c.b16 %v796, %v794
    %v821 = vpack.c.b16 %v797, %v795
    %v822 = vpack.c.b16 %v800, %v798
    %v823 = vpack.c.b16 %v801, %v799
    %v824 = vpack.c.b16 %v804, %v802
    %v825 = vpack.c.b16 %v805, %v803
    %v826 = vpack.c.b16 %v808, %v806
    %v827 = vpack.c.b16 %v809, %v807
    %v828 = vpack.c.b16 %v812, %v810
    %v829 = vpack.c.b16 %v813, %v811
    %846 = vmatpush.bf16.msra.mxu0 %v828
    %847 = vmatpush.bf16.msra.mxu0 %v826
    %848 = vmatpush.bf16.msra.mxu0 %v824
    %849 = vmatpush.bf16.msra.mxu0 %v822
    %850 = vmatpush.bf16.msra.mxu0 %v820
    %851 = vmatpush.bf16.msra.mxu0 %v818
    %852 = vmatpush.bf16.msra.mxu0 %v816
    %853 = vmatpush.bf16.msra.mxu0 %v814
    %854 = vmatmul.bf16.gmra.mxu0 %v764
    %v855 = vpop.f32.mrf.mxu0
    %v856 = vadd.f32 0.0, %v855
    %v857 = vpop.f32.mrf.mxu0
    %858 = vdwg.mxu0
    %859 = vmatpush.bf16.msra.mxu0 %v829
    %860 = vmatpush.bf16.msra.mxu0 %v827
    %861 = vmatpush.bf16.msra.mxu0 %v825
    %862 = vmatpush.bf16.msra.mxu0 %v823
    %863 = vmatpush.bf16.msra.mxu0 %v821
    %864 = vmatpush.bf16.msra.mxu0 %v819
    %865 = vmatpush.bf16.msra.mxu0 %v817
    %866 = vmatpush.bf16.msra.mxu0 %v815
    %867 = vmatmul.bf16.gmra.mxu0 %v764
    %v868 = vpop.f32.mrf.mxu0
    %v869 = vadd.f32 0.0, %v868
    %v870 = vpop.f32.mrf.mxu0
    %871 = vdwg.mxu0
    %v872 = vadd.f32 %v707, %v856
    %v873 = vadd.f32 %v708, %v869
    %v874 = vsel %vm538, %v534, -inf
    %v875 = vrot.slane %v874, 4
    %v876 = vmax.f32 %v874, %v875
    %v877 = vrot.slane %v876, 2
    %v878 = vmax.f32 %v876, %v877
    %v879 = vrot.slane %v878, 1
    %v880 = vmax.f32 %v878, %v879
    %v881 = vsel %vm538, %v536, -inf
    %v882 = vrot.slane %v881, 4
    %v883 = vmax.f32 %v881, %v882
    %v884 = vrot.slane %v883, 2
    %v885 = vmax.f32 %v883, %v884
    %v886 = vrot.slane %v885, 1
    %v887 = vmax.f32 %v885, %v886
    %v888 = vsel %vm553, %v534, -inf
    %v889 = vrot.slane %v888, 4
    %v890 = vmax.f32 %v888, %v889
    %v891 = vrot.slane %v890, 2
    %v892 = vmax.f32 %v890, %v891
    %v893 = vrot.slane %v892, 1
    %v894 = vmax.f32 %v892, %v893
    %v895 = vsel %vm553, %v536, -inf
    %v896 = vrot.slane %v895, 4
    %v897 = vmax.f32 %v895, %v896
    %v898 = vrot.slane %v897, 2
    %v899 = vmax.f32 %v897, %v898
    %v900 = vrot.slane %v899, 1
    %v901 = vmax.f32 %v899, %v900
    %v902 = vmax.f32 %v880, %v894
    %v903 = vmax.f32 %v887, %v901
    %v904 = vpack.c.bf16 %v902, %v902
    %v905 = vpack.c.bf16 %v903, %v903
    %v906 = vld [vmem:[%s5 + $0x100] sm:$0xff]
    %v907 = vld [vmem:[%s5 + $0x108] sm:$0xff]
    %v908 = vld [vmem:[%s5 + $0x110] sm:$0xff]
    %v909 = vld [vmem:[%s5 + $0x118] sm:$0xff]
    %v910 = vld [vmem:[%s5 + $0x120] sm:$0xff]
    %v911 = vld [vmem:[%s5 + $0x128] sm:$0xff]
    %v912 = vld [vmem:[%s5 + $0x130] sm:$0xff]
    %v913 = vld [vmem:[%s5 + $0x138] sm:$0xff]
    %v914 = vld [vmem:[%s5 + $0x140] sm:$0xff]
    %v915 = vld [vmem:[%s5 + $0x148] sm:$0xff]
    %v916 = vld [vmem:[%s5 + $0x150] sm:$0xff]
    %v917 = vld [vmem:[%s5 + $0x158] sm:$0xff]
    %v918 = vld [vmem:[%s5 + $0x160] sm:$0xff]
    %v919 = vld [vmem:[%s5 + $0x168] sm:$0xff]
    %v920 = vld [vmem:[%s5 + $0x170] sm:$0xff]
    %v921 = vld [vmem:[%s5 + $0x178] sm:$0xff]
    %v924 = vunpack.c.l.b16 %v904
    %v925 = vunpack.c.l.b16 %v905
    %v926 = vsel %vm592, %v925, %v924
    %v927 = vpack.c.b16 %v926, %v926
    %v945 = vunpack.c.l.b16 %v906
    %v946 = vunpack.c.h.b16 %v906
    %v947 = vunpack.c.l.b16 %v907
    %v948 = vunpack.c.h.b16 %v907
    %v949 = vunpack.c.l.b16 %v908
    %v950 = vunpack.c.h.b16 %v908
    %v951 = vunpack.c.l.b16 %v909
    %v952 = vunpack.c.h.b16 %v909
    %v953 = vunpack.c.l.b16 %v910
    %v954 = vunpack.c.h.b16 %v910
    %v955 = vunpack.c.l.b16 %v911
    %v956 = vunpack.c.h.b16 %v911
    %v957 = vunpack.c.l.b16 %v912
    %v958 = vunpack.c.h.b16 %v912
    %v959 = vunpack.c.l.b16 %v913
    %v960 = vunpack.c.h.b16 %v913
    %v961 = vunpack.c.l.b16 %v914
    %v962 = vunpack.c.h.b16 %v914
    %v963 = vunpack.c.l.b16 %v915
    %v964 = vunpack.c.h.b16 %v915
    %v965 = vunpack.c.l.b16 %v916
    %v966 = vunpack.c.h.b16 %v916
    %v967 = vunpack.c.l.b16 %v917
    %v968 = vunpack.c.h.b16 %v917
    %v969 = vunpack.c.l.b16 %v918
    %v970 = vunpack.c.h.b16 %v918
    %v971 = vunpack.c.l.b16 %v919
    %v972 = vunpack.c.h.b16 %v919
    %v973 = vunpack.c.l.b16 %v920
    %v974 = vunpack.c.h.b16 %v920
    %v975 = vunpack.c.l.b16 %v921
    %v976 = vunpack.c.h.b16 %v921
    %v977 = vpack.c.b16 %v947, %v945
    %v978 = vpack.c.b16 %v948, %v946
    %v979 = vpack.c.b16 %v951, %v949
    %v980 = vpack.c.b16 %v952, %v950
    %v981 = vpack.c.b16 %v955, %v953
    %v982 = vpack.c.b16 %v956, %v954
    %v983 = vpack.c.b16 %v959, %v957
    %v984 = vpack.c.b16 %v960, %v958
    %v985 = vpack.c.b16 %v963, %v961
    %v986 = vpack.c.b16 %v964, %v962
    %v987 = vpack.c.b16 %v967, %v965
    %v988 = vpack.c.b16 %v968, %v966
    %v989 = vpack.c.b16 %v971, %v969
    %v990 = vpack.c.b16 %v972, %v970
    %v991 = vpack.c.b16 %v975, %v973
    %v992 = vpack.c.b16 %v976, %v974
    %1009 = vmatpush.bf16.msra.mxu0 %v991
    %1010 = vmatpush.bf16.msra.mxu0 %v989
    %1011 = vmatpush.bf16.msra.mxu0 %v987
    %1012 = vmatpush.bf16.msra.mxu0 %v985
    %1013 = vmatpush.bf16.msra.mxu0 %v983
    %1014 = vmatpush.bf16.msra.mxu0 %v981
    %1015 = vmatpush.bf16.msra.mxu0 %v979
    %1016 = vmatpush.bf16.msra.mxu0 %v977
    %1017 = vmatmul.bf16.gmra.mxu0 %v927
    %v1018 = vpop.f32.mrf.mxu0
    %v1019 = vadd.f32 0.0, %v1018
    %v1020 = vpop.f32.mrf.mxu0
    %1021 = vdwg.mxu0
    %1022 = vmatpush.bf16.msra.mxu0 %v992
    %1023 = vmatpush.bf16.msra.mxu0 %v990
    %1024 = vmatpush.bf16.msra.mxu0 %v988
    %1025 = vmatpush.bf16.msra.mxu0 %v986
    %1026 = vmatpush.bf16.msra.mxu0 %v984
    %1027 = vmatpush.bf16.msra.mxu0 %v982
    %1028 = vmatpush.bf16.msra.mxu0 %v980
    %1029 = vmatpush.bf16.msra.mxu0 %v978
    %1030 = vmatmul.bf16.gmra.mxu0 %v927
    %v1031 = vpop.f32.mrf.mxu0
    %v1032 = vadd.f32 0.0, %v1031
    %v1033 = vpop.f32.mrf.mxu0
    %1034 = vdwg.mxu0
    %v1035 = vadd.f32 %v872, %v1019
    %v1036 = vadd.f32 %v873, %v1032
    %v1037 = vsel %vm709, %v534, -inf
    %v1038 = vrot.slane %v1037, 4
    %v1039 = vmax.f32 %v1037, %v1038
    %v1040 = vrot.slane %v1039, 2
    %v1041 = vmax.f32 %v1039, %v1040
    %v1042 = vrot.slane %v1041, 1
    %v1043 = vmax.f32 %v1041, %v1042
    %v1044 = vsel %vm709, %v536, -inf
    %v1045 = vrot.slane %v1044, 4
    %v1046 = vmax.f32 %v1044, %v1045
    %v1047 = vrot.slane %v1046, 2
    %v1048 = vmax.f32 %v1046, %v1047
    %v1049 = vrot.slane %v1048, 1
    %v1050 = vmax.f32 %v1048, %v1049
    %v1051 = vsel %vm724, %v534, -inf
    %v1052 = vrot.slane %v1051, 4
    %v1053 = vmax.f32 %v1051, %v1052
    %v1054 = vrot.slane %v1053, 2
    %v1055 = vmax.f32 %v1053, %v1054
    %v1056 = vrot.slane %v1055, 1
    %v1057 = vmax.f32 %v1055, %v1056
    %v1058 = vsel %vm724, %v536, -inf
    %v1059 = vrot.slane %v1058, 4
    %v1060 = vmax.f32 %v1058, %v1059
    %v1061 = vrot.slane %v1060, 2
    %v1062 = vmax.f32 %v1060, %v1061
    %v1063 = vrot.slane %v1062, 1
    %v1064 = vmax.f32 %v1062, %v1063
    %v1065 = vmax.f32 %v1043, %v1057
    %v1066 = vmax.f32 %v1050, %v1064
    %v1067 = vpack.c.bf16 %v1065, %v1065
    %v1068 = vpack.c.bf16 %v1066, %v1066
    %v1069 = vld [vmem:[%s5 + $0x180] sm:$0xff]
    %v1070 = vld [vmem:[%s5 + $0x188] sm:$0xff]
    %v1071 = vld [vmem:[%s5 + $0x190] sm:$0xff]
    %v1072 = vld [vmem:[%s5 + $0x198] sm:$0xff]
    %v1073 = vld [vmem:[%s5 + $0x1a0] sm:$0xff]
    %v1074 = vld [vmem:[%s5 + $0x1a8] sm:$0xff]
    %v1075 = vld [vmem:[%s5 + $0x1b0] sm:$0xff]
    %v1076 = vld [vmem:[%s5 + $0x1b8] sm:$0xff]
    %v1077 = vld [vmem:[%s5 + $0x1c0] sm:$0xff]
    %v1078 = vld [vmem:[%s5 + $0x1c8] sm:$0xff]
    %v1079 = vld [vmem:[%s5 + $0x1d0] sm:$0xff]
    %v1080 = vld [vmem:[%s5 + $0x1d8] sm:$0xff]
    %v1081 = vld [vmem:[%s5 + $0x1e0] sm:$0xff]
    %v1082 = vld [vmem:[%s5 + $0x1e8] sm:$0xff]
    %v1083 = vld [vmem:[%s5 + $0x1f0] sm:$0xff]
    %v1084 = vld [vmem:[%s5 + $0x1f8] sm:$0xff]
    %v1087 = vunpack.c.l.b16 %v1067
    %v1088 = vunpack.c.l.b16 %v1068
    %v1089 = vsel %vm592, %v1088, %v1087
    %v1090 = vpack.c.b16 %v1089, %v1089
    %v1108 = vunpack.c.l.b16 %v1069
    %v1109 = vunpack.c.h.b16 %v1069
    %v1110 = vunpack.c.l.b16 %v1070
    %v1111 = vunpack.c.h.b16 %v1070
    %v1112 = vunpack.c.l.b16 %v1071
    %v1113 = vunpack.c.h.b16 %v1071
    %v1114 = vunpack.c.l.b16 %v1072
    %v1115 = vunpack.c.h.b16 %v1072
    %v1116 = vunpack.c.l.b16 %v1073
    %v1117 = vunpack.c.h.b16 %v1073
    %v1118 = vunpack.c.l.b16 %v1074
    %v1119 = vunpack.c.h.b16 %v1074
    %v1120 = vunpack.c.l.b16 %v1075
    %v1121 = vunpack.c.h.b16 %v1075
    %v1122 = vunpack.c.l.b16 %v1076
    %v1123 = vunpack.c.h.b16 %v1076
    %v1124 = vunpack.c.l.b16 %v1077
    %v1125 = vunpack.c.h.b16 %v1077
    %v1126 = vunpack.c.l.b16 %v1078
    %v1127 = vunpack.c.h.b16 %v1078
    %v1128 = vunpack.c.l.b16 %v1079
    %v1129 = vunpack.c.h.b16 %v1079
    %v1130 = vunpack.c.l.b16 %v1080
    %v1131 = vunpack.c.h.b16 %v1080
    %v1132 = vunpack.c.l.b16 %v1081
    %v1133 = vunpack.c.h.b16 %v1081
    %v1134 = vunpack.c.l.b16 %v1082
    %v1135 = vunpack.c.h.b16 %v1082
    %v1136 = vunpack.c.l.b16 %v1083
    %v1137 = vunpack.c.h.b16 %v1083
    %v1138 = vunpack.c.l.b16 %v1084
    %v1139 = vunpack.c.h.b16 %v1084
    %v1140 = vpack.c.b16 %v1110, %v1108
    %v1141 = vpack.c.b16 %v1111, %v1109
    %v1142 = vpack.c.b16 %v1114, %v1112
    %v1143 = vpack.c.b16 %v1115, %v1113
    %v1144 = vpack.c.b16 %v1118, %v1116
    %v1145 = vpack.c.b16 %v1119, %v1117
    %v1146 = vpack.c.b16 %v1122, %v1120
    %v1147 = vpack.c.b16 %v1123, %v1121
    %v1148 = vpack.c.b16 %v1126, %v1124
    %v1149 = vpack.c.b16 %v1127, %v1125
    %v1150 = vpack.c.b16 %v1130, %v1128
    %v1151 = vpack.c.b16 %v1131, %v1129
    %v1152 = vpack.c.b16 %v1134, %v1132
    %v1153 = vpack.c.b16 %v1135, %v1133
    %v1154 = vpack.c.b16 %v1138, %v1136
    %v1155 = vpack.c.b16 %v1139, %v1137
    %1172 = vmatpush.bf16.msra.mxu0 %v1154
    %1173 = vmatpush.bf16.msra.mxu0 %v1152
    %1174 = vmatpush.bf16.msra.mxu0 %v1150
    %1175 = vmatpush.bf16.msra.mxu0 %v1148
    %1176 = vmatpush.bf16.msra.mxu0 %v1146
    %1177 = vmatpush.bf16.msra.mxu0 %v1144
    %1178 = vmatpush.bf16.msra.mxu0 %v1142
    %1179 = vmatpush.bf16.msra.mxu0 %v1140
    %1180 = vmatmul.bf16.gmra.mxu0 %v1090
    %v1181 = vpop.f32.mrf.mxu0
    %v1182 = vadd.f32 0.0, %v1181
    %v1183 = vpop.f32.mrf.mxu0
    %1184 = vdwg.mxu0
    %1185 = vmatpush.bf16.msra.mxu0 %v1155
    %1186 = vmatpush.bf16.msra.mxu0 %v1153
    %1187 = vmatpush.bf16.msra.mxu0 %v1151
    %1188 = vmatpush.bf16.msra.mxu0 %v1149
    %1189 = vmatpush.bf16.msra.mxu0 %v1147
    %1190 = vmatpush.bf16.msra.mxu0 %v1145
    %1191 = vmatpush.bf16.msra.mxu0 %v1143
    %1192 = vmatpush.bf16.msra.mxu0 %v1141
    %1193 = vmatmul.bf16.gmra.mxu0 %v1090
    %v1194 = vpop.f32.mrf.mxu0
    %v1195 = vadd.f32 0.0, %v1194
    %v1196 = vpop.f32.mrf.mxu0
    %1197 = vdwg.mxu0
    %v1198 = vadd.f32 %v1035, %v1182
    %v1199 = vadd.f32 %v1036, %v1195
    %v1200 = vmax.f32 %v1198, 0.0
    %v1201 = vmax.f32 %v1199, 0.0
    %v1202 = vpack.c.bf16 %v1200, %v1200
    %v1203 = vpack.c.bf16 %v1201, %v1201
    %v1204 = vld [vmem:[%s7] sm:$0xf]
    %v1205 = vld [vmem:[%s7 + $0x4] sm:$0xf]
    %v1206 = vld [vmem:[%s7 + $0x8] sm:$0xf]
    %v1207 = vld [vmem:[%s7 + $0xc] sm:$0xf]
    %v1208 = vld [vmem:[%s7 + $0x10] sm:$0xf]
    %v1209 = vld [vmem:[%s7 + $0x14] sm:$0xf]
    %v1210 = vld [vmem:[%s7 + $0x18] sm:$0xf]
    %v1211 = vld [vmem:[%s7 + $0x1c] sm:$0xf]
    %v1212 = vld [vmem:[%s7 + $0x20] sm:$0xf]
    %v1213 = vld [vmem:[%s7 + $0x24] sm:$0xf]
    %v1214 = vld [vmem:[%s7 + $0x28] sm:$0xf]
    %v1215 = vld [vmem:[%s7 + $0x2c] sm:$0xf]
    %v1216 = vld [vmem:[%s7 + $0x30] sm:$0xf]
    %v1217 = vld [vmem:[%s7 + $0x34] sm:$0xf]
    %v1218 = vld [vmem:[%s7 + $0x38] sm:$0xf]
    %v1219 = vld [vmem:[%s7 + $0x3c] sm:$0xf]
    %v1220 = vld [vmem:[%s7 + $0x40] sm:$0xf]
    %v1221 = vld [vmem:[%s7 + $0x44] sm:$0xf]
    %v1222 = vld [vmem:[%s7 + $0x48] sm:$0xf]
    %v1223 = vld [vmem:[%s7 + $0x4c] sm:$0xf]
    %v1224 = vld [vmem:[%s7 + $0x50] sm:$0xf]
    %v1225 = vld [vmem:[%s7 + $0x54] sm:$0xf]
    %v1226 = vld [vmem:[%s7 + $0x58] sm:$0xf]
    %v1227 = vld [vmem:[%s7 + $0x5c] sm:$0xf]
    %v1228 = vld [vmem:[%s7 + $0x60] sm:$0xf]
    %v1229 = vld [vmem:[%s7 + $0x64] sm:$0xf]
    %v1230 = vld [vmem:[%s7 + $0x68] sm:$0xf]
    %v1231 = vld [vmem:[%s7 + $0x6c] sm:$0xf]
    %v1232 = vld [vmem:[%s7 + $0x70] sm:$0xf]
    %v1233 = vld [vmem:[%s7 + $0x74] sm:$0xf]
    %v1234 = vld [vmem:[%s7 + $0x78] sm:$0xf]
    %v1235 = vld [vmem:[%s7 + $0x7c] sm:$0xf]
    %v1236 = vld [vmem:[%s8] sm:$0x1]
    %v1238 = vperm.slane %v1236, 0
    %v1272 = vunpack.c.l.b16 %v1204
    %v1273 = vunpack.c.l.b16 %v1205
    %v1274 = vunpack.c.l.b16 %v1206
    %v1275 = vunpack.c.l.b16 %v1207
    %v1276 = vunpack.c.l.b16 %v1208
    %v1277 = vunpack.c.l.b16 %v1209
    %v1278 = vunpack.c.l.b16 %v1210
    %v1279 = vunpack.c.l.b16 %v1211
    %v1280 = vunpack.c.l.b16 %v1212
    %v1281 = vunpack.c.l.b16 %v1213
    %v1282 = vunpack.c.l.b16 %v1214
    %v1283 = vunpack.c.l.b16 %v1215
    %v1284 = vunpack.c.l.b16 %v1216
    %v1285 = vunpack.c.l.b16 %v1217
    %v1286 = vunpack.c.l.b16 %v1218
    %v1287 = vunpack.c.l.b16 %v1219
    %v1288 = vunpack.c.l.b16 %v1220
    %v1289 = vunpack.c.l.b16 %v1221
    %v1290 = vunpack.c.l.b16 %v1222
    %v1291 = vunpack.c.l.b16 %v1223
    %v1292 = vunpack.c.l.b16 %v1224
    %v1293 = vunpack.c.l.b16 %v1225
    %v1294 = vunpack.c.l.b16 %v1226
    %v1295 = vunpack.c.l.b16 %v1227
    %v1296 = vunpack.c.l.b16 %v1228
    %v1297 = vunpack.c.l.b16 %v1229
    %v1298 = vunpack.c.l.b16 %v1230
    %v1299 = vunpack.c.l.b16 %v1231
    %v1300 = vunpack.c.l.b16 %v1232
    %v1301 = vunpack.c.l.b16 %v1233
    %v1302 = vunpack.c.l.b16 %v1234
    %v1303 = vunpack.c.l.b16 %v1235
    %v1304 = vpack.c.b16 %v1273, %v1272
    %v1305 = vpack.c.b16 %v1275, %v1274
    %v1306 = vpack.c.b16 %v1277, %v1276
    %v1307 = vpack.c.b16 %v1279, %v1278
    %v1308 = vpack.c.b16 %v1281, %v1280
    %v1309 = vpack.c.b16 %v1283, %v1282
    %v1310 = vpack.c.b16 %v1285, %v1284
    %v1311 = vpack.c.b16 %v1287, %v1286
    %v1312 = vpack.c.b16 %v1289, %v1288
    %v1313 = vpack.c.b16 %v1291, %v1290
    %v1314 = vpack.c.b16 %v1293, %v1292
    %v1315 = vpack.c.b16 %v1295, %v1294
    %v1316 = vpack.c.b16 %v1297, %v1296
    %v1317 = vpack.c.b16 %v1299, %v1298
    %v1318 = vpack.c.b16 %v1301, %v1300
    %v1319 = vpack.c.b16 %v1303, %v1302
    %1336 = vmatpush.bf16.msra.mxu0 %v1311
    %1337 = vmatpush.bf16.msra.mxu0 %v1310
    %1338 = vmatpush.bf16.msra.mxu0 %v1309
    %1339 = vmatpush.bf16.msra.mxu0 %v1308
    %1340 = vmatpush.bf16.msra.mxu0 %v1307
    %1341 = vmatpush.bf16.msra.mxu0 %v1306
    %1342 = vmatpush.bf16.msra.mxu0 %v1305
    %1343 = vmatpush.bf16.msra.mxu0 %v1304
    %1344 = vmatmul.bf16.gmra.mxu0 %v1202
    %v1345 = vpop.f32.mrf.mxu0
    %v1346 = vadd.f32 %v1238, %v1345
    %v1347 = vpop.f32.mrf.mxu0
    %1348 = vdwg.mxu0
    %1349 = vmatpush.bf16.msra.mxu0 %v1319
    %1350 = vmatpush.bf16.msra.mxu0 %v1318
    %1351 = vmatpush.bf16.msra.mxu0 %v1317
    %1352 = vmatpush.bf16.msra.mxu0 %v1316
    %1353 = vmatpush.bf16.msra.mxu0 %v1315
    %1354 = vmatpush.bf16.msra.mxu0 %v1314
    %1355 = vmatpush.bf16.msra.mxu0 %v1313
    %1356 = vmatpush.bf16.msra.mxu0 %v1312
    %1357 = vmatmul.bf16.gmra.mxu0 %v1203
    %v1358 = vpop.f32.mrf.mxu0
    %v1359 = vadd.f32 %v1346, %v1358
    %v1360 = vpop.f32.mrf.mxu0
    %1361 = vdwg.mxu0
    %v1362 = vmax.f32 %v1359, 0.0
    %v1363 = vpack.c.bf16 %v1362, %v1362
    %v1364 = vld [vmem:[%s9] sm:$0xff]
    %v1365 = vld [vmem:[%s9 + $0x8] sm:$0xff]
    %v1366 = vld [vmem:[%s9 + $0x10] sm:$0xff]
    %v1367 = vld [vmem:[%s9 + $0x18] sm:$0xff]
    %v1368 = vld [vmem:[%s9 + $0x20] sm:$0xff]
    %v1369 = vld [vmem:[%s9 + $0x28] sm:$0xff]
    %v1370 = vld [vmem:[%s9 + $0x30] sm:$0xff]
    %v1371 = vld [vmem:[%s9 + $0x38] sm:$0xff]
    %v1372 = vld [vmem:[%s9 + $0x40] sm:$0xff]
    %v1373 = vld [vmem:[%s9 + $0x48] sm:$0xff]
    %v1374 = vld [vmem:[%s9 + $0x50] sm:$0xff]
    %v1375 = vld [vmem:[%s9 + $0x58] sm:$0xff]
    %v1376 = vld [vmem:[%s9 + $0x60] sm:$0xff]
    %v1377 = vld [vmem:[%s9 + $0x68] sm:$0xff]
    %v1378 = vld [vmem:[%s9 + $0x70] sm:$0xff]
    %v1379 = vld [vmem:[%s9 + $0x78] sm:$0xff]
    %v1380 = vld [vmem:[%s9 + $0x80] sm:$0xff]
    %v1381 = vld [vmem:[%s9 + $0x88] sm:$0xff]
    %v1382 = vld [vmem:[%s9 + $0x90] sm:$0xff]
    %v1383 = vld [vmem:[%s9 + $0x98] sm:$0xff]
    %v1384 = vld [vmem:[%s9 + $0xa0] sm:$0xff]
    %v1385 = vld [vmem:[%s9 + $0xa8] sm:$0xff]
    %v1386 = vld [vmem:[%s9 + $0xb0] sm:$0xff]
    %v1387 = vld [vmem:[%s9 + $0xb8] sm:$0xff]
    %v1388 = vld [vmem:[%s9 + $0xc0] sm:$0xff]
    %v1389 = vld [vmem:[%s9 + $0xc8] sm:$0xff]
    %v1390 = vld [vmem:[%s9 + $0xd0] sm:$0xff]
    %v1391 = vld [vmem:[%s9 + $0xd8] sm:$0xff]
    %v1392 = vld [vmem:[%s9 + $0xe0] sm:$0xff]
    %v1393 = vld [vmem:[%s9 + $0xe8] sm:$0xff]
    %v1394 = vld [vmem:[%s9 + $0xf0] sm:$0xff]
    %v1395 = vld [vmem:[%s9 + $0xf8] sm:$0xff]
    %v1396 = vld [vmem:[%s1] sm:$0xf]
    %v1397 = vld [vmem:[%s1 + $0x4] sm:$0xf]
    %v1398 = vld [vmem:[%s1 + $0x8] sm:$0xf]
    %v1399 = vld [vmem:[%s1 + $0xc] sm:$0xf]
    %v1400 = vld [vmem:[%s1 + $0x10] sm:$0xf]
    %v1401 = vld [vmem:[%s1 + $0x14] sm:$0xf]
    %v1402 = vld [vmem:[%s1 + $0x18] sm:$0xf]
    %v1403 = vld [vmem:[%s1 + $0x1c] sm:$0xf]
    %v1404 = vld [vmem:[%s1 + $0x20] sm:$0xf]
    %v1405 = vld [vmem:[%s1 + $0x24] sm:$0xf]
    %v1406 = vld [vmem:[%s1 + $0x28] sm:$0xf]
    %v1407 = vld [vmem:[%s1 + $0x2c] sm:$0xf]
    %v1408 = vld [vmem:[%s1 + $0x30] sm:$0xf]
    %v1409 = vld [vmem:[%s1 + $0x34] sm:$0xf]
    %v1410 = vld [vmem:[%s1 + $0x38] sm:$0xf]
    %v1411 = vld [vmem:[%s1 + $0x3c] sm:$0xf]
    %v1412 = vld [vmem:[%s10] sm:$0xf]
    %v1413 = vld [vmem:[%s10 + $0x4] sm:$0xf]
    %v1414 = vld [vmem:[%s11] sm:$0x1]
    %v1416 = vperm.slane %v1414, 0
    %v1434 = vunpack.c.l.b16 %v1396
    %v1435 = vunpack.c.l.b16 %v1397
    %v1436 = vunpack.c.l.b16 %v1398
    %v1437 = vunpack.c.l.b16 %v1399
    %v1438 = vunpack.c.l.b16 %v1400
    %v1439 = vunpack.c.l.b16 %v1401
    %v1440 = vunpack.c.l.b16 %v1402
    %v1441 = vunpack.c.l.b16 %v1403
    %v1442 = vunpack.c.l.b16 %v1404
    %v1443 = vunpack.c.l.b16 %v1405
    %v1444 = vunpack.c.l.b16 %v1406
    %v1445 = vunpack.c.l.b16 %v1407
    %v1446 = vunpack.c.l.b16 %v1408
    %v1447 = vunpack.c.l.b16 %v1409
    %v1448 = vunpack.c.l.b16 %v1410
    %v1449 = vunpack.c.l.b16 %v1411
    %v1450 = vpack.c.b16 %v1435, %v1434
    %v1451 = vpack.c.b16 %v1437, %v1436
    %v1452 = vpack.c.b16 %v1439, %v1438
    %v1453 = vpack.c.b16 %v1441, %v1440
    %v1454 = vpack.c.b16 %v1443, %v1442
    %v1455 = vpack.c.b16 %v1445, %v1444
    %v1456 = vpack.c.b16 %v1447, %v1446
    %v1457 = vpack.c.b16 %v1449, %v1448
    %v1460 = vunpack.c.l.b16 %v1412
    %v1461 = vunpack.c.l.b16 %v1413
    %v1462 = vpack.c.b16 %v1461, %v1460
    %vm1464 = vcmask 130048
    %v1466 = vsel %vm1464, %v1450, 0
    %v1469 = vsel %vm1464, %v1451, 0
    %v1472 = vsel %vm1464, %v1452, 0
    %v1475 = vsel %vm1464, %v1453, 0
    %v1478 = vsel %vm1464, %v1454, 0
    %v1481 = vsel %vm1464, %v1455, 0
    %v1484 = vsel %vm1464, %v1456, 0
    %v1487 = vsel %vm1464, %v1457, 0
    %1489 = vmatpush.bf16.msra.mxu0 0
    %1490 = vmatpush.bf16.msra.mxu0 0
    %1491 = vmatpush.bf16.msra.mxu0 0
    %1492 = vmatpush.bf16.msra.mxu0 0
    %1493 = vmatpush.bf16.msra.mxu0 0
    %1494 = vmatpush.bf16.msra.mxu0 0
    %1495 = vmatpush.bf16.msra.mxu0 0
    %1496 = vmatpush.bf16.msra.mxu0 %v1462
    %1497 = vmatmul.bf16.gmra.mxu0 %v1466
    %v1498 = vpop.f32.mrf.mxu0
    %v1499 = vadd.f32 %v1416, %v1498
    %v1500 = vpop.f32.mrf.mxu0
    %v1501 = vadd.f32 %v1416, %v1500
    %1502 = vmatmul.bf16.gmra.mxu0 %v1469
    %v1503 = vpop.f32.mrf.mxu0
    %v1504 = vadd.f32 %v1416, %v1503
    %v1505 = vpop.f32.mrf.mxu0
    %v1506 = vadd.f32 %v1416, %v1505
    %1507 = vmatmul.bf16.gmra.mxu0 %v1472
    %v1508 = vpop.f32.mrf.mxu0
    %v1509 = vadd.f32 %v1416, %v1508
    %v1510 = vpop.f32.mrf.mxu0
    %v1511 = vadd.f32 %v1416, %v1510
    %1512 = vmatmul.bf16.gmra.mxu0 %v1475
    %v1513 = vpop.f32.mrf.mxu0
    %v1514 = vadd.f32 %v1416, %v1513
    %v1515 = vpop.f32.mrf.mxu0
    %v1516 = vadd.f32 %v1416, %v1515
    %1517 = vmatmul.bf16.gmra.mxu0 %v1478
    %v1518 = vpop.f32.mrf.mxu0
    %v1519 = vadd.f32 %v1416, %v1518
    %v1520 = vpop.f32.mrf.mxu0
    %v1521 = vadd.f32 %v1416, %v1520
    %1522 = vmatmul.bf16.gmra.mxu0 %v1481
    %v1523 = vpop.f32.mrf.mxu0
    %v1524 = vadd.f32 %v1416, %v1523
    %v1525 = vpop.f32.mrf.mxu0
    %v1526 = vadd.f32 %v1416, %v1525
    %1527 = vmatmul.bf16.gmra.mxu0 %v1484
    %v1528 = vpop.f32.mrf.mxu0
    %v1529 = vadd.f32 %v1416, %v1528
    %v1530 = vpop.f32.mrf.mxu0
    %v1531 = vadd.f32 %v1416, %v1530
    %1532 = vmatmul.bf16.gmra.mxu0 %v1487
    %v1533 = vpop.f32.mrf.mxu0
    %v1534 = vadd.f32 %v1416, %v1533
    %v1535 = vpop.f32.mrf.mxu0
    %v1536 = vadd.f32 %v1416, %v1535
    %1537 = vdwg.mxu0
    %v1538 = vmax.f32 %v1499, 0.0
    %v1539 = vmax.f32 %v1501, 0.0
    %v1540 = vmax.f32 %v1504, 0.0
    %v1541 = vmax.f32 %v1506, 0.0
    %v1542 = vmax.f32 %v1509, 0.0
    %v1543 = vmax.f32 %v1511, 0.0
    %v1544 = vmax.f32 %v1514, 0.0
    %v1545 = vmax.f32 %v1516, 0.0
    %v1546 = vmax.f32 %v1519, 0.0
    %v1547 = vmax.f32 %v1521, 0.0
    %v1548 = vmax.f32 %v1524, 0.0
    %v1549 = vmax.f32 %v1526, 0.0
    %v1550 = vmax.f32 %v1529, 0.0
    %v1551 = vmax.f32 %v1531, 0.0
    %v1552 = vmax.f32 %v1534, 0.0
    %v1553 = vmax.f32 %v1536, 0.0
    %v1554 = vpack.c.bf16 %v1539, %v1538
    %v1555 = vpack.c.bf16 %v1541, %v1540
    %v1556 = vpack.c.bf16 %v1543, %v1542
    %v1557 = vpack.c.bf16 %v1545, %v1544
    %v1558 = vpack.c.bf16 %v1547, %v1546
    %v1559 = vpack.c.bf16 %v1549, %v1548
    %v1560 = vpack.c.bf16 %v1551, %v1550
    %v1561 = vpack.c.bf16 %v1553, %v1552
    %v1562 = vld [vmem:[%s12] sm:$0xf]
    %v1563 = vld [vmem:[%s12 + $0x4] sm:$0xf]
    %v1564 = vld [vmem:[%s12 + $0x8] sm:$0xf]
    %v1565 = vld [vmem:[%s12 + $0xc] sm:$0xf]
    %v1566 = vld [vmem:[%s12 + $0x10] sm:$0xf]
    %v1567 = vld [vmem:[%s12 + $0x14] sm:$0xf]
    %v1568 = vld [vmem:[%s12 + $0x18] sm:$0xf]
    %v1569 = vld [vmem:[%s12 + $0x1c] sm:$0xf]
    %v1570 = vld [vmem:[%s13] sm:$0x1]
    %v1572 = vperm.slane %v1570, 0
    %v1582 = vunpack.c.l.b16 %v1562
    %v1583 = vunpack.c.l.b16 %v1563
    %v1584 = vunpack.c.l.b16 %v1564
    %v1585 = vunpack.c.l.b16 %v1565
    %v1586 = vunpack.c.l.b16 %v1566
    %v1587 = vunpack.c.l.b16 %v1567
    %v1588 = vunpack.c.l.b16 %v1568
    %v1589 = vunpack.c.l.b16 %v1569
    %v1590 = vpack.c.b16 %v1583, %v1582
    %v1591 = vpack.c.b16 %v1585, %v1584
    %v1592 = vpack.c.b16 %v1587, %v1586
    %v1593 = vpack.c.b16 %v1589, %v1588
    %v1599 = vsel %vm431, %v1554, 0
    %v1602 = vsel %vm431, %v1555, 0
    %v1605 = vsel %vm431, %v1556, 0
    %v1608 = vsel %vm431, %v1557, 0
    %v1611 = vsel %vm431, %v1558, 0
    %v1614 = vsel %vm431, %v1559, 0
    %v1617 = vsel %vm431, %v1560, 0
    %v1620 = vsel %vm431, %v1561, 0
    %1622 = vmatpush.bf16.msra.mxu0 0
    %1623 = vmatpush.bf16.msra.mxu0 0
    %1624 = vmatpush.bf16.msra.mxu0 0
    %1625 = vmatpush.bf16.msra.mxu0 0
    %1626 = vmatpush.bf16.msra.mxu0 %v1593
    %1627 = vmatpush.bf16.msra.mxu0 %v1592
    %1628 = vmatpush.bf16.msra.mxu0 %v1591
    %1629 = vmatpush.bf16.msra.mxu0 %v1590
    %1630 = vmatmul.bf16.gmra.mxu0 %v1599
    %v1631 = vpop.f32.mrf.mxu0
    %v1632 = vadd.f32 %v1572, %v1631
    %v1633 = vpop.f32.mrf.mxu0
    %v1634 = vadd.f32 %v1572, %v1633
    %1635 = vmatmul.bf16.gmra.mxu0 %v1602
    %v1636 = vpop.f32.mrf.mxu0
    %v1637 = vadd.f32 %v1572, %v1636
    %v1638 = vpop.f32.mrf.mxu0
    %v1639 = vadd.f32 %v1572, %v1638
    %1640 = vmatmul.bf16.gmra.mxu0 %v1605
    %v1641 = vpop.f32.mrf.mxu0
    %v1642 = vadd.f32 %v1572, %v1641
    %v1643 = vpop.f32.mrf.mxu0
    %v1644 = vadd.f32 %v1572, %v1643
    %1645 = vmatmul.bf16.gmra.mxu0 %v1608
    %v1646 = vpop.f32.mrf.mxu0
    %v1647 = vadd.f32 %v1572, %v1646
    %v1648 = vpop.f32.mrf.mxu0
    %v1649 = vadd.f32 %v1572, %v1648
    %1650 = vmatmul.bf16.gmra.mxu0 %v1611
    %v1651 = vpop.f32.mrf.mxu0
    %v1652 = vadd.f32 %v1572, %v1651
    %v1653 = vpop.f32.mrf.mxu0
    %v1654 = vadd.f32 %v1572, %v1653
    %1655 = vmatmul.bf16.gmra.mxu0 %v1614
    %v1656 = vpop.f32.mrf.mxu0
    %v1657 = vadd.f32 %v1572, %v1656
    %v1658 = vpop.f32.mrf.mxu0
    %v1659 = vadd.f32 %v1572, %v1658
    %1660 = vmatmul.bf16.gmra.mxu0 %v1617
    %v1661 = vpop.f32.mrf.mxu0
    %v1662 = vadd.f32 %v1572, %v1661
    %v1663 = vpop.f32.mrf.mxu0
    %v1664 = vadd.f32 %v1572, %v1663
    %1665 = vmatmul.bf16.gmra.mxu0 %v1620
    %v1666 = vpop.f32.mrf.mxu0
    %v1667 = vadd.f32 %v1572, %v1666
    %v1668 = vpop.f32.mrf.mxu0
    %v1669 = vadd.f32 %v1572, %v1668
    %1670 = vdwg.mxu0
    %v1671 = vmax.f32 %v1632, 0.0
    %v1672 = vmax.f32 %v1634, 0.0
    %v1673 = vmax.f32 %v1637, 0.0
    %v1674 = vmax.f32 %v1639, 0.0
    %v1675 = vmax.f32 %v1642, 0.0
    %v1676 = vmax.f32 %v1644, 0.0
    %v1677 = vmax.f32 %v1647, 0.0
    %v1678 = vmax.f32 %v1649, 0.0
    %v1679 = vmax.f32 %v1652, 0.0
    %v1680 = vmax.f32 %v1654, 0.0
    %v1681 = vmax.f32 %v1657, 0.0
    %v1682 = vmax.f32 %v1659, 0.0
    %v1683 = vmax.f32 %v1662, 0.0
    %v1684 = vmax.f32 %v1664, 0.0
    %v1685 = vmax.f32 %v1667, 0.0
    %v1686 = vmax.f32 %v1669, 0.0
    %v1687 = vpack.c.bf16 %v1672, %v1671
    %v1688 = vpack.c.bf16 %v1674, %v1673
    %v1689 = vpack.c.bf16 %v1676, %v1675
    %v1690 = vpack.c.bf16 %v1678, %v1677
    %v1691 = vpack.c.bf16 %v1680, %v1679
    %v1692 = vpack.c.bf16 %v1682, %v1681
    %v1693 = vpack.c.bf16 %v1684, %v1683
    %v1694 = vpack.c.bf16 %v1686, %v1685
    %v1695 = vld [vmem:[%s14] sm:$0xff]
    %v1696 = vld [vmem:[%s14 + $0x8] sm:$0xff]
    %v1697 = vld [vmem:[%s14 + $0x10] sm:$0xff]
    %v1698 = vld [vmem:[%s14 + $0x18] sm:$0xff]
    %v1699 = vld [vmem:[%s14 + $0x20] sm:$0xff]
    %v1700 = vld [vmem:[%s14 + $0x28] sm:$0xff]
    %v1701 = vld [vmem:[%s14 + $0x30] sm:$0xff]
    %v1702 = vld [vmem:[%s14 + $0x38] sm:$0xff]
    %v1703 = vld [vmem:[%s14 + $0x40] sm:$0xff]
    %v1704 = vld [vmem:[%s14 + $0x48] sm:$0xff]
    %v1705 = vld [vmem:[%s14 + $0x50] sm:$0xff]
    %v1706 = vld [vmem:[%s14 + $0x58] sm:$0xff]
    %v1707 = vld [vmem:[%s14 + $0x60] sm:$0xff]
    %v1708 = vld [vmem:[%s14 + $0x68] sm:$0xff]
    %v1709 = vld [vmem:[%s14 + $0x70] sm:$0xff]
    %v1710 = vld [vmem:[%s14 + $0x78] sm:$0xff]
    %v1711 = vld [vmem:[%s14 + $0x80] sm:$0xff]
    %v1712 = vld [vmem:[%s14 + $0x88] sm:$0xff]
    %v1713 = vld [vmem:[%s14 + $0x90] sm:$0xff]
    %v1714 = vld [vmem:[%s14 + $0x98] sm:$0xff]
    %v1715 = vld [vmem:[%s14 + $0xa0] sm:$0xff]
    %v1716 = vld [vmem:[%s14 + $0xa8] sm:$0xff]
    %v1717 = vld [vmem:[%s14 + $0xb0] sm:$0xff]
    %v1718 = vld [vmem:[%s14 + $0xb8] sm:$0xff]
    %v1719 = vld [vmem:[%s14 + $0xc0] sm:$0xff]
    %v1720 = vld [vmem:[%s14 + $0xc8] sm:$0xff]
    %v1721 = vld [vmem:[%s14 + $0xd0] sm:$0xff]
    %v1722 = vld [vmem:[%s14 + $0xd8] sm:$0xff]
    %v1723 = vld [vmem:[%s14 + $0xe0] sm:$0xff]
    %v1724 = vld [vmem:[%s14 + $0xe8] sm:$0xff]
    %v1725 = vld [vmem:[%s14 + $0xf0] sm:$0xff]
    %v1726 = vld [vmem:[%s14 + $0xf8] sm:$0xff]
    %v1727 = vld [vmem:[%s14 + $0x100] sm:$0xff]
    %v1728 = vld [vmem:[%s14 + $0x108] sm:$0xff]
    %v1729 = vld [vmem:[%s14 + $0x110] sm:$0xff]
    %v1730 = vld [vmem:[%s14 + $0x118] sm:$0xff]
    %v1731 = vld [vmem:[%s14 + $0x120] sm:$0xff]
    %v1732 = vld [vmem:[%s14 + $0x128] sm:$0xff]
    %v1733 = vld [vmem:[%s14 + $0x130] sm:$0xff]
    %v1734 = vld [vmem:[%s14 + $0x138] sm:$0xff]
    %v1735 = vld [vmem:[%s14 + $0x140] sm:$0xff]
    %v1736 = vld [vmem:[%s14 + $0x148] sm:$0xff]
    %v1737 = vld [vmem:[%s14 + $0x150] sm:$0xff]
    %v1738 = vld [vmem:[%s14 + $0x158] sm:$0xff]
    %v1739 = vld [vmem:[%s14 + $0x160] sm:$0xff]
    %v1740 = vld [vmem:[%s14 + $0x168] sm:$0xff]
    %v1741 = vld [vmem:[%s14 + $0x170] sm:$0xff]
    %v1742 = vld [vmem:[%s14 + $0x178] sm:$0xff]
    %v1743 = vld [vmem:[%s14 + $0x180] sm:$0xff]
    %v1744 = vld [vmem:[%s14 + $0x188] sm:$0xff]
    %v1745 = vld [vmem:[%s14 + $0x190] sm:$0xff]
    %v1746 = vld [vmem:[%s14 + $0x198] sm:$0xff]
    %v1747 = vld [vmem:[%s14 + $0x1a0] sm:$0xff]
    %v1748 = vld [vmem:[%s14 + $0x1a8] sm:$0xff]
    %v1749 = vld [vmem:[%s14 + $0x1b0] sm:$0xff]
    %v1750 = vld [vmem:[%s14 + $0x1b8] sm:$0xff]
    %v1751 = vld [vmem:[%s14 + $0x1c0] sm:$0xff]
    %v1752 = vld [vmem:[%s14 + $0x1c8] sm:$0xff]
    %v1753 = vld [vmem:[%s14 + $0x1d0] sm:$0xff]
    %v1754 = vld [vmem:[%s14 + $0x1d8] sm:$0xff]
    %v1755 = vld [vmem:[%s14 + $0x1e0] sm:$0xff]
    %v1756 = vld [vmem:[%s14 + $0x1e8] sm:$0xff]
    %v1757 = vld [vmem:[%s14 + $0x1f0] sm:$0xff]
    %v1758 = vld [vmem:[%s14 + $0x1f8] sm:$0xff]
    %v1823 = vunpack.c.l.b16 %v1695
    %v1824 = vunpack.c.h.b16 %v1695
    %v1825 = vunpack.c.l.b16 %v1696
    %v1826 = vunpack.c.h.b16 %v1696
    %v1827 = vunpack.c.l.b16 %v1697
    %v1828 = vunpack.c.h.b16 %v1697
    %v1829 = vunpack.c.l.b16 %v1698
    %v1830 = vunpack.c.h.b16 %v1698
    %v1831 = vunpack.c.l.b16 %v1699
    %v1832 = vunpack.c.h.b16 %v1699
    %v1833 = vunpack.c.l.b16 %v1700
    %v1834 = vunpack.c.h.b16 %v1700
    %v1835 = vunpack.c.l.b16 %v1701
    %v1836 = vunpack.c.h.b16 %v1701
    %v1837 = vunpack.c.l.b16 %v1702
    %v1838 = vunpack.c.h.b16 %v1702
    %v1839 = vunpack.c.l.b16 %v1703
    %v1840 = vunpack.c.h.b16 %v1703
    %v1841 = vunpack.c.l.b16 %v1704
    %v1842 = vunpack.c.h.b16 %v1704
    %v1843 = vunpack.c.l.b16 %v1705
    %v1844 = vunpack.c.h.b16 %v1705
    %v1845 = vunpack.c.l.b16 %v1706
    %v1846 = vunpack.c.h.b16 %v1706
    %v1847 = vunpack.c.l.b16 %v1707
    %v1848 = vunpack.c.h.b16 %v1707
    %v1849 = vunpack.c.l.b16 %v1708
    %v1850 = vunpack.c.h.b16 %v1708
    %v1851 = vunpack.c.l.b16 %v1709
    %v1852 = vunpack.c.h.b16 %v1709
    %v1853 = vunpack.c.l.b16 %v1710
    %v1854 = vunpack.c.h.b16 %v1710
    %v1855 = vunpack.c.l.b16 %v1711
    %v1856 = vunpack.c.h.b16 %v1711
    %v1857 = vunpack.c.l.b16 %v1712
    %v1858 = vunpack.c.h.b16 %v1712
    %v1859 = vunpack.c.l.b16 %v1713
    %v1860 = vunpack.c.h.b16 %v1713
    %v1861 = vunpack.c.l.b16 %v1714
    %v1862 = vunpack.c.h.b16 %v1714
    %v1863 = vunpack.c.l.b16 %v1715
    %v1864 = vunpack.c.h.b16 %v1715
    %v1865 = vunpack.c.l.b16 %v1716
    %v1866 = vunpack.c.h.b16 %v1716
    %v1867 = vunpack.c.l.b16 %v1717
    %v1868 = vunpack.c.h.b16 %v1717
    %v1869 = vunpack.c.l.b16 %v1718
    %v1870 = vunpack.c.h.b16 %v1718
    %v1871 = vunpack.c.l.b16 %v1719
    %v1872 = vunpack.c.h.b16 %v1719
    %v1873 = vunpack.c.l.b16 %v1720
    %v1874 = vunpack.c.h.b16 %v1720
    %v1875 = vunpack.c.l.b16 %v1721
    %v1876 = vunpack.c.h.b16 %v1721
    %v1877 = vunpack.c.l.b16 %v1722
    %v1878 = vunpack.c.h.b16 %v1722
    %v1879 = vunpack.c.l.b16 %v1723
    %v1880 = vunpack.c.h.b16 %v1723
    %v1881 = vunpack.c.l.b16 %v1724
    %v1882 = vunpack.c.h.b16 %v1724
    %v1883 = vunpack.c.l.b16 %v1725
    %v1884 = vunpack.c.h.b16 %v1725
    %v1885 = vunpack.c.l.b16 %v1726
    %v1886 = vunpack.c.h.b16 %v1726
    %v1887 = vunpack.c.l.b16 %v1727
    %v1888 = vunpack.c.h.b16 %v1727
    %v1889 = vunpack.c.l.b16 %v1728
    %v1890 = vunpack.c.h.b16 %v1728
    %v1891 = vunpack.c.l.b16 %v1729
    %v1892 = vunpack.c.h.b16 %v1729
    %v1893 = vunpack.c.l.b16 %v1730
    %v1894 = vunpack.c.h.b16 %v1730
    %v1895 = vunpack.c.l.b16 %v1731
    %v1896 = vunpack.c.h.b16 %v1731
    %v1897 = vunpack.c.l.b16 %v1732
    %v1898 = vunpack.c.h.b16 %v1732
    %v1899 = vunpack.c.l.b16 %v1733
    %v1900 = vunpack.c.h.b16 %v1733
    %v1901 = vunpack.c.l.b16 %v1734
    %v1902 = vunpack.c.h.b16 %v1734
    %v1903 = vunpack.c.l.b16 %v1735
    %v1904 = vunpack.c.h.b16 %v1735
    %v1905 = vunpack.c.l.b16 %v1736
    %v1906 = vunpack.c.h.b16 %v1736
    %v1907 = vunpack.c.l.b16 %v1737
    %v1908 = vunpack.c.h.b16 %v1737
    %v1909 = vunpack.c.l.b16 %v1738
    %v1910 = vunpack.c.h.b16 %v1738
    %v1911 = vunpack.c.l.b16 %v1739
    %v1912 = vunpack.c.h.b16 %v1739
    %v1913 = vunpack.c.l.b16 %v1740
    %v1914 = vunpack.c.h.b16 %v1740
    %v1915 = vunpack.c.l.b16 %v1741
    %v1916 = vunpack.c.h.b16 %v1741
    %v1917 = vunpack.c.l.b16 %v1742
    %v1918 = vunpack.c.h.b16 %v1742
    %v1919 = vunpack.c.l.b16 %v1743
    %v1920 = vunpack.c.h.b16 %v1743
    %v1921 = vunpack.c.l.b16 %v1744
    %v1922 = vunpack.c.h.b16 %v1744
    %v1923 = vunpack.c.l.b16 %v1745
    %v1924 = vunpack.c.h.b16 %v1745
    %v1925 = vunpack.c.l.b16 %v1746
    %v1926 = vunpack.c.h.b16 %v1746
    %v1927 = vunpack.c.l.b16 %v1747
    %v1928 = vunpack.c.h.b16 %v1747
    %v1929 = vunpack.c.l.b16 %v1748
    %v1930 = vunpack.c.h.b16 %v1748
    %v1931 = vunpack.c.l.b16 %v1749
    %v1932 = vunpack.c.h.b16 %v1749
    %v1933 = vunpack.c.l.b16 %v1750
    %v1934 = vunpack.c.h.b16 %v1750
    %v1935 = vunpack.c.l.b16 %v1751
    %v1936 = vunpack.c.h.b16 %v1751
    %v1937 = vunpack.c.l.b16 %v1752
    %v1938 = vunpack.c.h.b16 %v1752
    %v1939 = vunpack.c.l.b16 %v1753
    %v1940 = vunpack.c.h.b16 %v1753
    %v1941 = vunpack.c.l.b16 %v1754
    %v1942 = vunpack.c.h.b16 %v1754
    %v1943 = vunpack.c.l.b16 %v1755
    %v1944 = vunpack.c.h.b16 %v1755
    %v1945 = vunpack.c.l.b16 %v1756
    %v1946 = vunpack.c.h.b16 %v1756
    %v1947 = vunpack.c.l.b16 %v1757
    %v1948 = vunpack.c.h.b16 %v1757
    %v1949 = vunpack.c.l.b16 %v1758
    %v1950 = vunpack.c.h.b16 %v1758
    %v1951 = vpack.c.b16 %v1831, %v1823
    %v1952 = vpack.c.b16 %v1832, %v1824
    %v1953 = vpack.c.b16 %v1833, %v1825
    %v1954 = vpack.c.b16 %v1834, %v1826
    %v1955 = vpack.c.b16 %v1835, %v1827
    %v1956 = vpack.c.b16 %v1836, %v1828
    %v1957 = vpack.c.b16 %v1837, %v1829
    %v1958 = vpack.c.b16 %v1838, %v1830
    %v1959 = vpack.c.b16 %v1847, %v1839
    %v1960 = vpack.c.b16 %v1848, %v1840
    %v1961 = vpack.c.b16 %v1849, %v1841
    %v1962 = vpack.c.b16 %v1850, %v1842
    %v1963 = vpack.c.b16 %v1851, %v1843
    %v1964 = vpack.c.b16 %v1852, %v1844
    %v1965 = vpack.c.b16 %v1853, %v1845
    %v1966 = vpack.c.b16 %v1854, %v1846
    %v1967 = vpack.c.b16 %v1863, %v1855
    %v1968 = vpack.c.b16 %v1864, %v1856
    %v1969 = vpack.c.b16 %v1865, %v1857
    %v1970 = vpack.c.b16 %v1866, %v1858
    %v1971 = vpack.c.b16 %v1867, %v1859
    %v1972 = vpack.c.b16 %v1868, %v1860
    %v1973 = vpack.c.b16 %v1869, %v1861
    %v1974 = vpack.c.b16 %v1870, %v1862
    %v1975 = vpack.c.b16 %v1879, %v1871
    %v1976 = vpack.c.b16 %v1880, %v1872
    %v1977 = vpack.c.b16 %v1881, %v1873
    %v1978 = vpack.c.b16 %v1882, %v1874
    %v1979 = vpack.c.b16 %v1883, %v1875
    %v1980 = vpack.c.b16 %v1884, %v1876
    %v1981 = vpack.c.b16 %v1885, %v1877
    %v1982 = vpack.c.b16 %v1886, %v1878
    %v1983 = vpack.c.b16 %v1895, %v1887
    %v1984 = vpack.c.b16 %v1896, %v1888
    %v1985 = vpack.c.b16 %v1897, %v1889
    %v1986 = vpack.c.b16 %v1898, %v1890
    %v1987 = vpack.c.b16 %v1899, %v1891
    %v1988 = vpack.c.b16 %v1900, %v1892
    %v1989 = vpack.c.b16 %v1901, %v1893
    %v1990 = vpack.c.b16 %v1902, %v1894
    %v1991 = vpack.c.b16 %v1911, %v1903
    %v1992 = vpack.c.b16 %v1912, %v1904
    %v1993 = vpack.c.b16 %v1913, %v1905
    %v1994 = vpack.c.b16 %v1914, %v1906
    %v1995 = vpack.c.b16 %v1915, %v1907
    %v1996 = vpack.c.b16 %v1916, %v1908
    %v1997 = vpack.c.b16 %v1917, %v1909
    %v1998 = vpack.c.b16 %v1918, %v1910
    %v1999 = vpack.c.b16 %v1927, %v1919
    %v2000 = vpack.c.b16 %v1928, %v1920
    %v2001 = vpack.c.b16 %v1929, %v1921
    %v2002 = vpack.c.b16 %v1930, %v1922
    %v2003 = vpack.c.b16 %v1931, %v1923
    %v2004 = vpack.c.b16 %v1932, %v1924
    %v2005 = vpack.c.b16 %v1933, %v1925
    %v2006 = vpack.c.b16 %v1934, %v1926
    %v2007 = vpack.c.b16 %v1943, %v1935
    %v2008 = vpack.c.b16 %v1944, %v1936
    %v2009 = vpack.c.b16 %v1945, %v1937
    %v2010 = vpack.c.b16 %v1946, %v1938
    %v2011 = vpack.c.b16 %v1947, %v1939
    %v2012 = vpack.c.b16 %v1948, %v1940
    %v2013 = vpack.c.b16 %v1949, %v1941
    %v2014 = vpack.c.b16 %v1950, %v1942
    %2079 = vmatpush.bf16.msra.mxu0 %v2007
    %2080 = vmatpush.bf16.msra.mxu0 %v1999
    %2081 = vmatpush.bf16.msra.mxu0 %v1991
    %2082 = vmatpush.bf16.msra.mxu0 %v1983
    %2083 = vmatpush.bf16.msra.mxu0 %v1975
    %2084 = vmatpush.bf16.msra.mxu0 %v1967
    %2085 = vmatpush.bf16.msra.mxu0 %v1959
    %2086 = vmatpush.bf16.msra.mxu0 %v1951
    %2087 = vmatmul.bf16.gmra.mxu0 %v1687
    %v2088 = vpop.f32.mrf.mxu0
    %v2089 = vadd.f32 0.0, %v2088
    %v2090 = vpop.f32.mrf.mxu0
    %v2091 = vadd.f32 0.0, %v2090
    %2092 = vmatmul.bf16.gmra.mxu0 %v1688
    %v2093 = vpop.f32.mrf.mxu0
    %v2094 = vadd.f32 0.0, %v2093
    %v2095 = vpop.f32.mrf.mxu0
    %v2096 = vadd.f32 0.0, %v2095
    %2097 = vmatmul.bf16.gmra.mxu0 %v1689
    %v2098 = vpop.f32.mrf.mxu0
    %v2099 = vadd.f32 0.0, %v2098
    %v2100 = vpop.f32.mrf.mxu0
    %v2101 = vadd.f32 0.0, %v2100
    %2102 = vmatmul.bf16.gmra.mxu0 %v1690
    %v2103 = vpop.f32.mrf.mxu0
    %v2104 = vadd.f32 0.0, %v2103
    %v2105 = vpop.f32.mrf.mxu0
    %v2106 = vadd.f32 0.0, %v2105
    %2107 = vmatmul.bf16.gmra.mxu0 %v1691
    %v2108 = vpop.f32.mrf.mxu0
    %v2109 = vadd.f32 0.0, %v2108
    %v2110 = vpop.f32.mrf.mxu0
    %v2111 = vadd.f32 0.0, %v2110
    %2112 = vmatmul.bf16.gmra.mxu0 %v1692
    %v2113 = vpop.f32.mrf.mxu0
    %v2114 = vadd.f32 0.0, %v2113
    %v2115 = vpop.f32.mrf.mxu0
    %v2116 = vadd.f32 0.0, %v2115
    %2117 = vmatmul.bf16.gmra.mxu0 %v1693
    %v2118 = vpop.f32.mrf.mxu0
    %v2119 = vadd.f32 0.0, %v2118
    %v2120 = vpop.f32.mrf.mxu0
    %v2121 = vadd.f32 0.0, %v2120
    %2122 = vmatmul.bf16.gmra.mxu0 %v1694
    %v2123 = vpop.f32.mrf.mxu0
    %v2124 = vadd.f32 0.0, %v2123
    %v2125 = vpop.f32.mrf.mxu0
    %v2126 = vadd.f32 0.0, %v2125
    %2127 = vdwg.mxu0
    %2128 = vmatpush.bf16.msra.mxu0 %v2008
    %2129 = vmatpush.bf16.msra.mxu0 %v2000
    %2130 = vmatpush.bf16.msra.mxu0 %v1992
    %2131 = vmatpush.bf16.msra.mxu0 %v1984
    %2132 = vmatpush.bf16.msra.mxu0 %v1976
    %2133 = vmatpush.bf16.msra.mxu0 %v1968
    %2134 = vmatpush.bf16.msra.mxu0 %v1960
    %2135 = vmatpush.bf16.msra.mxu0 %v1952
    %2136 = vmatmul.bf16.gmra.mxu0 %v1687
    %v2137 = vpop.f32.mrf.mxu0
    %v2138 = vadd.f32 0.0, %v2137
    %v2139 = vpop.f32.mrf.mxu0
    %v2140 = vadd.f32 0.0, %v2139
    %2141 = vmatmul.bf16.gmra.mxu0 %v1688
    %v2142 = vpop.f32.mrf.mxu0
    %v2143 = vadd.f32 0.0, %v2142
    %v2144 = vpop.f32.mrf.mxu0
    %v2145 = vadd.f32 0.0, %v2144
    %2146 = vmatmul.bf16.gmra.mxu0 %v1689
    %v2147 = vpop.f32.mrf.mxu0
    %v2148 = vadd.f32 0.0, %v2147
    %v2149 = vpop.f32.mrf.mxu0
    %v2150 = vadd.f32 0.0, %v2149
    %2151 = vmatmul.bf16.gmra.mxu0 %v1690
    %v2152 = vpop.f32.mrf.mxu0
    %v2153 = vadd.f32 0.0, %v2152
    %v2154 = vpop.f32.mrf.mxu0
    %v2155 = vadd.f32 0.0, %v2154
    %2156 = vmatmul.bf16.gmra.mxu0 %v1691
    %v2157 = vpop.f32.mrf.mxu0
    %v2158 = vadd.f32 0.0, %v2157
    %v2159 = vpop.f32.mrf.mxu0
    %v2160 = vadd.f32 0.0, %v2159
    %2161 = vmatmul.bf16.gmra.mxu0 %v1692
    %v2162 = vpop.f32.mrf.mxu0
    %v2163 = vadd.f32 0.0, %v2162
    %v2164 = vpop.f32.mrf.mxu0
    %v2165 = vadd.f32 0.0, %v2164
    %2166 = vmatmul.bf16.gmra.mxu0 %v1693
    %v2167 = vpop.f32.mrf.mxu0
    %v2168 = vadd.f32 0.0, %v2167
    %v2169 = vpop.f32.mrf.mxu0
    %v2170 = vadd.f32 0.0, %v2169
    %2171 = vmatmul.bf16.gmra.mxu0 %v1694
    %v2172 = vpop.f32.mrf.mxu0
    %v2173 = vadd.f32 0.0, %v2172
    %v2174 = vpop.f32.mrf.mxu0
    %v2175 = vadd.f32 0.0, %v2174
    %2176 = vdwg.mxu0
    %2177 = vmatpush.bf16.msra.mxu0 %v2009
    %2178 = vmatpush.bf16.msra.mxu0 %v2001
    %2179 = vmatpush.bf16.msra.mxu0 %v1993
    %2180 = vmatpush.bf16.msra.mxu0 %v1985
    %2181 = vmatpush.bf16.msra.mxu0 %v1977
    %2182 = vmatpush.bf16.msra.mxu0 %v1969
    %2183 = vmatpush.bf16.msra.mxu0 %v1961
    %2184 = vmatpush.bf16.msra.mxu0 %v1953
    %2185 = vmatmul.bf16.gmra.mxu0 %v1687
    %v2186 = vpop.f32.mrf.mxu0
    %v2187 = vadd.f32 0.0, %v2186
    %v2188 = vpop.f32.mrf.mxu0
    %v2189 = vadd.f32 0.0, %v2188
    %2190 = vmatmul.bf16.gmra.mxu0 %v1688
    %v2191 = vpop.f32.mrf.mxu0
    %v2192 = vadd.f32 0.0, %v2191
    %v2193 = vpop.f32.mrf.mxu0
    %v2194 = vadd.f32 0.0, %v2193
    %2195 = vmatmul.bf16.gmra.mxu0 %v1689
    %v2196 = vpop.f32.mrf.mxu0
    %v2197 = vadd.f32 0.0, %v2196
    %v2198 = vpop.f32.mrf.mxu0
    %v2199 = vadd.f32 0.0, %v2198
    %2200 = vmatmul.bf16.gmra.mxu0 %v1690
    %v2201 = vpop.f32.mrf.mxu0
    %v2202 = vadd.f32 0.0, %v2201
    %v2203 = vpop.f32.mrf.mxu0
    %v2204 = vadd.f32 0.0, %v2203
    %2205 = vmatmul.bf16.gmra.mxu0 %v1691
    %v2206 = vpop.f32.mrf.mxu0
    %v2207 = vadd.f32 0.0, %v2206
    %v2208 = vpop.f32.mrf.mxu0
    %v2209 = vadd.f32 0.0, %v2208
    %2210 = vmatmul.bf16.gmra.mxu0 %v1692
    %v2211 = vpop.f32.mrf.mxu0
    %v2212 = vadd.f32 0.0, %v2211
    %v2213 = vpop.f32.mrf.mxu0
    %v2214 = vadd.f32 0.0, %v2213
    %2215 = vmatmul.bf16.gmra.mxu0 %v1693
    %v2216 = vpop.f32.mrf.mxu0
    %v2217 = vadd.f32 0.0, %v2216
    %v2218 = vpop.f32.mrf.mxu0
    %v2219 = vadd.f32 0.0, %v2218
    %2220 = vmatmul.bf16.gmra.mxu0 %v1694
    %v2221 = vpop.f32.mrf.mxu0
    %v2222 = vadd.f32 0.0, %v2221
    %v2223 = vpop.f32.mrf.mxu0
    %v2224 = vadd.f32 0.0, %v2223
    %2225 = vdwg.mxu0
    %2226 = vmatpush.bf16.msra.mxu0 %v2010
    %2227 = vmatpush.bf16.msra.mxu0 %v2002
    %2228 = vmatpush.bf16.msra.mxu0 %v1994
    %2229 = vmatpush.bf16.msra.mxu0 %v1986
    %2230 = vmatpush.bf16.msra.mxu0 %v1978
    %2231 = vmatpush.bf16.msra.mxu0 %v1970
    %2232 = vmatpush.bf16.msra.mxu0 %v1962
    %2233 = vmatpush.bf16.msra.mxu0 %v1954
    %2234 = vmatmul.bf16.gmra.mxu0 %v1687
    %v2235 = vpop.f32.mrf.mxu0
    %v2236 = vadd.f32 0.0, %v2235
    %v2237 = vpop.f32.mrf.mxu0
    %v2238 = vadd.f32 0.0, %v2237
    %2239 = vmatmul.bf16.gmra.mxu0 %v1688
    %v2240 = vpop.f32.mrf.mxu0
    %v2241 = vadd.f32 0.0, %v2240
    %v2242 = vpop.f32.mrf.mxu0
    %v2243 = vadd.f32 0.0, %v2242
    %2244 = vmatmul.bf16.gmra.mxu0 %v1689
    %v2245 = vpop.f32.mrf.mxu0
    %v2246 = vadd.f32 0.0, %v2245
    %v2247 = vpop.f32.mrf.mxu0
    %v2248 = vadd.f32 0.0, %v2247
    %2249 = vmatmul.bf16.gmra.mxu0 %v1690
    %v2250 = vpop.f32.mrf.mxu0
    %v2251 = vadd.f32 0.0, %v2250
    %v2252 = vpop.f32.mrf.mxu0
    %v2253 = vadd.f32 0.0, %v2252
    %2254 = vmatmul.bf16.gmra.mxu0 %v1691
    %v2255 = vpop.f32.mrf.mxu0
    %v2256 = vadd.f32 0.0, %v2255
    %v2257 = vpop.f32.mrf.mxu0
    %v2258 = vadd.f32 0.0, %v2257
    %2259 = vmatmul.bf16.gmra.mxu0 %v1692
    %v2260 = vpop.f32.mrf.mxu0
    %v2261 = vadd.f32 0.0, %v2260
    %v2262 = vpop.f32.mrf.mxu0
    %v2263 = vadd.f32 0.0, %v2262
    %2264 = vmatmul.bf16.gmra.mxu0 %v1693
    %v2265 = vpop.f32.mrf.mxu0
    %v2266 = vadd.f32 0.0, %v2265
    %v2267 = vpop.f32.mrf.mxu0
    %v2268 = vadd.f32 0.0, %v2267
    %2269 = vmatmul.bf16.gmra.mxu0 %v1694
    %v2270 = vpop.f32.mrf.mxu0
    %v2271 = vadd.f32 0.0, %v2270
    %v2272 = vpop.f32.mrf.mxu0
    %v2273 = vadd.f32 0.0, %v2272
    %2274 = vdwg.mxu0
    %2275 = vmatpush.bf16.msra.mxu0 %v2011
    %2276 = vmatpush.bf16.msra.mxu0 %v2003
    %2277 = vmatpush.bf16.msra.mxu0 %v1995
    %2278 = vmatpush.bf16.msra.mxu0 %v1987
    %2279 = vmatpush.bf16.msra.mxu0 %v1979
    %2280 = vmatpush.bf16.msra.mxu0 %v1971
    %2281 = vmatpush.bf16.msra.mxu0 %v1963
    %2282 = vmatpush.bf16.msra.mxu0 %v1955
    %2283 = vmatmul.bf16.gmra.mxu0 %v1687
    %v2284 = vpop.f32.mrf.mxu0
    %v2285 = vadd.f32 0.0, %v2284
    %v2286 = vpop.f32.mrf.mxu0
    %v2287 = vadd.f32 0.0, %v2286
    %2288 = vmatmul.bf16.gmra.mxu0 %v1688
    %v2289 = vpop.f32.mrf.mxu0
    %v2290 = vadd.f32 0.0, %v2289
    %v2291 = vpop.f32.mrf.mxu0
    %v2292 = vadd.f32 0.0, %v2291
    %2293 = vmatmul.bf16.gmra.mxu0 %v1689
    %v2294 = vpop.f32.mrf.mxu0
    %v2295 = vadd.f32 0.0, %v2294
    %v2296 = vpop.f32.mrf.mxu0
    %v2297 = vadd.f32 0.0, %v2296
    %2298 = vmatmul.bf16.gmra.mxu0 %v1690
    %v2299 = vpop.f32.mrf.mxu0
    %v2300 = vadd.f32 0.0, %v2299
    %v2301 = vpop.f32.mrf.mxu0
    %v2302 = vadd.f32 0.0, %v2301
    %2303 = vmatmul.bf16.gmra.mxu0 %v1691
    %v2304 = vpop.f32.mrf.mxu0
    %v2305 = vadd.f32 0.0, %v2304
    %v2306 = vpop.f32.mrf.mxu0
    %v2307 = vadd.f32 0.0, %v2306
    %2308 = vmatmul.bf16.gmra.mxu0 %v1692
    %v2309 = vpop.f32.mrf.mxu0
    %v2310 = vadd.f32 0.0, %v2309
    %v2311 = vpop.f32.mrf.mxu0
    %v2312 = vadd.f32 0.0, %v2311
    %2313 = vmatmul.bf16.gmra.mxu0 %v1693
    %v2314 = vpop.f32.mrf.mxu0
    %v2315 = vadd.f32 0.0, %v2314
    %v2316 = vpop.f32.mrf.mxu0
    %v2317 = vadd.f32 0.0, %v2316
    %2318 = vmatmul.bf16.gmra.mxu0 %v1694
    %v2319 = vpop.f32.mrf.mxu0
    %v2320 = vadd.f32 0.0, %v2319
    %v2321 = vpop.f32.mrf.mxu0
    %v2322 = vadd.f32 0.0, %v2321
    %2323 = vdwg.mxu0
    %2324 = vmatpush.bf16.msra.mxu0 %v2012
    %2325 = vmatpush.bf16.msra.mxu0 %v2004
    %2326 = vmatpush.bf16.msra.mxu0 %v1996
    %2327 = vmatpush.bf16.msra.mxu0 %v1988
    %2328 = vmatpush.bf16.msra.mxu0 %v1980
    %2329 = vmatpush.bf16.msra.mxu0 %v1972
    %2330 = vmatpush.bf16.msra.mxu0 %v1964
    %2331 = vmatpush.bf16.msra.mxu0 %v1956
    %2332 = vmatmul.bf16.gmra.mxu0 %v1687
    %v2333 = vpop.f32.mrf.mxu0
    %v2334 = vadd.f32 0.0, %v2333
    %v2335 = vpop.f32.mrf.mxu0
    %v2336 = vadd.f32 0.0, %v2335
    %2337 = vmatmul.bf16.gmra.mxu0 %v1688
    %v2338 = vpop.f32.mrf.mxu0
    %v2339 = vadd.f32 0.0, %v2338
    %v2340 = vpop.f32.mrf.mxu0
    %v2341 = vadd.f32 0.0, %v2340
    %2342 = vmatmul.bf16.gmra.mxu0 %v1689
    %v2343 = vpop.f32.mrf.mxu0
    %v2344 = vadd.f32 0.0, %v2343
    %v2345 = vpop.f32.mrf.mxu0
    %v2346 = vadd.f32 0.0, %v2345
    %2347 = vmatmul.bf16.gmra.mxu0 %v1690
    %v2348 = vpop.f32.mrf.mxu0
    %v2349 = vadd.f32 0.0, %v2348
    %v2350 = vpop.f32.mrf.mxu0
    %v2351 = vadd.f32 0.0, %v2350
    %2352 = vmatmul.bf16.gmra.mxu0 %v1691
    %v2353 = vpop.f32.mrf.mxu0
    %v2354 = vadd.f32 0.0, %v2353
    %v2355 = vpop.f32.mrf.mxu0
    %v2356 = vadd.f32 0.0, %v2355
    %2357 = vmatmul.bf16.gmra.mxu0 %v1692
    %v2358 = vpop.f32.mrf.mxu0
    %v2359 = vadd.f32 0.0, %v2358
    %v2360 = vpop.f32.mrf.mxu0
    %v2361 = vadd.f32 0.0, %v2360
    %2362 = vmatmul.bf16.gmra.mxu0 %v1693
    %v2363 = vpop.f32.mrf.mxu0
    %v2364 = vadd.f32 0.0, %v2363
    %v2365 = vpop.f32.mrf.mxu0
    %v2366 = vadd.f32 0.0, %v2365
    %2367 = vmatmul.bf16.gmra.mxu0 %v1694
    %v2368 = vpop.f32.mrf.mxu0
    %v2369 = vadd.f32 0.0, %v2368
    %v2370 = vpop.f32.mrf.mxu0
    %v2371 = vadd.f32 0.0, %v2370
    %2372 = vdwg.mxu0
    %2373 = vmatpush.bf16.msra.mxu0 %v2013
    %2374 = vmatpush.bf16.msra.mxu0 %v2005
    %2375 = vmatpush.bf16.msra.mxu0 %v1997
    %2376 = vmatpush.bf16.msra.mxu0 %v1989
    %2377 = vmatpush.bf16.msra.mxu0 %v1981
    %2378 = vmatpush.bf16.msra.mxu0 %v1973
    %2379 = vmatpush.bf16.msra.mxu0 %v1965
    %2380 = vmatpush.bf16.msra.mxu0 %v1957
    %2381 = vmatmul.bf16.gmra.mxu0 %v1687
    %v2382 = vpop.f32.mrf.mxu0
    %v2383 = vadd.f32 0.0, %v2382
    %v2384 = vpop.f32.mrf.mxu0
    %v2385 = vadd.f32 0.0, %v2384
    %2386 = vmatmul.bf16.gmra.mxu0 %v1688
    %v2387 = vpop.f32.mrf.mxu0
    %v2388 = vadd.f32 0.0, %v2387
    %v2389 = vpop.f32.mrf.mxu0
    %v2390 = vadd.f32 0.0, %v2389
    %2391 = vmatmul.bf16.gmra.mxu0 %v1689
    %v2392 = vpop.f32.mrf.mxu0
    %v2393 = vadd.f32 0.0, %v2392
    %v2394 = vpop.f32.mrf.mxu0
    %v2395 = vadd.f32 0.0, %v2394
    %2396 = vmatmul.bf16.gmra.mxu0 %v1690
    %v2397 = vpop.f32.mrf.mxu0
    %v2398 = vadd.f32 0.0, %v2397
    %v2399 = vpop.f32.mrf.mxu0
    %v2400 = vadd.f32 0.0, %v2399
    %2401 = vmatmul.bf16.gmra.mxu0 %v1691
    %v2402 = vpop.f32.mrf.mxu0
    %v2403 = vadd.f32 0.0, %v2402
    %v2404 = vpop.f32.mrf.mxu0
    %v2405 = vadd.f32 0.0, %v2404
    %2406 = vmatmul.bf16.gmra.mxu0 %v1692
    %v2407 = vpop.f32.mrf.mxu0
    %v2408 = vadd.f32 0.0, %v2407
    %v2409 = vpop.f32.mrf.mxu0
    %v2410 = vadd.f32 0.0, %v2409
    %2411 = vmatmul.bf16.gmra.mxu0 %v1693
    %v2412 = vpop.f32.mrf.mxu0
    %v2413 = vadd.f32 0.0, %v2412
    %v2414 = vpop.f32.mrf.mxu0
    %v2415 = vadd.f32 0.0, %v2414
    %2416 = vmatmul.bf16.gmra.mxu0 %v1694
    %v2417 = vpop.f32.mrf.mxu0
    %v2418 = vadd.f32 0.0, %v2417
    %v2419 = vpop.f32.mrf.mxu0
    %v2420 = vadd.f32 0.0, %v2419
    %2421 = vdwg.mxu0
    %2422 = vmatpush.bf16.msra.mxu0 %v2014
    %2423 = vmatpush.bf16.msra.mxu0 %v2006
    %2424 = vmatpush.bf16.msra.mxu0 %v1998
    %2425 = vmatpush.bf16.msra.mxu0 %v1990
    %2426 = vmatpush.bf16.msra.mxu0 %v1982
    %2427 = vmatpush.bf16.msra.mxu0 %v1974
    %2428 = vmatpush.bf16.msra.mxu0 %v1966
    %2429 = vmatpush.bf16.msra.mxu0 %v1958
    %2430 = vmatmul.bf16.gmra.mxu0 %v1687
    %v2431 = vpop.f32.mrf.mxu0
    %v2432 = vadd.f32 0.0, %v2431
    %v2433 = vpop.f32.mrf.mxu0
    %v2434 = vadd.f32 0.0, %v2433
    %2435 = vmatmul.bf16.gmra.mxu0 %v1688
    %v2436 = vpop.f32.mrf.mxu0
    %v2437 = vadd.f32 0.0, %v2436
    %v2438 = vpop.f32.mrf.mxu0
    %v2439 = vadd.f32 0.0, %v2438
    %2440 = vmatmul.bf16.gmra.mxu0 %v1689
    %v2441 = vpop.f32.mrf.mxu0
    %v2442 = vadd.f32 0.0, %v2441
    %v2443 = vpop.f32.mrf.mxu0
    %v2444 = vadd.f32 0.0, %v2443
    %2445 = vmatmul.bf16.gmra.mxu0 %v1690
    %v2446 = vpop.f32.mrf.mxu0
    %v2447 = vadd.f32 0.0, %v2446
    %v2448 = vpop.f32.mrf.mxu0
    %v2449 = vadd.f32 0.0, %v2448
    %2450 = vmatmul.bf16.gmra.mxu0 %v1691
    %v2451 = vpop.f32.mrf.mxu0
    %v2452 = vadd.f32 0.0, %v2451
    %v2453 = vpop.f32.mrf.mxu0
    %v2454 = vadd.f32 0.0, %v2453
    %2455 = vmatmul.bf16.gmra.mxu0 %v1692
    %v2456 = vpop.f32.mrf.mxu0
    %v2457 = vadd.f32 0.0, %v2456
    %v2458 = vpop.f32.mrf.mxu0
    %v2459 = vadd.f32 0.0, %v2458
    %2460 = vmatmul.bf16.gmra.mxu0 %v1693
    %v2461 = vpop.f32.mrf.mxu0
    %v2462 = vadd.f32 0.0, %v2461
    %v2463 = vpop.f32.mrf.mxu0
    %v2464 = vadd.f32 0.0, %v2463
    %2465 = vmatmul.bf16.gmra.mxu0 %v1694
    %v2466 = vpop.f32.mrf.mxu0
    %v2467 = vadd.f32 0.0, %v2466
    %v2468 = vpop.f32.mrf.mxu0
    %v2469 = vadd.f32 0.0, %v2468
    %2470 = vdwg.mxu0
    %v2471 = vpack.c.bf16 %v2138, %v2089
    %v2472 = vpack.c.bf16 %v2236, %v2187
    %v2473 = vpack.c.bf16 %v2334, %v2285
    %v2474 = vpack.c.bf16 %v2432, %v2383
    %v2475 = vpack.c.bf16 %v2140, %v2091
    %v2476 = vpack.c.bf16 %v2238, %v2189
    %v2477 = vpack.c.bf16 %v2336, %v2287
    %v2478 = vpack.c.bf16 %v2434, %v2385
    %v2479 = vpack.c.bf16 %v2143, %v2094
    %v2480 = vpack.c.bf16 %v2241, %v2192
    %v2481 = vpack.c.bf16 %v2339, %v2290
    %v2482 = vpack.c.bf16 %v2437, %v2388
    %v2483 = vpack.c.bf16 %v2145, %v2096
    %v2484 = vpack.c.bf16 %v2243, %v2194
    %v2485 = vpack.c.bf16 %v2341, %v2292
    %v2486 = vpack.c.bf16 %v2439, %v2390
    %v2487 = vpack.c.bf16 %v2148, %v2099
    %v2488 = vpack.c.bf16 %v2246, %v2197
    %v2489 = vpack.c.bf16 %v2344, %v2295
    %v2490 = vpack.c.bf16 %v2442, %v2393
    %v2491 = vpack.c.bf16 %v2150, %v2101
    %v2492 = vpack.c.bf16 %v2248, %v2199
    %v2493 = vpack.c.bf16 %v2346, %v2297
    %v2494 = vpack.c.bf16 %v2444, %v2395
    %v2495 = vpack.c.bf16 %v2153, %v2104
    %v2496 = vpack.c.bf16 %v2251, %v2202
    %v2497 = vpack.c.bf16 %v2349, %v2300
    %v2498 = vpack.c.bf16 %v2447, %v2398
    %v2499 = vpack.c.bf16 %v2155, %v2106
    %v2500 = vpack.c.bf16 %v2253, %v2204
    %v2501 = vpack.c.bf16 %v2351, %v2302
    %v2502 = vpack.c.bf16 %v2449, %v2400
    %v2503 = vpack.c.bf16 %v2158, %v2109
    %v2504 = vpack.c.bf16 %v2256, %v2207
    %v2505 = vpack.c.bf16 %v2354, %v2305
    %v2506 = vpack.c.bf16 %v2452, %v2403
    %v2507 = vpack.c.bf16 %v2160, %v2111
    %v2508 = vpack.c.bf16 %v2258, %v2209
    %v2509 = vpack.c.bf16 %v2356, %v2307
    %v2510 = vpack.c.bf16 %v2454, %v2405
    %v2511 = vpack.c.bf16 %v2163, %v2114
    %v2512 = vpack.c.bf16 %v2261, %v2212
    %v2513 = vpack.c.bf16 %v2359, %v2310
    %v2514 = vpack.c.bf16 %v2457, %v2408
    %v2515 = vpack.c.bf16 %v2165, %v2116
    %v2516 = vpack.c.bf16 %v2263, %v2214
    %v2517 = vpack.c.bf16 %v2361, %v2312
    %v2518 = vpack.c.bf16 %v2459, %v2410
    %v2519 = vpack.c.bf16 %v2168, %v2119
    %v2520 = vpack.c.bf16 %v2266, %v2217
    %v2521 = vpack.c.bf16 %v2364, %v2315
    %v2522 = vpack.c.bf16 %v2462, %v2413
    %v2523 = vpack.c.bf16 %v2170, %v2121
    %v2524 = vpack.c.bf16 %v2268, %v2219
    %v2525 = vpack.c.bf16 %v2366, %v2317
    %v2526 = vpack.c.bf16 %v2464, %v2415
    %v2527 = vpack.c.bf16 %v2173, %v2124
    %v2528 = vpack.c.bf16 %v2271, %v2222
    %v2529 = vpack.c.bf16 %v2369, %v2320
    %v2530 = vpack.c.bf16 %v2467, %v2418
    %v2531 = vpack.c.bf16 %v2175, %v2126
    %v2532 = vpack.c.bf16 %v2273, %v2224
    %v2533 = vpack.c.bf16 %v2371, %v2322
    %v2534 = vpack.c.bf16 %v2469, %v2420
    %v2535 = vunpack.c.l.bf16 %v2471
    %v2536 = vunpack.c.h.bf16 %v2471
    %v2537 = vunpack.c.l.bf16 %v2472
    %v2538 = vunpack.c.h.bf16 %v2472
    %v2539 = vunpack.c.l.bf16 %v2473
    %v2540 = vunpack.c.h.bf16 %v2473
    %v2541 = vunpack.c.l.bf16 %v2474
    %v2542 = vunpack.c.h.bf16 %v2474
    %v2543 = vunpack.c.l.bf16 %v2475
    %v2544 = vunpack.c.h.bf16 %v2475
    %v2545 = vunpack.c.l.bf16 %v2476
    %v2546 = vunpack.c.h.bf16 %v2476
    %v2547 = vunpack.c.l.bf16 %v2477
    %v2548 = vunpack.c.h.bf16 %v2477
    %v2549 = vunpack.c.l.bf16 %v2478
    %v2550 = vunpack.c.h.bf16 %v2478
    %v2551 = vunpack.c.l.bf16 %v2479
    %v2552 = vunpack.c.h.bf16 %v2479
    %v2553 = vunpack.c.l.bf16 %v2480
    %v2554 = vunpack.c.h.bf16 %v2480
    %v2555 = vunpack.c.l.bf16 %v2481
    %v2556 = vunpack.c.h.bf16 %v2481
    %v2557 = vunpack.c.l.bf16 %v2482
    %v2558 = vunpack.c.h.bf16 %v2482
    %v2559 = vunpack.c.l.bf16 %v2483
    %v2560 = vunpack.c.h.bf16 %v2483
    %v2561 = vunpack.c.l.bf16 %v2484
    %v2562 = vunpack.c.h.bf16 %v2484
    %v2563 = vunpack.c.l.bf16 %v2485
    %v2564 = vunpack.c.h.bf16 %v2485
    %v2565 = vunpack.c.l.bf16 %v2486
    %v2566 = vunpack.c.h.bf16 %v2486
    %v2567 = vunpack.c.l.bf16 %v2487
    %v2568 = vunpack.c.h.bf16 %v2487
    %v2569 = vunpack.c.l.bf16 %v2488
    %v2570 = vunpack.c.h.bf16 %v2488
    %v2571 = vunpack.c.l.bf16 %v2489
    %v2572 = vunpack.c.h.bf16 %v2489
    %v2573 = vunpack.c.l.bf16 %v2490
    %v2574 = vunpack.c.h.bf16 %v2490
    %v2575 = vunpack.c.l.bf16 %v2491
    %v2576 = vunpack.c.h.bf16 %v2491
    %v2577 = vunpack.c.l.bf16 %v2492
    %v2578 = vunpack.c.h.bf16 %v2492
    %v2579 = vunpack.c.l.bf16 %v2493
    %v2580 = vunpack.c.h.bf16 %v2493
    %v2581 = vunpack.c.l.bf16 %v2494
    %v2582 = vunpack.c.h.bf16 %v2494
    %v2583 = vunpack.c.l.bf16 %v2495
    %v2584 = vunpack.c.h.bf16 %v2495
    %v2585 = vunpack.c.l.bf16 %v2496
    %v2586 = vunpack.c.h.bf16 %v2496
    %v2587 = vunpack.c.l.bf16 %v2497
    %v2588 = vunpack.c.h.bf16 %v2497
    %v2589 = vunpack.c.l.bf16 %v2498
    %v2590 = vunpack.c.h.bf16 %v2498
    %v2591 = vunpack.c.l.bf16 %v2499
    %v2592 = vunpack.c.h.bf16 %v2499
    %v2593 = vunpack.c.l.bf16 %v2500
    %v2594 = vunpack.c.h.bf16 %v2500
    %v2595 = vunpack.c.l.bf16 %v2501
    %v2596 = vunpack.c.h.bf16 %v2501
    %v2597 = vunpack.c.l.bf16 %v2502
    %v2598 = vunpack.c.h.bf16 %v2502
    %v2599 = vunpack.c.l.bf16 %v2503
    %v2600 = vunpack.c.h.bf16 %v2503
    %v2601 = vunpack.c.l.bf16 %v2504
    %v2602 = vunpack.c.h.bf16 %v2504
    %v2603 = vunpack.c.l.bf16 %v2505
    %v2604 = vunpack.c.h.bf16 %v2505
    %v2605 = vunpack.c.l.bf16 %v2506
    %v2606 = vunpack.c.h.bf16 %v2506
    %v2607 = vunpack.c.l.bf16 %v2507
    %v2608 = vunpack.c.h.bf16 %v2507
    %v2609 = vunpack.c.l.bf16 %v2508
    %v2610 = vunpack.c.h.bf16 %v2508
    %v2611 = vunpack.c.l.bf16 %v2509
    %v2612 = vunpack.c.h.bf16 %v2509
    %v2613 = vunpack.c.l.bf16 %v2510
    %v2614 = vunpack.c.h.bf16 %v2510
    %v2615 = vunpack.c.l.bf16 %v2511
    %v2616 = vunpack.c.h.bf16 %v2511
    %v2617 = vunpack.c.l.bf16 %v2512
    %v2618 = vunpack.c.h.bf16 %v2512
    %v2619 = vunpack.c.l.bf16 %v2513
    %v2620 = vunpack.c.h.bf16 %v2513
    %v2621 = vunpack.c.l.bf16 %v2514
    %v2622 = vunpack.c.h.bf16 %v2514
    %v2623 = vunpack.c.l.bf16 %v2515
    %v2624 = vunpack.c.h.bf16 %v2515
    %v2625 = vunpack.c.l.bf16 %v2516
    %v2626 = vunpack.c.h.bf16 %v2516
    %v2627 = vunpack.c.l.bf16 %v2517
    %v2628 = vunpack.c.h.bf16 %v2517
    %v2629 = vunpack.c.l.bf16 %v2518
    %v2630 = vunpack.c.h.bf16 %v2518
    %v2631 = vunpack.c.l.bf16 %v2519
    %v2632 = vunpack.c.h.bf16 %v2519
    %v2633 = vunpack.c.l.bf16 %v2520
    %v2634 = vunpack.c.h.bf16 %v2520
    %v2635 = vunpack.c.l.bf16 %v2521
    %v2636 = vunpack.c.h.bf16 %v2521
    %v2637 = vunpack.c.l.bf16 %v2522
    %v2638 = vunpack.c.h.bf16 %v2522
    %v2639 = vunpack.c.l.bf16 %v2523
    %v2640 = vunpack.c.h.bf16 %v2523
    %v2641 = vunpack.c.l.bf16 %v2524
    %v2642 = vunpack.c.h.bf16 %v2524
    %v2643 = vunpack.c.l.bf16 %v2525
    %v2644 = vunpack.c.h.bf16 %v2525
    %v2645 = vunpack.c.l.bf16 %v2526
    %v2646 = vunpack.c.h.bf16 %v2526
    %v2647 = vunpack.c.l.bf16 %v2527
    %v2648 = vunpack.c.h.bf16 %v2527
    %v2649 = vunpack.c.l.bf16 %v2528
    %v2650 = vunpack.c.h.bf16 %v2528
    %v2651 = vunpack.c.l.bf16 %v2529
    %v2652 = vunpack.c.h.bf16 %v2529
    %v2653 = vunpack.c.l.bf16 %v2530
    %v2654 = vunpack.c.h.bf16 %v2530
    %v2655 = vunpack.c.l.bf16 %v2531
    %v2656 = vunpack.c.h.bf16 %v2531
    %v2657 = vunpack.c.l.bf16 %v2532
    %v2658 = vunpack.c.h.bf16 %v2532
    %v2659 = vunpack.c.l.bf16 %v2533
    %v2660 = vunpack.c.h.bf16 %v2533
    %v2661 = vunpack.c.l.bf16 %v2534
    %v2662 = vunpack.c.h.bf16 %v2534
    %v2663 = vmax.f32 %v2535, %v2543
    %v2664 = vmax.f32 %v2663, %v2551
    %v2665 = vmax.f32 %v2664, %v2559
    %v2666 = vmax.f32 %v2665, %v2567
    %v2667 = vmax.f32 %v2666, %v2575
    %v2668 = vmax.f32 %v2667, %v2583
    %v2669 = vmax.f32 %v2668, %v2591
    %v2670 = vrot.slane %v2669, 4
    %v2671 = vmax.f32 %v2669, %v2670
    %v2672 = vrot.slane %v2671, 2
    %v2673 = vmax.f32 %v2671, %v2672
    %v2674 = vrot.slane %v2673, 1
    %v2675 = vmax.f32 %v2673, %v2674
    %v2676 = vmax.f32 %v2536, %v2544
    %v2677 = vmax.f32 %v2676, %v2552
    %v2678 = vmax.f32 %v2677, %v2560
    %v2679 = vmax.f32 %v2678, %v2568
    %v2680 = vmax.f32 %v2679, %v2576
    %v2681 = vmax.f32 %v2680, %v2584
    %v2682 = vmax.f32 %v2681, %v2592
    %v2683 = vrot.slane %v2682, 4
    %v2684 = vmax.f32 %v2682, %v2683
    %v2685 = vrot.slane %v2684, 2
    %v2686 = vmax.f32 %v2684, %v2685
    %v2687 = vrot.slane %v2686, 1
    %v2688 = vmax.f32 %v2686, %v2687
    %v2689 = vmax.f32 %v2537, %v2545
    %v2690 = vmax.f32 %v2689, %v2553
    %v2691 = vmax.f32 %v2690, %v2561
    %v2692 = vmax.f32 %v2691, %v2569
    %v2693 = vmax.f32 %v2692, %v2577
    %v2694 = vmax.f32 %v2693, %v2585
    %v2695 = vmax.f32 %v2694, %v2593
    %v2696 = vrot.slane %v2695, 4
    %v2697 = vmax.f32 %v2695, %v2696
    %v2698 = vrot.slane %v2697, 2
    %v2699 = vmax.f32 %v2697, %v2698
    %v2700 = vrot.slane %v2699, 1
    %v2701 = vmax.f32 %v2699, %v2700
    %v2702 = vmax.f32 %v2538, %v2546
    %v2703 = vmax.f32 %v2702, %v2554
    %v2704 = vmax.f32 %v2703, %v2562
    %v2705 = vmax.f32 %v2704, %v2570
    %v2706 = vmax.f32 %v2705, %v2578
    %v2707 = vmax.f32 %v2706, %v2586
    %v2708 = vmax.f32 %v2707, %v2594
    %v2709 = vrot.slane %v2708, 4
    %v2710 = vmax.f32 %v2708, %v2709
    %v2711 = vrot.slane %v2710, 2
    %v2712 = vmax.f32 %v2710, %v2711
    %v2713 = vrot.slane %v2712, 1
    %v2714 = vmax.f32 %v2712, %v2713
    %v2715 = vmax.f32 %v2539, %v2547
    %v2716 = vmax.f32 %v2715, %v2555
    %v2717 = vmax.f32 %v2716, %v2563
    %v2718 = vmax.f32 %v2717, %v2571
    %v2719 = vmax.f32 %v2718, %v2579
    %v2720 = vmax.f32 %v2719, %v2587
    %v2721 = vmax.f32 %v2720, %v2595
    %v2722 = vrot.slane %v2721, 4
    %v2723 = vmax.f32 %v2721, %v2722
    %v2724 = vrot.slane %v2723, 2
    %v2725 = vmax.f32 %v2723, %v2724
    %v2726 = vrot.slane %v2725, 1
    %v2727 = vmax.f32 %v2725, %v2726
    %v2728 = vmax.f32 %v2540, %v2548
    %v2729 = vmax.f32 %v2728, %v2556
    %v2730 = vmax.f32 %v2729, %v2564
    %v2731 = vmax.f32 %v2730, %v2572
    %v2732 = vmax.f32 %v2731, %v2580
    %v2733 = vmax.f32 %v2732, %v2588
    %v2734 = vmax.f32 %v2733, %v2596
    %v2735 = vrot.slane %v2734, 4
    %v2736 = vmax.f32 %v2734, %v2735
    %v2737 = vrot.slane %v2736, 2
    %v2738 = vmax.f32 %v2736, %v2737
    %v2739 = vrot.slane %v2738, 1
    %v2740 = vmax.f32 %v2738, %v2739
    %v2741 = vmax.f32 %v2541, %v2549
    %v2742 = vmax.f32 %v2741, %v2557
    %v2743 = vmax.f32 %v2742, %v2565
    %v2744 = vmax.f32 %v2743, %v2573
    %v2745 = vmax.f32 %v2744, %v2581
    %v2746 = vmax.f32 %v2745, %v2589
    %v2747 = vmax.f32 %v2746, %v2597
    %v2748 = vrot.slane %v2747, 4
    %v2749 = vmax.f32 %v2747, %v2748
    %v2750 = vrot.slane %v2749, 2
    %v2751 = vmax.f32 %v2749, %v2750
    %v2752 = vrot.slane %v2751, 1
    %v2753 = vmax.f32 %v2751, %v2752
    %v2754 = vmax.f32 %v2542, %v2550
    %v2755 = vmax.f32 %v2754, %v2558
    %v2756 = vmax.f32 %v2755, %v2566
    %v2757 = vmax.f32 %v2756, %v2574
    %v2758 = vmax.f32 %v2757, %v2582
    %v2759 = vmax.f32 %v2758, %v2590
    %v2760 = vmax.f32 %v2759, %v2598
    %v2761 = vrot.slane %v2760, 4
    %v2762 = vmax.f32 %v2760, %v2761
    %v2763 = vrot.slane %v2762, 2
    %v2764 = vmax.f32 %v2762, %v2763
    %v2765 = vrot.slane %v2764, 1
    %v2766 = vmax.f32 %v2764, %v2765
    %v2767 = vmax.f32 %v2599, %v2607
    %v2768 = vmax.f32 %v2767, %v2615
    %v2769 = vmax.f32 %v2768, %v2623
    %v2770 = vmax.f32 %v2769, %v2631
    %v2771 = vmax.f32 %v2770, %v2639
    %v2772 = vmax.f32 %v2771, %v2647
    %v2773 = vmax.f32 %v2772, %v2655
    %v2774 = vrot.slane %v2773, 4
    %v2775 = vmax.f32 %v2773, %v2774
    %v2776 = vrot.slane %v2775, 2
    %v2777 = vmax.f32 %v2775, %v2776
    %v2778 = vrot.slane %v2777, 1
    %v2779 = vmax.f32 %v2777, %v2778
    %v2780 = vmax.f32 %v2600, %v2608
    %v2781 = vmax.f32 %v2780, %v2616
    %v2782 = vmax.f32 %v2781, %v2624
    %v2783 = vmax.f32 %v2782, %v2632
    %v2784 = vmax.f32 %v2783, %v2640
    %v2785 = vmax.f32 %v2784, %v2648
    %v2786 = vmax.f32 %v2785, %v2656
    %v2787 = vrot.slane %v2786, 4
    %v2788 = vmax.f32 %v2786, %v2787
    %v2789 = vrot.slane %v2788, 2
    %v2790 = vmax.f32 %v2788, %v2789
    %v2791 = vrot.slane %v2790, 1
    %v2792 = vmax.f32 %v2790, %v2791
    %v2793 = vmax.f32 %v2601, %v2609
    %v2794 = vmax.f32 %v2793, %v2617
    %v2795 = vmax.f32 %v2794, %v2625
    %v2796 = vmax.f32 %v2795, %v2633
    %v2797 = vmax.f32 %v2796, %v2641
    %v2798 = vmax.f32 %v2797, %v2649
    %v2799 = vmax.f32 %v2798, %v2657
    %v2800 = vrot.slane %v2799, 4
    %v2801 = vmax.f32 %v2799, %v2800
    %v2802 = vrot.slane %v2801, 2
    %v2803 = vmax.f32 %v2801, %v2802
    %v2804 = vrot.slane %v2803, 1
    %v2805 = vmax.f32 %v2803, %v2804
    %v2806 = vmax.f32 %v2602, %v2610
    %v2807 = vmax.f32 %v2806, %v2618
    %v2808 = vmax.f32 %v2807, %v2626
    %v2809 = vmax.f32 %v2808, %v2634
    %v2810 = vmax.f32 %v2809, %v2642
    %v2811 = vmax.f32 %v2810, %v2650
    %v2812 = vmax.f32 %v2811, %v2658
    %v2813 = vrot.slane %v2812, 4
    %v2814 = vmax.f32 %v2812, %v2813
    %v2815 = vrot.slane %v2814, 2
    %v2816 = vmax.f32 %v2814, %v2815
    %v2817 = vrot.slane %v2816, 1
    %v2818 = vmax.f32 %v2816, %v2817
    %v2819 = vmax.f32 %v2603, %v2611
    %v2820 = vmax.f32 %v2819, %v2619
    %v2821 = vmax.f32 %v2820, %v2627
    %v2822 = vmax.f32 %v2821, %v2635
    %v2823 = vmax.f32 %v2822, %v2643
    %v2824 = vmax.f32 %v2823, %v2651
    %v2825 = vmax.f32 %v2824, %v2659
    %v2826 = vrot.slane %v2825, 4
    %v2827 = vmax.f32 %v2825, %v2826
    %v2828 = vrot.slane %v2827, 2
    %v2829 = vmax.f32 %v2827, %v2828
    %v2830 = vrot.slane %v2829, 1
    %v2831 = vmax.f32 %v2829, %v2830
    %v2832 = vmax.f32 %v2604, %v2612
    %v2833 = vmax.f32 %v2832, %v2620
    %v2834 = vmax.f32 %v2833, %v2628
    %v2835 = vmax.f32 %v2834, %v2636
    %v2836 = vmax.f32 %v2835, %v2644
    %v2837 = vmax.f32 %v2836, %v2652
    %v2838 = vmax.f32 %v2837, %v2660
    %v2839 = vrot.slane %v2838, 4
    %v2840 = vmax.f32 %v2838, %v2839
    %v2841 = vrot.slane %v2840, 2
    %v2842 = vmax.f32 %v2840, %v2841
    %v2843 = vrot.slane %v2842, 1
    %v2844 = vmax.f32 %v2842, %v2843
    %v2845 = vmax.f32 %v2605, %v2613
    %v2846 = vmax.f32 %v2845, %v2621
    %v2847 = vmax.f32 %v2846, %v2629
    %v2848 = vmax.f32 %v2847, %v2637
    %v2849 = vmax.f32 %v2848, %v2645
    %v2850 = vmax.f32 %v2849, %v2653
    %v2851 = vmax.f32 %v2850, %v2661
    %v2852 = vrot.slane %v2851, 4
    %v2853 = vmax.f32 %v2851, %v2852
    %v2854 = vrot.slane %v2853, 2
    %v2855 = vmax.f32 %v2853, %v2854
    %v2856 = vrot.slane %v2855, 1
    %v2857 = vmax.f32 %v2855, %v2856
    %v2858 = vmax.f32 %v2606, %v2614
    %v2859 = vmax.f32 %v2858, %v2622
    %v2860 = vmax.f32 %v2859, %v2630
    %v2861 = vmax.f32 %v2860, %v2638
    %v2862 = vmax.f32 %v2861, %v2646
    %v2863 = vmax.f32 %v2862, %v2654
    %v2864 = vmax.f32 %v2863, %v2662
    %v2865 = vrot.slane %v2864, 4
    %v2866 = vmax.f32 %v2864, %v2865
    %v2867 = vrot.slane %v2866, 2
    %v2868 = vmax.f32 %v2866, %v2867
    %v2869 = vrot.slane %v2868, 1
    %v2870 = vmax.f32 %v2868, %v2869
    %v2871 = vpack.c.bf16 %v2688, %v2675
    %v2872 = vpack.c.bf16 %v2714, %v2701
    %v2873 = vpack.c.bf16 %v2740, %v2727
    %v2874 = vpack.c.bf16 %v2766, %v2753
    %v2875 = vpack.c.bf16 %v2792, %v2779
    %v2876 = vpack.c.bf16 %v2818, %v2805
    %v2877 = vpack.c.bf16 %v2844, %v2831
    %v2878 = vpack.c.bf16 %v2870, %v2857
    %v2879 = vunpack.c.l.bf16 %v2871
    %v2880 = vunpack.c.h.bf16 %v2871
    %v2881 = vunpack.c.l.bf16 %v2872
    %v2882 = vunpack.c.h.bf16 %v2872
    %v2883 = vunpack.c.l.bf16 %v2873
    %v2884 = vunpack.c.h.bf16 %v2873
    %v2885 = vunpack.c.l.bf16 %v2874
    %v2886 = vunpack.c.h.bf16 %v2874
    %v2887 = vunpack.c.l.bf16 %v2875
    %v2888 = vunpack.c.h.bf16 %v2875
    %v2889 = vunpack.c.l.bf16 %v2876
    %v2890 = vunpack.c.h.bf16 %v2876
    %v2891 = vunpack.c.l.bf16 %v2877
    %v2892 = vunpack.c.h.bf16 %v2877
    %v2893 = vunpack.c.l.bf16 %v2878
    %v2894 = vunpack.c.h.bf16 %v2878
    %v2895 = vld [vmem:[%s15] sm:$0xff]
    %v2897 = vperm.slane %v2895, 0
    %v2898 = vperm.slane %v2895, 1
    %v2899 = vperm.slane %v2895, 2
    %v2900 = vperm.slane %v2895, 3
    %v2901 = vperm.slane %v2895, 4
    %v2902 = vperm.slane %v2895, 5
    %v2903 = vperm.slane %v2895, 6
    %v2904 = vperm.slane %v2895, 7
    %v2913 = vadd.f32 %v2879, %v2897
    %v2914 = vadd.f32 %v2880, %v2898
    %v2915 = vadd.f32 %v2881, %v2899
    %v2916 = vadd.f32 %v2882, %v2900
    %v2917 = vadd.f32 %v2883, %v2901
    %v2918 = vadd.f32 %v2884, %v2902
    %v2919 = vadd.f32 %v2885, %v2903
    %v2920 = vadd.f32 %v2886, %v2904
    %v2921 = vadd.f32 %v2887, %v2897
    %v2922 = vadd.f32 %v2888, %v2898
    %v2923 = vadd.f32 %v2889, %v2899
    %v2924 = vadd.f32 %v2890, %v2900
    %v2925 = vadd.f32 %v2891, %v2901
    %v2926 = vadd.f32 %v2892, %v2902
    %v2927 = vadd.f32 %v2893, %v2903
    %v2928 = vadd.f32 %v2894, %v2904
    %v2929 = vpack.c.bf16 %v2913, %v2913
    %v2930 = vpack.c.bf16 %v2914, %v2914
    %v2931 = vpack.c.bf16 %v2915, %v2915
    %v2932 = vpack.c.bf16 %v2916, %v2916
    %v2933 = vpack.c.bf16 %v2917, %v2917
    %v2934 = vpack.c.bf16 %v2918, %v2918
    %v2935 = vpack.c.bf16 %v2919, %v2919
    %v2936 = vpack.c.bf16 %v2920, %v2920
    %v2937 = vpack.c.bf16 %v2921, %v2921
    %v2938 = vpack.c.bf16 %v2922, %v2922
    %v2939 = vpack.c.bf16 %v2923, %v2923
    %v2940 = vpack.c.bf16 %v2924, %v2924
    %v2941 = vpack.c.bf16 %v2925, %v2925
    %v2942 = vpack.c.bf16 %v2926, %v2926
    %v2943 = vpack.c.bf16 %v2927, %v2927
    %v2944 = vpack.c.bf16 %v2928, %v2928
    %v2945 = vld [vmem:[%s16] sm:$0xff]
    %v2946 = vld [vmem:[%s16 + $0x8] sm:$0xff]
    %v2947 = vld [vmem:[%s16 + $0x10] sm:$0xff]
    %v2948 = vld [vmem:[%s16 + $0x18] sm:$0xff]
    %v2949 = vld [vmem:[%s16 + $0x20] sm:$0xff]
    %v2950 = vld [vmem:[%s16 + $0x28] sm:$0xff]
    %v2951 = vld [vmem:[%s16 + $0x30] sm:$0xff]
    %v2952 = vld [vmem:[%s16 + $0x38] sm:$0xff]
    %v2953 = vld [vmem:[%s16 + $0x40] sm:$0xff]
    %v2954 = vld [vmem:[%s16 + $0x48] sm:$0xff]
    %v2955 = vld [vmem:[%s16 + $0x50] sm:$0xff]
    %v2956 = vld [vmem:[%s16 + $0x58] sm:$0xff]
    %v2957 = vld [vmem:[%s16 + $0x60] sm:$0xff]
    %v2958 = vld [vmem:[%s16 + $0x68] sm:$0xff]
    %v2959 = vld [vmem:[%s16 + $0x70] sm:$0xff]
    %v2960 = vld [vmem:[%s16 + $0x78] sm:$0xff]
    %v2961 = vld [vmem:[%s16 + $0x80] sm:$0xff]
    %v2962 = vld [vmem:[%s16 + $0x88] sm:$0xff]
    %v2963 = vld [vmem:[%s16 + $0x90] sm:$0xff]
    %v2964 = vld [vmem:[%s16 + $0x98] sm:$0xff]
    %v2965 = vld [vmem:[%s16 + $0xa0] sm:$0xff]
    %v2966 = vld [vmem:[%s16 + $0xa8] sm:$0xff]
    %v2967 = vld [vmem:[%s16 + $0xb0] sm:$0xff]
    %v2968 = vld [vmem:[%s16 + $0xb8] sm:$0xff]
    %v2969 = vld [vmem:[%s16 + $0xc0] sm:$0xff]
    %v2970 = vld [vmem:[%s16 + $0xc8] sm:$0xff]
    %v2971 = vld [vmem:[%s16 + $0xd0] sm:$0xff]
    %v2972 = vld [vmem:[%s16 + $0xd8] sm:$0xff]
    %v2973 = vld [vmem:[%s16 + $0xe0] sm:$0xff]
    %v2974 = vld [vmem:[%s16 + $0xe8] sm:$0xff]
    %v2975 = vld [vmem:[%s16 + $0xf0] sm:$0xff]
    %v2976 = vld [vmem:[%s16 + $0xf8] sm:$0xff]
    %v2977 = vld [vmem:[%s16 + $0x100] sm:$0xff]
    %v2978 = vld [vmem:[%s16 + $0x108] sm:$0xff]
    %v2979 = vld [vmem:[%s16 + $0x110] sm:$0xff]
    %v2980 = vld [vmem:[%s16 + $0x118] sm:$0xff]
    %v2981 = vld [vmem:[%s16 + $0x120] sm:$0xff]
    %v2982 = vld [vmem:[%s16 + $0x128] sm:$0xff]
    %v2983 = vld [vmem:[%s16 + $0x130] sm:$0xff]
    %v2984 = vld [vmem:[%s16 + $0x138] sm:$0xff]
    %v2985 = vld [vmem:[%s16 + $0x140] sm:$0xff]
    %v2986 = vld [vmem:[%s16 + $0x148] sm:$0xff]
    %v2987 = vld [vmem:[%s16 + $0x150] sm:$0xff]
    %v2988 = vld [vmem:[%s16 + $0x158] sm:$0xff]
    %v2989 = vld [vmem:[%s16 + $0x160] sm:$0xff]
    %v2990 = vld [vmem:[%s16 + $0x168] sm:$0xff]
    %v2991 = vld [vmem:[%s16 + $0x170] sm:$0xff]
    %v2992 = vld [vmem:[%s16 + $0x178] sm:$0xff]
    %v2993 = vld [vmem:[%s16 + $0x180] sm:$0xff]
    %v2994 = vld [vmem:[%s16 + $0x188] sm:$0xff]
    %v2995 = vld [vmem:[%s16 + $0x190] sm:$0xff]
    %v2996 = vld [vmem:[%s16 + $0x198] sm:$0xff]
    %v2997 = vld [vmem:[%s16 + $0x1a0] sm:$0xff]
    %v2998 = vld [vmem:[%s16 + $0x1a8] sm:$0xff]
    %v2999 = vld [vmem:[%s16 + $0x1b0] sm:$0xff]
    %v3000 = vld [vmem:[%s16 + $0x1b8] sm:$0xff]
    %v3001 = vld [vmem:[%s16 + $0x1c0] sm:$0xff]
    %v3002 = vld [vmem:[%s16 + $0x1c8] sm:$0xff]
    %v3003 = vld [vmem:[%s16 + $0x1d0] sm:$0xff]
    %v3004 = vld [vmem:[%s16 + $0x1d8] sm:$0xff]
    %v3005 = vld [vmem:[%s16 + $0x1e0] sm:$0xff]
    %v3006 = vld [vmem:[%s16 + $0x1e8] sm:$0xff]
    %v3007 = vld [vmem:[%s16 + $0x1f0] sm:$0xff]
    %v3008 = vld [vmem:[%s16 + $0x1f8] sm:$0xff]
    %v3009 = vld [vmem:[%s16 + $0x200] sm:$0xff]
    %v3010 = vld [vmem:[%s16 + $0x208] sm:$0xff]
    %v3011 = vld [vmem:[%s16 + $0x210] sm:$0xff]
    %v3012 = vld [vmem:[%s16 + $0x218] sm:$0xff]
    %v3013 = vld [vmem:[%s16 + $0x220] sm:$0xff]
    %v3014 = vld [vmem:[%s16 + $0x228] sm:$0xff]
    %v3015 = vld [vmem:[%s16 + $0x230] sm:$0xff]
    %v3016 = vld [vmem:[%s16 + $0x238] sm:$0xff]
    %v3017 = vld [vmem:[%s16 + $0x240] sm:$0xff]
    %v3018 = vld [vmem:[%s16 + $0x248] sm:$0xff]
    %v3019 = vld [vmem:[%s16 + $0x250] sm:$0xff]
    %v3020 = vld [vmem:[%s16 + $0x258] sm:$0xff]
    %v3021 = vld [vmem:[%s16 + $0x260] sm:$0xff]
    %v3022 = vld [vmem:[%s16 + $0x268] sm:$0xff]
    %v3023 = vld [vmem:[%s16 + $0x270] sm:$0xff]
    %v3024 = vld [vmem:[%s16 + $0x278] sm:$0xff]
    %v3025 = vld [vmem:[%s16 + $0x280] sm:$0xff]
    %v3026 = vld [vmem:[%s16 + $0x288] sm:$0xff]
    %v3027 = vld [vmem:[%s16 + $0x290] sm:$0xff]
    %v3028 = vld [vmem:[%s16 + $0x298] sm:$0xff]
    %v3029 = vld [vmem:[%s16 + $0x2a0] sm:$0xff]
    %v3030 = vld [vmem:[%s16 + $0x2a8] sm:$0xff]
    %v3031 = vld [vmem:[%s16 + $0x2b0] sm:$0xff]
    %v3032 = vld [vmem:[%s16 + $0x2b8] sm:$0xff]
    %v3033 = vld [vmem:[%s16 + $0x2c0] sm:$0xff]
    %v3034 = vld [vmem:[%s16 + $0x2c8] sm:$0xff]
    %v3035 = vld [vmem:[%s16 + $0x2d0] sm:$0xff]
    %v3036 = vld [vmem:[%s16 + $0x2d8] sm:$0xff]
    %v3037 = vld [vmem:[%s16 + $0x2e0] sm:$0xff]
    %v3038 = vld [vmem:[%s16 + $0x2e8] sm:$0xff]
    %v3039 = vld [vmem:[%s16 + $0x2f0] sm:$0xff]
    %v3040 = vld [vmem:[%s16 + $0x2f8] sm:$0xff]
    %v3041 = vld [vmem:[%s16 + $0x300] sm:$0xff]
    %v3042 = vld [vmem:[%s16 + $0x308] sm:$0xff]
    %v3043 = vld [vmem:[%s16 + $0x310] sm:$0xff]
    %v3044 = vld [vmem:[%s16 + $0x318] sm:$0xff]
    %v3045 = vld [vmem:[%s16 + $0x320] sm:$0xff]
    %v3046 = vld [vmem:[%s16 + $0x328] sm:$0xff]
    %v3047 = vld [vmem:[%s16 + $0x330] sm:$0xff]
    %v3048 = vld [vmem:[%s16 + $0x338] sm:$0xff]
    %v3049 = vld [vmem:[%s16 + $0x340] sm:$0xff]
    %v3050 = vld [vmem:[%s16 + $0x348] sm:$0xff]
    %v3051 = vld [vmem:[%s16 + $0x350] sm:$0xff]
    %v3052 = vld [vmem:[%s16 + $0x358] sm:$0xff]
    %v3053 = vld [vmem:[%s16 + $0x360] sm:$0xff]
    %v3054 = vld [vmem:[%s16 + $0x368] sm:$0xff]
    %v3055 = vld [vmem:[%s16 + $0x370] sm:$0xff]
    %v3056 = vld [vmem:[%s16 + $0x378] sm:$0xff]
    %v3057 = vld [vmem:[%s16 + $0x380] sm:$0xff]
    %v3058 = vld [vmem:[%s16 + $0x388] sm:$0xff]
    %v3059 = vld [vmem:[%s16 + $0x390] sm:$0xff]
    %v3060 = vld [vmem:[%s16 + $0x398] sm:$0xff]
    %v3061 = vld [vmem:[%s16 + $0x3a0] sm:$0xff]
    %v3062 = vld [vmem:[%s16 + $0x3a8] sm:$0xff]
    %v3063 = vld [vmem:[%s16 + $0x3b0] sm:$0xff]
    %v3064 = vld [vmem:[%s16 + $0x3b8] sm:$0xff]
    %v3065 = vld [vmem:[%s16 + $0x3c0] sm:$0xff]
    %v3066 = vld [vmem:[%s16 + $0x3c8] sm:$0xff]
    %v3067 = vld [vmem:[%s16 + $0x3d0] sm:$0xff]
    %v3068 = vld [vmem:[%s16 + $0x3d8] sm:$0xff]
    %v3069 = vld [vmem:[%s16 + $0x3e0] sm:$0xff]
    %v3070 = vld [vmem:[%s16 + $0x3e8] sm:$0xff]
    %v3071 = vld [vmem:[%s16 + $0x3f0] sm:$0xff]
    %v3072 = vld [vmem:[%s16 + $0x3f8] sm:$0xff]
    %v3073 = vld [vmem:[%s16 + $0x400] sm:$0xff]
    %v3074 = vld [vmem:[%s16 + $0x408] sm:$0xff]
    %v3075 = vld [vmem:[%s16 + $0x410] sm:$0xff]
    %v3076 = vld [vmem:[%s16 + $0x418] sm:$0xff]
    %v3077 = vld [vmem:[%s16 + $0x420] sm:$0xff]
    %v3078 = vld [vmem:[%s16 + $0x428] sm:$0xff]
    %v3079 = vld [vmem:[%s16 + $0x430] sm:$0xff]
    %v3080 = vld [vmem:[%s16 + $0x438] sm:$0xff]
    %v3081 = vld [vmem:[%s16 + $0x440] sm:$0xff]
    %v3082 = vld [vmem:[%s16 + $0x448] sm:$0xff]
    %v3083 = vld [vmem:[%s16 + $0x450] sm:$0xff]
    %v3084 = vld [vmem:[%s16 + $0x458] sm:$0xff]
    %v3085 = vld [vmem:[%s16 + $0x460] sm:$0xff]
    %v3086 = vld [vmem:[%s16 + $0x468] sm:$0xff]
    %v3087 = vld [vmem:[%s16 + $0x470] sm:$0xff]
    %v3088 = vld [vmem:[%s16 + $0x478] sm:$0xff]
    %v3089 = vld [vmem:[%s16 + $0x480] sm:$0xff]
    %v3090 = vld [vmem:[%s16 + $0x488] sm:$0xff]
    %v3091 = vld [vmem:[%s16 + $0x490] sm:$0xff]
    %v3092 = vld [vmem:[%s16 + $0x498] sm:$0xff]
    %v3093 = vld [vmem:[%s16 + $0x4a0] sm:$0xff]
    %v3094 = vld [vmem:[%s16 + $0x4a8] sm:$0xff]
    %v3095 = vld [vmem:[%s16 + $0x4b0] sm:$0xff]
    %v3096 = vld [vmem:[%s16 + $0x4b8] sm:$0xff]
    %v3097 = vld [vmem:[%s16 + $0x4c0] sm:$0xff]
    %v3098 = vld [vmem:[%s16 + $0x4c8] sm:$0xff]
    %v3099 = vld [vmem:[%s16 + $0x4d0] sm:$0xff]
    %v3100 = vld [vmem:[%s16 + $0x4d8] sm:$0xff]
    %v3101 = vld [vmem:[%s16 + $0x4e0] sm:$0xff]
    %v3102 = vld [vmem:[%s16 + $0x4e8] sm:$0xff]
    %v3103 = vld [vmem:[%s16 + $0x4f0] sm:$0xff]
    %v3104 = vld [vmem:[%s16 + $0x4f8] sm:$0xff]
    %v3105 = vld [vmem:[%s16 + $0x500] sm:$0xff]
    %v3106 = vld [vmem:[%s16 + $0x508] sm:$0xff]
    %v3107 = vld [vmem:[%s16 + $0x510] sm:$0xff]
    %v3108 = vld [vmem:[%s16 + $0x518] sm:$0xff]
    %v3109 = vld [vmem:[%s16 + $0x520] sm:$0xff]
    %v3110 = vld [vmem:[%s16 + $0x528] sm:$0xff]
    %v3111 = vld [vmem:[%s16 + $0x530] sm:$0xff]
    %v3112 = vld [vmem:[%s16 + $0x538] sm:$0xff]
    %v3113 = vld [vmem:[%s16 + $0x540] sm:$0xff]
    %v3114 = vld [vmem:[%s16 + $0x548] sm:$0xff]
    %v3115 = vld [vmem:[%s16 + $0x550] sm:$0xff]
    %v3116 = vld [vmem:[%s16 + $0x558] sm:$0xff]
    %v3117 = vld [vmem:[%s16 + $0x560] sm:$0xff]
    %v3118 = vld [vmem:[%s16 + $0x568] sm:$0xff]
    %v3119 = vld [vmem:[%s16 + $0x570] sm:$0xff]
    %v3120 = vld [vmem:[%s16 + $0x578] sm:$0xff]
    %v3121 = vld [vmem:[%s16 + $0x580] sm:$0xff]
    %v3122 = vld [vmem:[%s16 + $0x588] sm:$0xff]
    %v3123 = vld [vmem:[%s16 + $0x590] sm:$0xff]
    %v3124 = vld [vmem:[%s16 + $0x598] sm:$0xff]
    %v3125 = vld [vmem:[%s16 + $0x5a0] sm:$0xff]
    %v3126 = vld [vmem:[%s16 + $0x5a8] sm:$0xff]
    %v3127 = vld [vmem:[%s16 + $0x5b0] sm:$0xff]
    %v3128 = vld [vmem:[%s16 + $0x5b8] sm:$0xff]
    %v3129 = vld [vmem:[%s16 + $0x5c0] sm:$0xff]
    %v3130 = vld [vmem:[%s16 + $0x5c8] sm:$0xff]
    %v3131 = vld [vmem:[%s16 + $0x5d0] sm:$0xff]
    %v3132 = vld [vmem:[%s16 + $0x5d8] sm:$0xff]
    %v3133 = vld [vmem:[%s16 + $0x5e0] sm:$0xff]
    %v3134 = vld [vmem:[%s16 + $0x5e8] sm:$0xff]
    %v3135 = vld [vmem:[%s16 + $0x5f0] sm:$0xff]
    %v3136 = vld [vmem:[%s16 + $0x5f8] sm:$0xff]
    %v3137 = vld [vmem:[%s16 + $0x600] sm:$0xff]
    %v3138 = vld [vmem:[%s16 + $0x608] sm:$0xff]
    %v3139 = vld [vmem:[%s16 + $0x610] sm:$0xff]
    %v3140 = vld [vmem:[%s16 + $0x618] sm:$0xff]
    %v3141 = vld [vmem:[%s16 + $0x620] sm:$0xff]
    %v3142 = vld [vmem:[%s16 + $0x628] sm:$0xff]
    %v3143 = vld [vmem:[%s16 + $0x630] sm:$0xff]
    %v3144 = vld [vmem:[%s16 + $0x638] sm:$0xff]
    %v3145 = vld [vmem:[%s16 + $0x640] sm:$0xff]
    %v3146 = vld [vmem:[%s16 + $0x648] sm:$0xff]
    %v3147 = vld [vmem:[%s16 + $0x650] sm:$0xff]
    %v3148 = vld [vmem:[%s16 + $0x658] sm:$0xff]
    %v3149 = vld [vmem:[%s16 + $0x660] sm:$0xff]
    %v3150 = vld [vmem:[%s16 + $0x668] sm:$0xff]
    %v3151 = vld [vmem:[%s16 + $0x670] sm:$0xff]
    %v3152 = vld [vmem:[%s16 + $0x678] sm:$0xff]
    %v3153 = vld [vmem:[%s16 + $0x680] sm:$0xff]
    %v3154 = vld [vmem:[%s16 + $0x688] sm:$0xff]
    %v3155 = vld [vmem:[%s16 + $0x690] sm:$0xff]
    %v3156 = vld [vmem:[%s16 + $0x698] sm:$0xff]
    %v3157 = vld [vmem:[%s16 + $0x6a0] sm:$0xff]
    %v3158 = vld [vmem:[%s16 + $0x6a8] sm:$0xff]
    %v3159 = vld [vmem:[%s16 + $0x6b0] sm:$0xff]
    %v3160 = vld [vmem:[%s16 + $0x6b8] sm:$0xff]
    %v3161 = vld [vmem:[%s16 + $0x6c0] sm:$0xff]
    %v3162 = vld [vmem:[%s16 + $0x6c8] sm:$0xff]
    %v3163 = vld [vmem:[%s16 + $0x6d0] sm:$0xff]
    %v3164 = vld [vmem:[%s16 + $0x6d8] sm:$0xff]
    %v3165 = vld [vmem:[%s16 + $0x6e0] sm:$0xff]
    %v3166 = vld [vmem:[%s16 + $0x6e8] sm:$0xff]
    %v3167 = vld [vmem:[%s16 + $0x6f0] sm:$0xff]
    %v3168 = vld [vmem:[%s16 + $0x6f8] sm:$0xff]
    %v3169 = vld [vmem:[%s16 + $0x700] sm:$0xff]
    %v3170 = vld [vmem:[%s16 + $0x708] sm:$0xff]
    %v3171 = vld [vmem:[%s16 + $0x710] sm:$0xff]
    %v3172 = vld [vmem:[%s16 + $0x718] sm:$0xff]
    %v3173 = vld [vmem:[%s16 + $0x720] sm:$0xff]
    %v3174 = vld [vmem:[%s16 + $0x728] sm:$0xff]
    %v3175 = vld [vmem:[%s16 + $0x730] sm:$0xff]
    %v3176 = vld [vmem:[%s16 + $0x738] sm:$0xff]
    %v3177 = vld [vmem:[%s16 + $0x740] sm:$0xff]
    %v3178 = vld [vmem:[%s16 + $0x748] sm:$0xff]
    %v3179 = vld [vmem:[%s16 + $0x750] sm:$0xff]
    %v3180 = vld [vmem:[%s16 + $0x758] sm:$0xff]
    %v3181 = vld [vmem:[%s16 + $0x760] sm:$0xff]
    %v3182 = vld [vmem:[%s16 + $0x768] sm:$0xff]
    %v3183 = vld [vmem:[%s16 + $0x770] sm:$0xff]
    %v3184 = vld [vmem:[%s16 + $0x778] sm:$0xff]
    %v3185 = vld [vmem:[%s16 + $0x780] sm:$0xff]
    %v3186 = vld [vmem:[%s16 + $0x788] sm:$0xff]
    %v3187 = vld [vmem:[%s16 + $0x790] sm:$0xff]
    %v3188 = vld [vmem:[%s16 + $0x798] sm:$0xff]
    %v3189 = vld [vmem:[%s16 + $0x7a0] sm:$0xff]
    %v3190 = vld [vmem:[%s16 + $0x7a8] sm:$0xff]
    %v3191 = vld [vmem:[%s16 + $0x7b0] sm:$0xff]
    %v3192 = vld [vmem:[%s16 + $0x7b8] sm:$0xff]
    %v3193 = vld [vmem:[%s16 + $0x7c0] sm:$0xff]
    %v3194 = vld [vmem:[%s16 + $0x7c8] sm:$0xff]
    %v3195 = vld [vmem:[%s16 + $0x7d0] sm:$0xff]
    %v3196 = vld [vmem:[%s16 + $0x7d8] sm:$0xff]
    %v3197 = vld [vmem:[%s16 + $0x7e0] sm:$0xff]
    %v3198 = vld [vmem:[%s16 + $0x7e8] sm:$0xff]
    %v3199 = vld [vmem:[%s16 + $0x7f0] sm:$0xff]
    %v3200 = vld [vmem:[%s16 + $0x7f8] sm:$0xff]
    %v3217 = vunpack.c.l.b16 %v2929
    %v3218 = vunpack.c.l.b16 %v2930
    %v3219 = vunpack.c.l.b16 %v2931
    %v3220 = vunpack.c.l.b16 %v2932
    %v3221 = vunpack.c.l.b16 %v2933
    %v3222 = vunpack.c.l.b16 %v2934
    %v3223 = vunpack.c.l.b16 %v2935
    %v3224 = vunpack.c.l.b16 %v2936
    %v3225 = vunpack.c.l.b16 %v2937
    %v3226 = vunpack.c.l.b16 %v2938
    %v3227 = vunpack.c.l.b16 %v2939
    %v3228 = vunpack.c.l.b16 %v2940
    %v3229 = vunpack.c.l.b16 %v2941
    %v3230 = vunpack.c.l.b16 %v2942
    %v3231 = vunpack.c.l.b16 %v2943
    %v3232 = vunpack.c.l.b16 %v2944
    %v3233 = vrot.slane %v3225, 7
    %v3234 = vsel %vm592, %v3233, %v3217
    %v3235 = vrot.slane %v3226, 7
    %v3236 = vsel %vm592, %v3235, %v3218
    %v3237 = vrot.slane %v3227, 7
    %v3238 = vsel %vm592, %v3237, %v3219
    %v3239 = vrot.slane %v3228, 7
    %v3240 = vsel %vm592, %v3239, %v3220
    %v3241 = vrot.slane %v3229, 7
    %v3242 = vsel %vm592, %v3241, %v3221
    %v3243 = vrot.slane %v3230, 7
    %v3244 = vsel %vm592, %v3243, %v3222
    %v3245 = vrot.slane %v3231, 7
    %v3246 = vsel %vm592, %v3245, %v3223
    %v3247 = vrot.slane %v3232, 7
    %v3248 = vsel %vm592, %v3247, %v3224
    %v3249 = vpack.c.b16 %v3234, %v3234
    %v3250 = vpack.c.b16 %v3236, %v3236
    %v3251 = vpack.c.b16 %v3238, %v3238
    %v3252 = vpack.c.b16 %v3240, %v3240
    %v3253 = vpack.c.b16 %v3242, %v3242
    %v3254 = vpack.c.b16 %v3244, %v3244
    %v3255 = vpack.c.b16 %v3246, %v3246
    %v3256 = vpack.c.b16 %v3248, %v3248
    %v3521 = vunpack.c.l.b16 %v2945
    %v3522 = vunpack.c.h.b16 %v2945
    %v3523 = vunpack.c.l.b16 %v2946
    %v3524 = vunpack.c.h.b16 %v2946
    %v3525 = vunpack.c.l.b16 %v2947
    %v3526 = vunpack.c.h.b16 %v2947
    %v3527 = vunpack.c.l.b16 %v2948
    %v3528 = vunpack.c.h.b16 %v2948
    %v3529 = vunpack.c.l.b16 %v2949
    %v3530 = vunpack.c.h.b16 %v2949
    %v3531 = vunpack.c.l.b16 %v2950
    %v3532 = vunpack.c.h.b16 %v2950
    %v3533 = vunpack.c.l.b16 %v2951
    %v3534 = vunpack.c.h.b16 %v2951
    %v3535 = vunpack.c.l.b16 %v2952
    %v3536 = vunpack.c.h.b16 %v2952
    %v3537 = vunpack.c.l.b16 %v2953
    %v3538 = vunpack.c.h.b16 %v2953
    %v3539 = vunpack.c.l.b16 %v2954
    %v3540 = vunpack.c.h.b16 %v2954
    %v3541 = vunpack.c.l.b16 %v2955
    %v3542 = vunpack.c.h.b16 %v2955
    %v3543 = vunpack.c.l.b16 %v2956
    %v3544 = vunpack.c.h.b16 %v2956
    %v3545 = vunpack.c.l.b16 %v2957
    %v3546 = vunpack.c.h.b16 %v2957
    %v3547 = vunpack.c.l.b16 %v2958
    %v3548 = vunpack.c.h.b16 %v2958
    %v3549 = vunpack.c.l.b16 %v2959
    %v3550 = vunpack.c.h.b16 %v2959
    %v3551 = vunpack.c.l.b16 %v2960
    %v3552 = vunpack.c.h.b16 %v2960
    %v3553 = vunpack.c.l.b16 %v2961
    %v3554 = vunpack.c.h.b16 %v2961
    %v3555 = vunpack.c.l.b16 %v2962
    %v3556 = vunpack.c.h.b16 %v2962
    %v3557 = vunpack.c.l.b16 %v2963
    %v3558 = vunpack.c.h.b16 %v2963
    %v3559 = vunpack.c.l.b16 %v2964
    %v3560 = vunpack.c.h.b16 %v2964
    %v3561 = vunpack.c.l.b16 %v2965
    %v3562 = vunpack.c.h.b16 %v2965
    %v3563 = vunpack.c.l.b16 %v2966
    %v3564 = vunpack.c.h.b16 %v2966
    %v3565 = vunpack.c.l.b16 %v2967
    %v3566 = vunpack.c.h.b16 %v2967
    %v3567 = vunpack.c.l.b16 %v2968
    %v3568 = vunpack.c.h.b16 %v2968
    %v3569 = vunpack.c.l.b16 %v2969
    %v3570 = vunpack.c.h.b16 %v2969
    %v3571 = vunpack.c.l.b16 %v2970
    %v3572 = vunpack.c.h.b16 %v2970
    %v3573 = vunpack.c.l.b16 %v2971
    %v3574 = vunpack.c.h.b16 %v2971
    %v3575 = vunpack.c.l.b16 %v2972
    %v3576 = vunpack.c.h.b16 %v2972
    %v3577 = vunpack.c.l.b16 %v2973
    %v3578 = vunpack.c.h.b16 %v2973
    %v3579 = vunpack.c.l.b16 %v2974
    %v3580 = vunpack.c.h.b16 %v2974
    %v3581 = vunpack.c.l.b16 %v2975
    %v3582 = vunpack.c.h.b16 %v2975
    %v3583 = vunpack.c.l.b16 %v2976
    %v3584 = vunpack.c.h.b16 %v2976
    %v3585 = vunpack.c.l.b16 %v2977
    %v3586 = vunpack.c.h.b16 %v2977
    %v3587 = vunpack.c.l.b16 %v2978
    %v3588 = vunpack.c.h.b16 %v2978
    %v3589 = vunpack.c.l.b16 %v2979
    %v3590 = vunpack.c.h.b16 %v2979
    %v3591 = vunpack.c.l.b16 %v2980
    %v3592 = vunpack.c.h.b16 %v2980
    %v3593 = vunpack.c.l.b16 %v2981
    %v3594 = vunpack.c.h.b16 %v2981
    %v3595 = vunpack.c.l.b16 %v2982
    %v3596 = vunpack.c.h.b16 %v2982
    %v3597 = vunpack.c.l.b16 %v2983
    %v3598 = vunpack.c.h.b16 %v2983
    %v3599 = vunpack.c.l.b16 %v2984
    %v3600 = vunpack.c.h.b16 %v2984
    %v3601 = vunpack.c.l.b16 %v2985
    %v3602 = vunpack.c.h.b16 %v2985
    %v3603 = vunpack.c.l.b16 %v2986
    %v3604 = vunpack.c.h.b16 %v2986
    %v3605 = vunpack.c.l.b16 %v2987
    %v3606 = vunpack.c.h.b16 %v2987
    %v3607 = vunpack.c.l.b16 %v2988
    %v3608 = vunpack.c.h.b16 %v2988
    %v3609 = vunpack.c.l.b16 %v2989
    %v3610 = vunpack.c.h.b16 %v2989
    %v3611 = vunpack.c.l.b16 %v2990
    %v3612 = vunpack.c.h.b16 %v2990
    %v3613 = vunpack.c.l.b16 %v2991
    %v3614 = vunpack.c.h.b16 %v2991
    %v3615 = vunpack.c.l.b16 %v2992
    %v3616 = vunpack.c.h.b16 %v2992
    %v3617 = vunpack.c.l.b16 %v2993
    %v3618 = vunpack.c.h.b16 %v2993
    %v3619 = vunpack.c.l.b16 %v2994
    %v3620 = vunpack.c.h.b16 %v2994
    %v3621 = vunpack.c.l.b16 %v2995
    %v3622 = vunpack.c.h.b16 %v2995
    %v3623 = vunpack.c.l.b16 %v2996
    %v3624 = vunpack.c.h.b16 %v2996
    %v3625 = vunpack.c.l.b16 %v2997
    %v3626 = vunpack.c.h.b16 %v2997
    %v3627 = vunpack.c.l.b16 %v2998
    %v3628 = vunpack.c.h.b16 %v2998
    %v3629 = vunpack.c.l.b16 %v2999
    %v3630 = vunpack.c.h.b16 %v2999
    %v3631 = vunpack.c.l.b16 %v3000
    %v3632 = vunpack.c.h.b16 %v3000
    %v3633 = vunpack.c.l.b16 %v3001
    %v3634 = vunpack.c.h.b16 %v3001
    %v3635 = vunpack.c.l.b16 %v3002
    %v3636 = vunpack.c.h.b16 %v3002
    %v3637 = vunpack.c.l.b16 %v3003
    %v3638 = vunpack.c.h.b16 %v3003
    %v3639 = vunpack.c.l.b16 %v3004
    %v3640 = vunpack.c.h.b16 %v3004
    %v3641 = vunpack.c.l.b16 %v3005
    %v3642 = vunpack.c.h.b16 %v3005
    %v3643 = vunpack.c.l.b16 %v3006
    %v3644 = vunpack.c.h.b16 %v3006
    %v3645 = vunpack.c.l.b16 %v3007
    %v3646 = vunpack.c.h.b16 %v3007
    %v3647 = vunpack.c.l.b16 %v3008
    %v3648 = vunpack.c.h.b16 %v3008
    %v3649 = vunpack.c.l.b16 %v3009
    %v3650 = vunpack.c.h.b16 %v3009
    %v3651 = vunpack.c.l.b16 %v3010
    %v3652 = vunpack.c.h.b16 %v3010
    %v3653 = vunpack.c.l.b16 %v3011
    %v3654 = vunpack.c.h.b16 %v3011
    %v3655 = vunpack.c.l.b16 %v3012
    %v3656 = vunpack.c.h.b16 %v3012
    %v3657 = vunpack.c.l.b16 %v3013
    %v3658 = vunpack.c.h.b16 %v3013
    %v3659 = vunpack.c.l.b16 %v3014
    %v3660 = vunpack.c.h.b16 %v3014
    %v3661 = vunpack.c.l.b16 %v3015
    %v3662 = vunpack.c.h.b16 %v3015
    %v3663 = vunpack.c.l.b16 %v3016
    %v3664 = vunpack.c.h.b16 %v3016
    %v3665 = vunpack.c.l.b16 %v3017
    %v3666 = vunpack.c.h.b16 %v3017
    %v3667 = vunpack.c.l.b16 %v3018
    %v3668 = vunpack.c.h.b16 %v3018
    %v3669 = vunpack.c.l.b16 %v3019
    %v3670 = vunpack.c.h.b16 %v3019
    %v3671 = vunpack.c.l.b16 %v3020
    %v3672 = vunpack.c.h.b16 %v3020
    %v3673 = vunpack.c.l.b16 %v3021
    %v3674 = vunpack.c.h.b16 %v3021
    %v3675 = vunpack.c.l.b16 %v3022
    %v3676 = vunpack.c.h.b16 %v3022
    %v3677 = vunpack.c.l.b16 %v3023
    %v3678 = vunpack.c.h.b16 %v3023
    %v3679 = vunpack.c.l.b16 %v3024
    %v3680 = vunpack.c.h.b16 %v3024
    %v3681 = vunpack.c.l.b16 %v3025
    %v3682 = vunpack.c.h.b16 %v3025
    %v3683 = vunpack.c.l.b16 %v3026
    %v3684 = vunpack.c.h.b16 %v3026
    %v3685 = vunpack.c.l.b16 %v3027
    %v3686 = vunpack.c.h.b16 %v3027
    %v3687 = vunpack.c.l.b16 %v3028
    %v3688 = vunpack.c.h.b16 %v3028
    %v3689 = vunpack.c.l.b16 %v3029
    %v3690 = vunpack.c.h.b16 %v3029
    %v3691 = vunpack.c.l.b16 %v3030
    %v3692 = vunpack.c.h.b16 %v3030
    %v3693 = vunpack.c.l.b16 %v3031
    %v3694 = vunpack.c.h.b16 %v3031
    %v3695 = vunpack.c.l.b16 %v3032
    %v3696 = vunpack.c.h.b16 %v3032
    %v3697 = vunpack.c.l.b16 %v3033
    %v3698 = vunpack.c.h.b16 %v3033
    %v3699 = vunpack.c.l.b16 %v3034
    %v3700 = vunpack.c.h.b16 %v3034
    %v3701 = vunpack.c.l.b16 %v3035
    %v3702 = vunpack.c.h.b16 %v3035
    %v3703 = vunpack.c.l.b16 %v3036
    %v3704 = vunpack.c.h.b16 %v3036
    %v3705 = vunpack.c.l.b16 %v3037
    %v3706 = vunpack.c.h.b16 %v3037
    %v3707 = vunpack.c.l.b16 %v3038
    %v3708 = vunpack.c.h.b16 %v3038
    %v3709 = vunpack.c.l.b16 %v3039
    %v3710 = vunpack.c.h.b16 %v3039
    %v3711 = vunpack.c.l.b16 %v3040
    %v3712 = vunpack.c.h.b16 %v3040
    %v3713 = vunpack.c.l.b16 %v3041
    %v3714 = vunpack.c.h.b16 %v3041
    %v3715 = vunpack.c.l.b16 %v3042
    %v3716 = vunpack.c.h.b16 %v3042
    %v3717 = vunpack.c.l.b16 %v3043
    %v3718 = vunpack.c.h.b16 %v3043
    %v3719 = vunpack.c.l.b16 %v3044
    %v3720 = vunpack.c.h.b16 %v3044
    %v3721 = vunpack.c.l.b16 %v3045
    %v3722 = vunpack.c.h.b16 %v3045
    %v3723 = vunpack.c.l.b16 %v3046
    %v3724 = vunpack.c.h.b16 %v3046
    %v3725 = vunpack.c.l.b16 %v3047
    %v3726 = vunpack.c.h.b16 %v3047
    %v3727 = vunpack.c.l.b16 %v3048
    %v3728 = vunpack.c.h.b16 %v3048
    %v3729 = vunpack.c.l.b16 %v3049
    %v3730 = vunpack.c.h.b16 %v3049
    %v3731 = vunpack.c.l.b16 %v3050
    %v3732 = vunpack.c.h.b16 %v3050
    %v3733 = vunpack.c.l.b16 %v3051
    %v3734 = vunpack.c.h.b16 %v3051
    %v3735 = vunpack.c.l.b16 %v3052
    %v3736 = vunpack.c.h.b16 %v3052
    %v3737 = vunpack.c.l.b16 %v3053
    %v3738 = vunpack.c.h.b16 %v3053
    %v3739 = vunpack.c.l.b16 %v3054
    %v3740 = vunpack.c.h.b16 %v3054
    %v3741 = vunpack.c.l.b16 %v3055
    %v3742 = vunpack.c.h.b16 %v3055
    %v3743 = vunpack.c.l.b16 %v3056
    %v3744 = vunpack.c.h.b16 %v3056
    %v3745 = vunpack.c.l.b16 %v3057
    %v3746 = vunpack.c.h.b16 %v3057
    %v3747 = vunpack.c.l.b16 %v3058
    %v3748 = vunpack.c.h.b16 %v3058
    %v3749 = vunpack.c.l.b16 %v3059
    %v3750 = vunpack.c.h.b16 %v3059
    %v3751 = vunpack.c.l.b16 %v3060
    %v3752 = vunpack.c.h.b16 %v3060
    %v3753 = vunpack.c.l.b16 %v3061
    %v3754 = vunpack.c.h.b16 %v3061
    %v3755 = vunpack.c.l.b16 %v3062
    %v3756 = vunpack.c.h.b16 %v3062
    %v3757 = vunpack.c.l.b16 %v3063
    %v3758 = vunpack.c.h.b16 %v3063
    %v3759 = vunpack.c.l.b16 %v3064
    %v3760 = vunpack.c.h.b16 %v3064
    %v3761 = vunpack.c.l.b16 %v3065
    %v3762 = vunpack.c.h.b16 %v3065
    %v3763 = vunpack.c.l.b16 %v3066
    %v3764 = vunpack.c.h.b16 %v3066
    %v3765 = vunpack.c.l.b16 %v3067
    %v3766 = vunpack.c.h.b16 %v3067
    %v3767 = vunpack.c.l.b16 %v3068
    %v3768 = vunpack.c.h.b16 %v3068
    %v3769 = vunpack.c.l.b16 %v3069
    %v3770 = vunpack.c.h.b16 %v3069
    %v3771 = vunpack.c.l.b16 %v3070
    %v3772 = vunpack.c.h.b16 %v3070
    %v3773 = vunpack.c.l.b16 %v3071
    %v3774 = vunpack.c.h.b16 %v3071
    %v3775 = vunpack.c.l.b16 %v3072
    %v3776 = vunpack.c.h.b16 %v3072
    %v3777 = vunpack.c.l.b16 %v3073
    %v3778 = vunpack.c.h.b16 %v3073
    %v3779 = vunpack.c.l.b16 %v3074
    %v3780 = vunpack.c.h.b16 %v3074
    %v3781 = vunpack.c.l.b16 %v3075
    %v3782 = vunpack.c.h.b16 %v3075
    %v3783 = vunpack.c.l.b16 %v3076
    %v3784 = vunpack.c.h.b16 %v3076
    %v3785 = vunpack.c.l.b16 %v3077
    %v3786 = vunpack.c.h.b16 %v3077
    %v3787 = vunpack.c.l.b16 %v3078
    %v3788 = vunpack.c.h.b16 %v3078
    %v3789 = vunpack.c.l.b16 %v3079
    %v3790 = vunpack.c.h.b16 %v3079
    %v3791 = vunpack.c.l.b16 %v3080
    %v3792 = vunpack.c.h.b16 %v3080
    %v3793 = vunpack.c.l.b16 %v3081
    %v3794 = vunpack.c.h.b16 %v3081
    %v3795 = vunpack.c.l.b16 %v3082
    %v3796 = vunpack.c.h.b16 %v3082
    %v3797 = vunpack.c.l.b16 %v3083
    %v3798 = vunpack.c.h.b16 %v3083
    %v3799 = vunpack.c.l.b16 %v3084
    %v3800 = vunpack.c.h.b16 %v3084
    %v3801 = vunpack.c.l.b16 %v3085
    %v3802 = vunpack.c.h.b16 %v3085
    %v3803 = vunpack.c.l.b16 %v3086
    %v3804 = vunpack.c.h.b16 %v3086
    %v3805 = vunpack.c.l.b16 %v3087
    %v3806 = vunpack.c.h.b16 %v3087
    %v3807 = vunpack.c.l.b16 %v3088
    %v3808 = vunpack.c.h.b16 %v3088
    %v3809 = vunpack.c.l.b16 %v3089
    %v3810 = vunpack.c.h.b16 %v3089
    %v3811 = vunpack.c.l.b16 %v3090
    %v3812 = vunpack.c.h.b16 %v3090
    %v3813 = vunpack.c.l.b16 %v3091
    %v3814 = vunpack.c.h.b16 %v3091
    %v3815 = vunpack.c.l.b16 %v3092
    %v3816 = vunpack.c.h.b16 %v3092
    %v3817 = vunpack.c.l.b16 %v3093
    %v3818 = vunpack.c.h.b16 %v3093
    %v3819 = vunpack.c.l.b16 %v3094
    %v3820 = vunpack.c.h.b16 %v3094
    %v3821 = vunpack.c.l.b16 %v3095
    %v3822 = vunpack.c.h.b16 %v3095
    %v3823 = vunpack.c.l.b16 %v3096
    %v3824 = vunpack.c.h.b16 %v3096
    %v3825 = vunpack.c.l.b16 %v3097
    %v3826 = vunpack.c.h.b16 %v3097
    %v3827 = vunpack.c.l.b16 %v3098
    %v3828 = vunpack.c.h.b16 %v3098
    %v3829 = vunpack.c.l.b16 %v3099
    %v3830 = vunpack.c.h.b16 %v3099
    %v3831 = vunpack.c.l.b16 %v3100
    %v3832 = vunpack.c.h.b16 %v3100
    %v3833 = vunpack.c.l.b16 %v3101
    %v3834 = vunpack.c.h.b16 %v3101
    %v3835 = vunpack.c.l.b16 %v3102
    %v3836 = vunpack.c.h.b16 %v3102
    %v3837 = vunpack.c.l.b16 %v3103
    %v3838 = vunpack.c.h.b16 %v3103
    %v3839 = vunpack.c.l.b16 %v3104
    %v3840 = vunpack.c.h.b16 %v3104
    %v3841 = vunpack.c.l.b16 %v3105
    %v3842 = vunpack.c.h.b16 %v3105
    %v3843 = vunpack.c.l.b16 %v3106
    %v3844 = vunpack.c.h.b16 %v3106
    %v3845 = vunpack.c.l.b16 %v3107
    %v3846 = vunpack.c.h.b16 %v3107
    %v3847 = vunpack.c.l.b16 %v3108
    %v3848 = vunpack.c.h.b16 %v3108
    %v3849 = vunpack.c.l.b16 %v3109
    %v3850 = vunpack.c.h.b16 %v3109
    %v3851 = vunpack.c.l.b16 %v3110
    %v3852 = vunpack.c.h.b16 %v3110
    %v3853 = vunpack.c.l.b16 %v3111
    %v3854 = vunpack.c.h.b16 %v3111
    %v3855 = vunpack.c.l.b16 %v3112
    %v3856 = vunpack.c.h.b16 %v3112
    %v3857 = vunpack.c.l.b16 %v3113
    %v3858 = vunpack.c.h.b16 %v3113
    %v3859 = vunpack.c.l.b16 %v3114
    %v3860 = vunpack.c.h.b16 %v3114
    %v3861 = vunpack.c.l.b16 %v3115
    %v3862 = vunpack.c.h.b16 %v3115
    %v3863 = vunpack.c.l.b16 %v3116
    %v3864 = vunpack.c.h.b16 %v3116
    %v3865 = vunpack.c.l.b16 %v3117
    %v3866 = vunpack.c.h.b16 %v3117
    %v3867 = vunpack.c.l.b16 %v3118
    %v3868 = vunpack.c.h.b16 %v3118
    %v3869 = vunpack.c.l.b16 %v3119
    %v3870 = vunpack.c.h.b16 %v3119
    %v3871 = vunpack.c.l.b16 %v3120
    %v3872 = vunpack.c.h.b16 %v3120
    %v3873 = vunpack.c.l.b16 %v3121
    %v3874 = vunpack.c.h.b16 %v3121
    %v3875 = vunpack.c.l.b16 %v3122
    %v3876 = vunpack.c.h.b16 %v3122
    %v3877 = vunpack.c.l.b16 %v3123
    %v3878 = vunpack.c.h.b16 %v3123
    %v3879 = vunpack.c.l.b16 %v3124
    %v3880 = vunpack.c.h.b16 %v3124
    %v3881 = vunpack.c.l.b16 %v3125
    %v3882 = vunpack.c.h.b16 %v3125
    %v3883 = vunpack.c.l.b16 %v3126
    %v3884 = vunpack.c.h.b16 %v3126
    %v3885 = vunpack.c.l.b16 %v3127
    %v3886 = vunpack.c.h.b16 %v3127
    %v3887 = vunpack.c.l.b16 %v3128
    %v3888 = vunpack.c.h.b16 %v3128
    %v3889 = vunpack.c.l.b16 %v3129
    %v3890 = vunpack.c.h.b16 %v3129
    %v3891 = vunpack.c.l.b16 %v3130
    %v3892 = vunpack.c.h.b16 %v3130
    %v3893 = vunpack.c.l.b16 %v3131
    %v3894 = vunpack.c.h.b16 %v3131
    %v3895 = vunpack.c.l.b16 %v3132
    %v3896 = vunpack.c.h.b16 %v3132
    %v3897 = vunpack.c.l.b16 %v3133
    %v3898 = vunpack.c.h.b16 %v3133
    %v3899 = vunpack.c.l.b16 %v3134
    %v3900 = vunpack.c.h.b16 %v3134
    %v3901 = vunpack.c.l.b16 %v3135
    %v3902 = vunpack.c.h.b16 %v3135
    %v3903 = vunpack.c.l.b16 %v3136
    %v3904 = vunpack.c.h.b16 %v3136
    %v3905 = vunpack.c.l.b16 %v3137
    %v3906 = vunpack.c.h.b16 %v3137
    %v3907 = vunpack.c.l.b16 %v3138
    %v3908 = vunpack.c.h.b16 %v3138
    %v3909 = vunpack.c.l.b16 %v3139
    %v3910 = vunpack.c.h.b16 %v3139
    %v3911 = vunpack.c.l.b16 %v3140
    %v3912 = vunpack.c.h.b16 %v3140
    %v3913 = vunpack.c.l.b16 %v3141
    %v3914 = vunpack.c.h.b16 %v3141
    %v3915 = vunpack.c.l.b16 %v3142
    %v3916 = vunpack.c.h.b16 %v3142
    %v3917 = vunpack.c.l.b16 %v3143
    %v3918 = vunpack.c.h.b16 %v3143
    %v3919 = vunpack.c.l.b16 %v3144
    %v3920 = vunpack.c.h.b16 %v3144
    %v3921 = vunpack.c.l.b16 %v3145
    %v3922 = vunpack.c.h.b16 %v3145
    %v3923 = vunpack.c.l.b16 %v3146
    %v3924 = vunpack.c.h.b16 %v3146
    %v3925 = vunpack.c.l.b16 %v3147
    %v3926 = vunpack.c.h.b16 %v3147
    %v3927 = vunpack.c.l.b16 %v3148
    %v3928 = vunpack.c.h.b16 %v3148
    %v3929 = vunpack.c.l.b16 %v3149
    %v3930 = vunpack.c.h.b16 %v3149
    %v3931 = vunpack.c.l.b16 %v3150
    %v3932 = vunpack.c.h.b16 %v3150
    %v3933 = vunpack.c.l.b16 %v3151
    %v3934 = vunpack.c.h.b16 %v3151
    %v3935 = vunpack.c.l.b16 %v3152
    %v3936 = vunpack.c.h.b16 %v3152
    %v3937 = vunpack.c.l.b16 %v3153
    %v3938 = vunpack.c.h.b16 %v3153
    %v3939 = vunpack.c.l.b16 %v3154
    %v3940 = vunpack.c.h.b16 %v3154
    %v3941 = vunpack.c.l.b16 %v3155
    %v3942 = vunpack.c.h.b16 %v3155
    %v3943 = vunpack.c.l.b16 %v3156
    %v3944 = vunpack.c.h.b16 %v3156
    %v3945 = vunpack.c.l.b16 %v3157
    %v3946 = vunpack.c.h.b16 %v3157
    %v3947 = vunpack.c.l.b16 %v3158
    %v3948 = vunpack.c.h.b16 %v3158
    %v3949 = vunpack.c.l.b16 %v3159
    %v3950 = vunpack.c.h.b16 %v3159
    %v3951 = vunpack.c.l.b16 %v3160
    %v3952 = vunpack.c.h.b16 %v3160
    %v3953 = vunpack.c.l.b16 %v3161
    %v3954 = vunpack.c.h.b16 %v3161
    %v3955 = vunpack.c.l.b16 %v3162
    %v3956 = vunpack.c.h.b16 %v3162
    %v3957 = vunpack.c.l.b16 %v3163
    %v3958 = vunpack.c.h.b16 %v3163
    %v3959 = vunpack.c.l.b16 %v3164
    %v3960 = vunpack.c.h.b16 %v3164
    %v3961 = vunpack.c.l.b16 %v3165
    %v3962 = vunpack.c.h.b16 %v3165
    %v3963 = vunpack.c.l.b16 %v3166
    %v3964 = vunpack.c.h.b16 %v3166
    %v3965 = vunpack.c.l.b16 %v3167
    %v3966 = vunpack.c.h.b16 %v3167
    %v3967 = vunpack.c.l.b16 %v3168
    %v3968 = vunpack.c.h.b16 %v3168
    %v3969 = vunpack.c.l.b16 %v3169
    %v3970 = vunpack.c.h.b16 %v3169
    %v3971 = vunpack.c.l.b16 %v3170
    %v3972 = vunpack.c.h.b16 %v3170
    %v3973 = vunpack.c.l.b16 %v3171
    %v3974 = vunpack.c.h.b16 %v3171
    %v3975 = vunpack.c.l.b16 %v3172
    %v3976 = vunpack.c.h.b16 %v3172
    %v3977 = vunpack.c.l.b16 %v3173
    %v3978 = vunpack.c.h.b16 %v3173
    %v3979 = vunpack.c.l.b16 %v3174
    %v3980 = vunpack.c.h.b16 %v3174
    %v3981 = vunpack.c.l.b16 %v3175
    %v3982 = vunpack.c.h.b16 %v3175
    %v3983 = vunpack.c.l.b16 %v3176
    %v3984 = vunpack.c.h.b16 %v3176
    %v3985 = vunpack.c.l.b16 %v3177
    %v3986 = vunpack.c.h.b16 %v3177
    %v3987 = vunpack.c.l.b16 %v3178
    %v3988 = vunpack.c.h.b16 %v3178
    %v3989 = vunpack.c.l.b16 %v3179
    %v3990 = vunpack.c.h.b16 %v3179
    %v3991 = vunpack.c.l.b16 %v3180
    %v3992 = vunpack.c.h.b16 %v3180
    %v3993 = vunpack.c.l.b16 %v3181
    %v3994 = vunpack.c.h.b16 %v3181
    %v3995 = vunpack.c.l.b16 %v3182
    %v3996 = vunpack.c.h.b16 %v3182
    %v3997 = vunpack.c.l.b16 %v3183
    %v3998 = vunpack.c.h.b16 %v3183
    %v3999 = vunpack.c.l.b16 %v3184
    %v4000 = vunpack.c.h.b16 %v3184
    %v4001 = vunpack.c.l.b16 %v3185
    %v4002 = vunpack.c.h.b16 %v3185
    %v4003 = vunpack.c.l.b16 %v3186
    %v4004 = vunpack.c.h.b16 %v3186
    %v4005 = vunpack.c.l.b16 %v3187
    %v4006 = vunpack.c.h.b16 %v3187
    %v4007 = vunpack.c.l.b16 %v3188
    %v4008 = vunpack.c.h.b16 %v3188
    %v4009 = vunpack.c.l.b16 %v3189
    %v4010 = vunpack.c.h.b16 %v3189
    %v4011 = vunpack.c.l.b16 %v3190
    %v4012 = vunpack.c.h.b16 %v3190
    %v4013 = vunpack.c.l.b16 %v3191
    %v4014 = vunpack.c.h.b16 %v3191
    %v4015 = vunpack.c.l.b16 %v3192
    %v4016 = vunpack.c.h.b16 %v3192
    %v4017 = vunpack.c.l.b16 %v3193
    %v4018 = vunpack.c.h.b16 %v3193
    %v4019 = vunpack.c.l.b16 %v3194
    %v4020 = vunpack.c.h.b16 %v3194
    %v4021 = vunpack.c.l.b16 %v3195
    %v4022 = vunpack.c.h.b16 %v3195
    %v4023 = vunpack.c.l.b16 %v3196
    %v4024 = vunpack.c.h.b16 %v3196
    %v4025 = vunpack.c.l.b16 %v3197
    %v4026 = vunpack.c.h.b16 %v3197
    %v4027 = vunpack.c.l.b16 %v3198
    %v4028 = vunpack.c.h.b16 %v3198
    %v4029 = vunpack.c.l.b16 %v3199
    %v4030 = vunpack.c.h.b16 %v3199
    %v4031 = vunpack.c.l.b16 %v3200
    %v4032 = vunpack.c.h.b16 %v3200
    %v4033 = vpack.c.b16 %v3525, %v3521
    %v4034 = vpack.c.b16 %v3526, %v3522
    %v4035 = vpack.c.b16 %v3527, %v3523
    %v4036 = vpack.c.b16 %v3528, %v3524
    %v4037 = vpack.c.b16 %v3533, %v3529
    %v4038 = vpack.c.b16 %v3534, %v3530
    %v4039 = vpack.c.b16 %v3535, %v3531
    %v4040 = vpack.c.b16 %v3536, %v3532
    %v4041 = vpack.c.b16 %v3541, %v3537
    %v4042 = vpack.c.b16 %v3542, %v3538
    %v4043 = vpack.c.b16 %v3543, %v3539
    %v4044 = vpack.c.b16 %v3544, %v3540
    %v4045 = vpack.c.b16 %v3549, %v3545
    %v4046 = vpack.c.b16 %v3550, %v3546
    %v4047 = vpack.c.b16 %v3551, %v3547
    %v4048 = vpack.c.b16 %v3552, %v3548
    %v4049 = vpack.c.b16 %v3557, %v3553
    %v4050 = vpack.c.b16 %v3558, %v3554
    %v4051 = vpack.c.b16 %v3559, %v3555
    %v4052 = vpack.c.b16 %v3560, %v3556
    %v4053 = vpack.c.b16 %v3565, %v3561
    %v4054 = vpack.c.b16 %v3566, %v3562
    %v4055 = vpack.c.b16 %v3567, %v3563
    %v4056 = vpack.c.b16 %v3568, %v3564
    %v4057 = vpack.c.b16 %v3573, %v3569
    %v4058 = vpack.c.b16 %v3574, %v3570
    %v4059 = vpack.c.b16 %v3575, %v3571
    %v4060 = vpack.c.b16 %v3576, %v3572
    %v4061 = vpack.c.b16 %v3581, %v3577
    %v4062 = vpack.c.b16 %v3582, %v3578
    %v4063 = vpack.c.b16 %v3583, %v3579
    %v4064 = vpack.c.b16 %v3584, %v3580
    %v4065 = vpack.c.b16 %v3589, %v3585
    %v4066 = vpack.c.b16 %v3590, %v3586
    %v4067 = vpack.c.b16 %v3591, %v3587
    %v4068 = vpack.c.b16 %v3592, %v3588
    %v4069 = vpack.c.b16 %v3597, %v3593
    %v4070 = vpack.c.b16 %v3598, %v3594
    %v4071 = vpack.c.b16 %v3599, %v3595
    %v4072 = vpack.c.b16 %v3600, %v3596
    %v4073 = vpack.c.b16 %v3605, %v3601
    %v4074 = vpack.c.b16 %v3606, %v3602
    %v4075 = vpack.c.b16 %v3607, %v3603
    %v4076 = vpack.c.b16 %v3608, %v3604
    %v4077 = vpack.c.b16 %v3613, %v3609
    %v4078 = vpack.c.b16 %v3614, %v3610
    %v4079 = vpack.c.b16 %v3615, %v3611
    %v4080 = vpack.c.b16 %v3616, %v3612
    %v4081 = vpack.c.b16 %v3621, %v3617
    %v4082 = vpack.c.b16 %v3622, %v3618
    %v4083 = vpack.c.b16 %v3623, %v3619
    %v4084 = vpack.c.b16 %v3624, %v3620
    %v4085 = vpack.c.b16 %v3629, %v3625
    %v4086 = vpack.c.b16 %v3630, %v3626
    %v4087 = vpack.c.b16 %v3631, %v3627
    %v4088 = vpack.c.b16 %v3632, %v3628
    %v4089 = vpack.c.b16 %v3637, %v3633
    %v4090 = vpack.c.b16 %v3638, %v3634
    %v4091 = vpack.c.b16 %v3639, %v3635
    %v4092 = vpack.c.b16 %v3640, %v3636
    %v4093 = vpack.c.b16 %v3645, %v3641
    %v4094 = vpack.c.b16 %v3646, %v3642
    %v4095 = vpack.c.b16 %v3647, %v3643
    %v4096 = vpack.c.b16 %v3648, %v3644
    %v4097 = vpack.c.b16 %v3653, %v3649
    %v4098 = vpack.c.b16 %v3654, %v3650
    %v4099 = vpack.c.b16 %v3655, %v3651
    %v4100 = vpack.c.b16 %v3656, %v3652
    %v4101 = vpack.c.b16 %v3661, %v3657
    %v4102 = vpack.c.b16 %v3662, %v3658
    %v4103 = vpack.c.b16 %v3663, %v3659
    %v4104 = vpack.c.b16 %v3664, %v3660
    %v4105 = vpack.c.b16 %v3669, %v3665
    %v4106 = vpack.c.b16 %v3670, %v3666
    %v4107 = vpack.c.b16 %v3671, %v3667
    %v4108 = vpack.c.b16 %v3672, %v3668
    %v4109 = vpack.c.b16 %v3677, %v3673
    %v4110 = vpack.c.b16 %v3678, %v3674
    %v4111 = vpack.c.b16 %v3679, %v3675
    %v4112 = vpack.c.b16 %v3680, %v3676
    %v4113 = vpack.c.b16 %v3685, %v3681
    %v4114 = vpack.c.b16 %v3686, %v3682
    %v4115 = vpack.c.b16 %v3687, %v3683
    %v4116 = vpack.c.b16 %v3688, %v3684
    %v4117 = vpack.c.b16 %v3693, %v3689
    %v4118 = vpack.c.b16 %v3694, %v3690
    %v4119 = vpack.c.b16 %v3695, %v3691
    %v4120 = vpack.c.b16 %v3696, %v3692
    %v4121 = vpack.c.b16 %v3701, %v3697
    %v4122 = vpack.c.b16 %v3702, %v3698
    %v4123 = vpack.c.b16 %v3703, %v3699
    %v4124 = vpack.c.b16 %v3704, %v3700
    %v4125 = vpack.c.b16 %v3709, %v3705
    %v4126 = vpack.c.b16 %v3710, %v3706
    %v4127 = vpack.c.b16 %v3711, %v3707
    %v4128 = vpack.c.b16 %v3712, %v3708
    %v4129 = vpack.c.b16 %v3717, %v3713
    %v4130 = vpack.c.b16 %v3718, %v3714
    %v4131 = vpack.c.b16 %v3719, %v3715
    %v4132 = vpack.c.b16 %v3720, %v3716
    %v4133 = vpack.c.b16 %v3725, %v3721
    %v4134 = vpack.c.b16 %v3726, %v3722
    %v4135 = vpack.c.b16 %v3727, %v3723
    %v4136 = vpack.c.b16 %v3728, %v3724
    %v4137 = vpack.c.b16 %v3733, %v3729
    %v4138 = vpack.c.b16 %v3734, %v3730
    %v4139 = vpack.c.b16 %v3735, %v3731
    %v4140 = vpack.c.b16 %v3736, %v3732
    %v4141 = vpack.c.b16 %v3741, %v3737
    %v4142 = vpack.c.b16 %v3742, %v3738
    %v4143 = vpack.c.b16 %v3743, %v3739
    %v4144 = vpack.c.b16 %v3744, %v3740
    %v4145 = vpack.c.b16 %v3749, %v3745
    %v4146 = vpack.c.b16 %v3750, %v3746
    %v4147 = vpack.c.b16 %v3751, %v3747
    %v4148 = vpack.c.b16 %v3752, %v3748
    %v4149 = vpack.c.b16 %v3757, %v3753
    %v4150 = vpack.c.b16 %v3758, %v3754
    %v4151 = vpack.c.b16 %v3759, %v3755
    %v4152 = vpack.c.b16 %v3760, %v3756
    %v4153 = vpack.c.b16 %v3765, %v3761
    %v4154 = vpack.c.b16 %v3766, %v3762
    %v4155 = vpack.c.b16 %v3767, %v3763
    %v4156 = vpack.c.b16 %v3768, %v3764
    %v4157 = vpack.c.b16 %v3773, %v3769
    %v4158 = vpack.c.b16 %v3774, %v3770
    %v4159 = vpack.c.b16 %v3775, %v3771
    %v4160 = vpack.c.b16 %v3776, %v3772
    %v4161 = vpack.c.b16 %v3781, %v3777
    %v4162 = vpack.c.b16 %v3782, %v3778
    %v4163 = vpack.c.b16 %v3783, %v3779
    %v4164 = vpack.c.b16 %v3784, %v3780
    %v4165 = vpack.c.b16 %v3789, %v3785
    %v4166 = vpack.c.b16 %v3790, %v3786
    %v4167 = vpack.c.b16 %v3791, %v3787
    %v4168 = vpack.c.b16 %v3792, %v3788
    %v4169 = vpack.c.b16 %v3797, %v3793
    %v4170 = vpack.c.b16 %v3798, %v3794
    %v4171 = vpack.c.b16 %v3799, %v3795
    %v4172 = vpack.c.b16 %v3800, %v3796
    %v4173 = vpack.c.b16 %v3805, %v3801
    %v4174 = vpack.c.b16 %v3806, %v3802
    %v4175 = vpack.c.b16 %v3807, %v3803
    %v4176 = vpack.c.b16 %v3808, %v3804
    %v4177 = vpack.c.b16 %v3813, %v3809
    %v4178 = vpack.c.b16 %v3814, %v3810
    %v4179 = vpack.c.b16 %v3815, %v3811
    %v4180 = vpack.c.b16 %v3816, %v3812
    %v4181 = vpack.c.b16 %v3821, %v3817
    %v4182 = vpack.c.b16 %v3822, %v3818
    %v4183 = vpack.c.b16 %v3823, %v3819
    %v4184 = vpack.c.b16 %v3824, %v3820
    %v4185 = vpack.c.b16 %v3829, %v3825
    %v4186 = vpack.c.b16 %v3830, %v3826
    %v4187 = vpack.c.b16 %v3831, %v3827
    %v4188 = vpack.c.b16 %v3832, %v3828
    %v4189 = vpack.c.b16 %v3837, %v3833
    %v4190 = vpack.c.b16 %v3838, %v3834
    %v4191 = vpack.c.b16 %v3839, %v3835
    %v4192 = vpack.c.b16 %v3840, %v3836
    %v4193 = vpack.c.b16 %v3845, %v3841
    %v4194 = vpack.c.b16 %v3846, %v3842
    %v4195 = vpack.c.b16 %v3847, %v3843
    %v4196 = vpack.c.b16 %v3848, %v3844
    %v4197 = vpack.c.b16 %v3853, %v3849
    %v4198 = vpack.c.b16 %v3854, %v3850
    %v4199 = vpack.c.b16 %v3855, %v3851
    %v4200 = vpack.c.b16 %v3856, %v3852
    %v4201 = vpack.c.b16 %v3861, %v3857
    %v4202 = vpack.c.b16 %v3862, %v3858
    %v4203 = vpack.c.b16 %v3863, %v3859
    %v4204 = vpack.c.b16 %v3864, %v3860
    %v4205 = vpack.c.b16 %v3869, %v3865
    %v4206 = vpack.c.b16 %v3870, %v3866
    %v4207 = vpack.c.b16 %v3871, %v3867
    %v4208 = vpack.c.b16 %v3872, %v3868
    %v4209 = vpack.c.b16 %v3877, %v3873
    %v4210 = vpack.c.b16 %v3878, %v3874
    %v4211 = vpack.c.b16 %v3879, %v3875
    %v4212 = vpack.c.b16 %v3880, %v3876
    %v4213 = vpack.c.b16 %v3885, %v3881
    %v4214 = vpack.c.b16 %v3886, %v3882
    %v4215 = vpack.c.b16 %v3887, %v3883
    %v4216 = vpack.c.b16 %v3888, %v3884
    %v4217 = vpack.c.b16 %v3893, %v3889
    %v4218 = vpack.c.b16 %v3894, %v3890
    %v4219 = vpack.c.b16 %v3895, %v3891
    %v4220 = vpack.c.b16 %v3896, %v3892
    %v4221 = vpack.c.b16 %v3901, %v3897
    %v4222 = vpack.c.b16 %v3902, %v3898
    %v4223 = vpack.c.b16 %v3903, %v3899
    %v4224 = vpack.c.b16 %v3904, %v3900
    %v4225 = vpack.c.b16 %v3909, %v3905
    %v4226 = vpack.c.b16 %v3910, %v3906
    %v4227 = vpack.c.b16 %v3911, %v3907
    %v4228 = vpack.c.b16 %v3912, %v3908
    %v4229 = vpack.c.b16 %v3917, %v3913
    %v4230 = vpack.c.b16 %v3918, %v3914
    %v4231 = vpack.c.b16 %v3919, %v3915
    %v4232 = vpack.c.b16 %v3920, %v3916
    %v4233 = vpack.c.b16 %v3925, %v3921
    %v4234 = vpack.c.b16 %v3926, %v3922
    %v4235 = vpack.c.b16 %v3927, %v3923
    %v4236 = vpack.c.b16 %v3928, %v3924
    %v4237 = vpack.c.b16 %v3933, %v3929
    %v4238 = vpack.c.b16 %v3934, %v3930
    %v4239 = vpack.c.b16 %v3935, %v3931
    %v4240 = vpack.c.b16 %v3936, %v3932
    %v4241 = vpack.c.b16 %v3941, %v3937
    %v4242 = vpack.c.b16 %v3942, %v3938
    %v4243 = vpack.c.b16 %v3943, %v3939
    %v4244 = vpack.c.b16 %v3944, %v3940
    %v4245 = vpack.c.b16 %v3949, %v3945
    %v4246 = vpack.c.b16 %v3950, %v3946
    %v4247 = vpack.c.b16 %v3951, %v3947
    %v4248 = vpack.c.b16 %v3952, %v3948
    %v4249 = vpack.c.b16 %v3957, %v3953
    %v4250 = vpack.c.b16 %v3958, %v3954
    %v4251 = vpack.c.b16 %v3959, %v3955
    %v4252 = vpack.c.b16 %v3960, %v3956
    %v4253 = vpack.c.b16 %v3965, %v3961
    %v4254 = vpack.c.b16 %v3966, %v3962
    %v4255 = vpack.c.b16 %v3967, %v3963
    %v4256 = vpack.c.b16 %v3968, %v3964
    %v4257 = vpack.c.b16 %v3973, %v3969
    %v4258 = vpack.c.b16 %v3974, %v3970
    %v4259 = vpack.c.b16 %v3975, %v3971
    %v4260 = vpack.c.b16 %v3976, %v3972
    %v4261 = vpack.c.b16 %v3981, %v3977
    %v4262 = vpack.c.b16 %v3982, %v3978
    %v4263 = vpack.c.b16 %v3983, %v3979
    %v4264 = vpack.c.b16 %v3984, %v3980
    %v4265 = vpack.c.b16 %v3989, %v3985
    %v4266 = vpack.c.b16 %v3990, %v3986
    %v4267 = vpack.c.b16 %v3991, %v3987
    %v4268 = vpack.c.b16 %v3992, %v3988
    %v4269 = vpack.c.b16 %v3997, %v3993
    %v4270 = vpack.c.b16 %v3998, %v3994
    %v4271 = vpack.c.b16 %v3999, %v3995
    %v4272 = vpack.c.b16 %v4000, %v3996
    %v4273 = vpack.c.b16 %v4005, %v4001
    %v4274 = vpack.c.b16 %v4006, %v4002
    %v4275 = vpack.c.b16 %v4007, %v4003
    %v4276 = vpack.c.b16 %v4008, %v4004
    %v4277 = vpack.c.b16 %v4013, %v4009
    %v4278 = vpack.c.b16 %v4014, %v4010
    %v4279 = vpack.c.b16 %v4015, %v4011
    %v4280 = vpack.c.b16 %v4016, %v4012
    %v4281 = vpack.c.b16 %v4021, %v4017
    %v4282 = vpack.c.b16 %v4022, %v4018
    %v4283 = vpack.c.b16 %v4023, %v4019
    %v4284 = vpack.c.b16 %v4024, %v4020
    %v4285 = vpack.c.b16 %v4029, %v4025
    %v4286 = vpack.c.b16 %v4030, %v4026
    %v4287 = vpack.c.b16 %v4031, %v4027
    %v4288 = vpack.c.b16 %v4032, %v4028
    %4545 = vmatpush.bf16.msra.mxu0 %v4061
    %4546 = vmatpush.bf16.msra.mxu0 %v4057
    %4547 = vmatpush.bf16.msra.mxu0 %v4053
    %4548 = vmatpush.bf16.msra.mxu0 %v4049
    %4549 = vmatpush.bf16.msra.mxu0 %v4045
    %4550 = vmatpush.bf16.msra.mxu0 %v4041
    %4551 = vmatpush.bf16.msra.mxu0 %v4037
    %4552 = vmatpush.bf16.msra.mxu0 %v4033
    %4553 = vmatmul.bf16.gmra.mxu0 %v3249
    %v4554 = vpop.f32.mrf.mxu0
    %v4555 = vadd.f32 0.0, %v4554
    %v4556 = vpop.f32.mrf.mxu0
    %4557 = vdwg.mxu0
    %4558 = vmatpush.bf16.msra.mxu0 %v4093
    %4559 = vmatpush.bf16.msra.mxu0 %v4089
    %4560 = vmatpush.bf16.msra.mxu0 %v4085
    %4561 = vmatpush.bf16.msra.mxu0 %v4081
    %4562 = vmatpush.bf16.msra.mxu0 %v4077
    %4563 = vmatpush.bf16.msra.mxu0 %v4073
    %4564 = vmatpush.bf16.msra.mxu0 %v4069
    %4565 = vmatpush.bf16.msra.mxu0 %v4065
    %4566 = vmatmul.bf16.gmra.mxu0 %v3250
    %v4567 = vpop.f32.mrf.mxu0
    %v4568 = vadd.f32 %v4555, %v4567
    %v4569 = vpop.f32.mrf.mxu0
    %4570 = vdwg.mxu0
    %4571 = vmatpush.bf16.msra.mxu0 %v4125
    %4572 = vmatpush.bf16.msra.mxu0 %v4121
    %4573 = vmatpush.bf16.msra.mxu0 %v4117
    %4574 = vmatpush.bf16.msra.mxu0 %v4113
    %4575 = vmatpush.bf16.msra.mxu0 %v4109
    %4576 = vmatpush.bf16.msra.mxu0 %v4105
    %4577 = vmatpush.bf16.msra.mxu0 %v4101
    %4578 = vmatpush.bf16.msra.mxu0 %v4097
    %4579 = vmatmul.bf16.gmra.mxu0 %v3251
    %v4580 = vpop.f32.mrf.mxu0
    %v4581 = vadd.f32 %v4568, %v4580
    %v4582 = vpop.f32.mrf.mxu0
    %4583 = vdwg.mxu0
    %4584 = vmatpush.bf16.msra.mxu0 %v4157
    %4585 = vmatpush.bf16.msra.mxu0 %v4153
    %4586 = vmatpush.bf16.msra.mxu0 %v4149
    %4587 = vmatpush.bf16.msra.mxu0 %v4145
    %4588 = vmatpush.bf16.msra.mxu0 %v4141
    %4589 = vmatpush.bf16.msra.mxu0 %v4137
    %4590 = vmatpush.bf16.msra.mxu0 %v4133
    %4591 = vmatpush.bf16.msra.mxu0 %v4129
    %4592 = vmatmul.bf16.gmra.mxu0 %v3252
    %v4593 = vpop.f32.mrf.mxu0
    %v4594 = vadd.f32 %v4581, %v4593
    %v4595 = vpop.f32.mrf.mxu0
    %4596 = vdwg.mxu0
    %4597 = vmatpush.bf16.msra.mxu0 %v4189
    %4598 = vmatpush.bf16.msra.mxu0 %v4185
    %4599 = vmatpush.bf16.msra.mxu0 %v4181
    %4600 = vmatpush.bf16.msra.mxu0 %v4177
    %4601 = vmatpush.bf16.msra.mxu0 %v4173
    %4602 = vmatpush.bf16.msra.mxu0 %v4169
    %4603 = vmatpush.bf16.msra.mxu0 %v4165
    %4604 = vmatpush.bf16.msra.mxu0 %v4161
    %4605 = vmatmul.bf16.gmra.mxu0 %v3253
    %v4606 = vpop.f32.mrf.mxu0
    %v4607 = vadd.f32 %v4594, %v4606
    %v4608 = vpop.f32.mrf.mxu0
    %4609 = vdwg.mxu0
    %4610 = vmatpush.bf16.msra.mxu0 %v4221
    %4611 = vmatpush.bf16.msra.mxu0 %v4217
    %4612 = vmatpush.bf16.msra.mxu0 %v4213
    %4613 = vmatpush.bf16.msra.mxu0 %v4209
    %4614 = vmatpush.bf16.msra.mxu0 %v4205
    %4615 = vmatpush.bf16.msra.mxu0 %v4201
    %4616 = vmatpush.bf16.msra.mxu0 %v4197
    %4617 = vmatpush.bf16.msra.mxu0 %v4193
    %4618 = vmatmul.bf16.gmra.mxu0 %v3254
    %v4619 = vpop.f32.mrf.mxu0
    %v4620 = vadd.f32 %v4607, %v4619
    %v4621 = vpop.f32.mrf.mxu0
    %4622 = vdwg.mxu0
    %4623 = vmatpush.bf16.msra.mxu0 %v4253
    %4624 = vmatpush.bf16.msra.mxu0 %v4249
    %4625 = vmatpush.bf16.msra.mxu0 %v4245
    %4626 = vmatpush.bf16.msra.mxu0 %v4241
    %4627 = vmatpush.bf16.msra.mxu0 %v4237
    %4628 = vmatpush.bf16.msra.mxu0 %v4233
    %4629 = vmatpush.bf16.msra.mxu0 %v4229
    %4630 = vmatpush.bf16.msra.mxu0 %v4225
    %4631 = vmatmul.bf16.gmra.mxu0 %v3255
    %v4632 = vpop.f32.mrf.mxu0
    %v4633 = vadd.f32 %v4620, %v4632
    %v4634 = vpop.f32.mrf.mxu0
    %4635 = vdwg.mxu0
    %4636 = vmatpush.bf16.msra.mxu0 %v4285
    %4637 = vmatpush.bf16.msra.mxu0 %v4281
    %4638 = vmatpush.bf16.msra.mxu0 %v4277
    %4639 = vmatpush.bf16.msra.mxu0 %v4273
    %4640 = vmatpush.bf16.msra.mxu0 %v4269
    %4641 = vmatpush.bf16.msra.mxu0 %v4265
    %4642 = vmatpush.bf16.msra.mxu0 %v4261
    %4643 = vmatpush.bf16.msra.mxu0 %v4257
    %4644 = vmatmul.bf16.gmra.mxu0 %v3256
    %v4645 = vpop.f32.mrf.mxu0
    %v4646 = vadd.f32 %v4633, %v4645
    %v4647 = vpop.f32.mrf.mxu0
    %4648 = vdwg.mxu0
    %4649 = vmatpush.bf16.msra.mxu0 %v4062
    %4650 = vmatpush.bf16.msra.mxu0 %v4058
    %4651 = vmatpush.bf16.msra.mxu0 %v4054
    %4652 = vmatpush.bf16.msra.mxu0 %v4050
    %4653 = vmatpush.bf16.msra.mxu0 %v4046
    %4654 = vmatpush.bf16.msra.mxu0 %v4042
    %4655 = vmatpush.bf16.msra.mxu0 %v4038
    %4656 = vmatpush.bf16.msra.mxu0 %v4034
    %4657 = vmatmul.bf16.gmra.mxu0 %v3249
    %v4658 = vpop.f32.mrf.mxu0
    %v4659 = vadd.f32 0.0, %v4658
    %v4660 = vpop.f32.mrf.mxu0
    %4661 = vdwg.mxu0
    %4662 = vmatpush.bf16.msra.mxu0 %v4094
    %4663 = vmatpush.bf16.msra.mxu0 %v4090
    %4664 = vmatpush.bf16.msra.mxu0 %v4086
    %4665 = vmatpush.bf16.msra.mxu0 %v4082
    %4666 = vmatpush.bf16.msra.mxu0 %v4078
    %4667 = vmatpush.bf16.msra.mxu0 %v4074
    %4668 = vmatpush.bf16.msra.mxu0 %v4070
    %4669 = vmatpush.bf16.msra.mxu0 %v4066
    %4670 = vmatmul.bf16.gmra.mxu0 %v3250
    %v4671 = vpop.f32.mrf.mxu0
    %v4672 = vadd.f32 %v4659, %v4671
    %v4673 = vpop.f32.mrf.mxu0
    %4674 = vdwg.mxu0
    %4675 = vmatpush.bf16.msra.mxu0 %v4126
    %4676 = vmatpush.bf16.msra.mxu0 %v4122
    %4677 = vmatpush.bf16.msra.mxu0 %v4118
    %4678 = vmatpush.bf16.msra.mxu0 %v4114
    %4679 = vmatpush.bf16.msra.mxu0 %v4110
    %4680 = vmatpush.bf16.msra.mxu0 %v4106
    %4681 = vmatpush.bf16.msra.mxu0 %v4102
    %4682 = vmatpush.bf16.msra.mxu0 %v4098
    %4683 = vmatmul.bf16.gmra.mxu0 %v3251
    %v4684 = vpop.f32.mrf.mxu0
    %v4685 = vadd.f32 %v4672, %v4684
    %v4686 = vpop.f32.mrf.mxu0
    %4687 = vdwg.mxu0
    %4688 = vmatpush.bf16.msra.mxu0 %v4158
    %4689 = vmatpush.bf16.msra.mxu0 %v4154
    %4690 = vmatpush.bf16.msra.mxu0 %v4150
    %4691 = vmatpush.bf16.msra.mxu0 %v4146
    %4692 = vmatpush.bf16.msra.mxu0 %v4142
    %4693 = vmatpush.bf16.msra.mxu0 %v4138
    %4694 = vmatpush.bf16.msra.mxu0 %v4134
    %4695 = vmatpush.bf16.msra.mxu0 %v4130
    %4696 = vmatmul.bf16.gmra.mxu0 %v3252
    %v4697 = vpop.f32.mrf.mxu0
    %v4698 = vadd.f32 %v4685, %v4697
    %v4699 = vpop.f32.mrf.mxu0
    %4700 = vdwg.mxu0
    %4701 = vmatpush.bf16.msra.mxu0 %v4190
    %4702 = vmatpush.bf16.msra.mxu0 %v4186
    %4703 = vmatpush.bf16.msra.mxu0 %v4182
    %4704 = vmatpush.bf16.msra.mxu0 %v4178
    %4705 = vmatpush.bf16.msra.mxu0 %v4174
    %4706 = vmatpush.bf16.msra.mxu0 %v4170
    %4707 = vmatpush.bf16.msra.mxu0 %v4166
    %4708 = vmatpush.bf16.msra.mxu0 %v4162
    %4709 = vmatmul.bf16.gmra.mxu0 %v3253
    %v4710 = vpop.f32.mrf.mxu0
    %v4711 = vadd.f32 %v4698, %v4710
    %v4712 = vpop.f32.mrf.mxu0
    %4713 = vdwg.mxu0
    %4714 = vmatpush.bf16.msra.mxu0 %v4222
    %4715 = vmatpush.bf16.msra.mxu0 %v4218
    %4716 = vmatpush.bf16.msra.mxu0 %v4214
    %4717 = vmatpush.bf16.msra.mxu0 %v4210
    %4718 = vmatpush.bf16.msra.mxu0 %v4206
    %4719 = vmatpush.bf16.msra.mxu0 %v4202
    %4720 = vmatpush.bf16.msra.mxu0 %v4198
    %4721 = vmatpush.bf16.msra.mxu0 %v4194
    %4722 = vmatmul.bf16.gmra.mxu0 %v3254
    %v4723 = vpop.f32.mrf.mxu0
    %v4724 = vadd.f32 %v4711, %v4723
    %v4725 = vpop.f32.mrf.mxu0
    %4726 = vdwg.mxu0
    %4727 = vmatpush.bf16.msra.mxu0 %v4254
    %4728 = vmatpush.bf16.msra.mxu0 %v4250
    %4729 = vmatpush.bf16.msra.mxu0 %v4246
    %4730 = vmatpush.bf16.msra.mxu0 %v4242
    %4731 = vmatpush.bf16.msra.mxu0 %v4238
    %4732 = vmatpush.bf16.msra.mxu0 %v4234
    %4733 = vmatpush.bf16.msra.mxu0 %v4230
    %4734 = vmatpush.bf16.msra.mxu0 %v4226
    %4735 = vmatmul.bf16.gmra.mxu0 %v3255
    %v4736 = vpop.f32.mrf.mxu0
    %v4737 = vadd.f32 %v4724, %v4736
    %v4738 = vpop.f32.mrf.mxu0
    %4739 = vdwg.mxu0
    %4740 = vmatpush.bf16.msra.mxu0 %v4286
    %4741 = vmatpush.bf16.msra.mxu0 %v4282
    %4742 = vmatpush.bf16.msra.mxu0 %v4278
    %4743 = vmatpush.bf16.msra.mxu0 %v4274
    %4744 = vmatpush.bf16.msra.mxu0 %v4270
    %4745 = vmatpush.bf16.msra.mxu0 %v4266
    %4746 = vmatpush.bf16.msra.mxu0 %v4262
    %4747 = vmatpush.bf16.msra.mxu0 %v4258
    %4748 = vmatmul.bf16.gmra.mxu0 %v3256
    %v4749 = vpop.f32.mrf.mxu0
    %v4750 = vadd.f32 %v4737, %v4749
    %v4751 = vpop.f32.mrf.mxu0
    %4752 = vdwg.mxu0
    %4753 = vmatpush.bf16.msra.mxu0 %v4063
    %4754 = vmatpush.bf16.msra.mxu0 %v4059
    %4755 = vmatpush.bf16.msra.mxu0 %v4055
    %4756 = vmatpush.bf16.msra.mxu0 %v4051
    %4757 = vmatpush.bf16.msra.mxu0 %v4047
    %4758 = vmatpush.bf16.msra.mxu0 %v4043
    %4759 = vmatpush.bf16.msra.mxu0 %v4039
    %4760 = vmatpush.bf16.msra.mxu0 %v4035
    %4761 = vmatmul.bf16.gmra.mxu0 %v3249
    %v4762 = vpop.f32.mrf.mxu0
    %v4763 = vadd.f32 0.0, %v4762
    %v4764 = vpop.f32.mrf.mxu0
    %4765 = vdwg.mxu0
    %4766 = vmatpush.bf16.msra.mxu0 %v4095
    %4767 = vmatpush.bf16.msra.mxu0 %v4091
    %4768 = vmatpush.bf16.msra.mxu0 %v4087
    %4769 = vmatpush.bf16.msra.mxu0 %v4083
    %4770 = vmatpush.bf16.msra.mxu0 %v4079
    %4771 = vmatpush.bf16.msra.mxu0 %v4075
    %4772 = vmatpush.bf16.msra.mxu0 %v4071
    %4773 = vmatpush.bf16.msra.mxu0 %v4067
    %4774 = vmatmul.bf16.gmra.mxu0 %v3250
    %v4775 = vpop.f32.mrf.mxu0
    %v4776 = vadd.f32 %v4763, %v4775
    %v4777 = vpop.f32.mrf.mxu0
    %4778 = vdwg.mxu0
    %4779 = vmatpush.bf16.msra.mxu0 %v4127
    %4780 = vmatpush.bf16.msra.mxu0 %v4123
    %4781 = vmatpush.bf16.msra.mxu0 %v4119
    %4782 = vmatpush.bf16.msra.mxu0 %v4115
    %4783 = vmatpush.bf16.msra.mxu0 %v4111
    %4784 = vmatpush.bf16.msra.mxu0 %v4107
    %4785 = vmatpush.bf16.msra.mxu0 %v4103
    %4786 = vmatpush.bf16.msra.mxu0 %v4099
    %4787 = vmatmul.bf16.gmra.mxu0 %v3251
    %v4788 = vpop.f32.mrf.mxu0
    %v4789 = vadd.f32 %v4776, %v4788
    %v4790 = vpop.f32.mrf.mxu0
    %4791 = vdwg.mxu0
    %4792 = vmatpush.bf16.msra.mxu0 %v4159
    %4793 = vmatpush.bf16.msra.mxu0 %v4155
    %4794 = vmatpush.bf16.msra.mxu0 %v4151
    %4795 = vmatpush.bf16.msra.mxu0 %v4147
    %4796 = vmatpush.bf16.msra.mxu0 %v4143
    %4797 = vmatpush.bf16.msra.mxu0 %v4139
    %4798 = vmatpush.bf16.msra.mxu0 %v4135
    %4799 = vmatpush.bf16.msra.mxu0 %v4131
    %4800 = vmatmul.bf16.gmra.mxu0 %v3252
    %v4801 = vpop.f32.mrf.mxu0
    %v4802 = vadd.f32 %v4789, %v4801
    %v4803 = vpop.f32.mrf.mxu0
    %4804 = vdwg.mxu0
    %4805 = vmatpush.bf16.msra.mxu0 %v4191
    %4806 = vmatpush.bf16.msra.mxu0 %v4187
    %4807 = vmatpush.bf16.msra.mxu0 %v4183
    %4808 = vmatpush.bf16.msra.mxu0 %v4179
    %4809 = vmatpush.bf16.msra.mxu0 %v4175
    %4810 = vmatpush.bf16.msra.mxu0 %v4171
    %4811 = vmatpush.bf16.msra.mxu0 %v4167
    %4812 = vmatpush.bf16.msra.mxu0 %v4163
    %4813 = vmatmul.bf16.gmra.mxu0 %v3253
    %v4814 = vpop.f32.mrf.mxu0
    %v4815 = vadd.f32 %v4802, %v4814
    %v4816 = vpop.f32.mrf.mxu0
    %4817 = vdwg.mxu0
    %4818 = vmatpush.bf16.msra.mxu0 %v4223
    %4819 = vmatpush.bf16.msra.mxu0 %v4219
    %4820 = vmatpush.bf16.msra.mxu0 %v4215
    %4821 = vmatpush.bf16.msra.mxu0 %v4211
    %4822 = vmatpush.bf16.msra.mxu0 %v4207
    %4823 = vmatpush.bf16.msra.mxu0 %v4203
    %4824 = vmatpush.bf16.msra.mxu0 %v4199
    %4825 = vmatpush.bf16.msra.mxu0 %v4195
    %4826 = vmatmul.bf16.gmra.mxu0 %v3254
    %v4827 = vpop.f32.mrf.mxu0
    %v4828 = vadd.f32 %v4815, %v4827
    %v4829 = vpop.f32.mrf.mxu0
    %4830 = vdwg.mxu0
    %4831 = vmatpush.bf16.msra.mxu0 %v4255
    %4832 = vmatpush.bf16.msra.mxu0 %v4251
    %4833 = vmatpush.bf16.msra.mxu0 %v4247
    %4834 = vmatpush.bf16.msra.mxu0 %v4243
    %4835 = vmatpush.bf16.msra.mxu0 %v4239
    %4836 = vmatpush.bf16.msra.mxu0 %v4235
    %4837 = vmatpush.bf16.msra.mxu0 %v4231
    %4838 = vmatpush.bf16.msra.mxu0 %v4227
    %4839 = vmatmul.bf16.gmra.mxu0 %v3255
    %v4840 = vpop.f32.mrf.mxu0
    %v4841 = vadd.f32 %v4828, %v4840
    %v4842 = vpop.f32.mrf.mxu0
    %4843 = vdwg.mxu0
    %4844 = vmatpush.bf16.msra.mxu0 %v4287
    %4845 = vmatpush.bf16.msra.mxu0 %v4283
    %4846 = vmatpush.bf16.msra.mxu0 %v4279
    %4847 = vmatpush.bf16.msra.mxu0 %v4275
    %4848 = vmatpush.bf16.msra.mxu0 %v4271
    %4849 = vmatpush.bf16.msra.mxu0 %v4267
    %4850 = vmatpush.bf16.msra.mxu0 %v4263
    %4851 = vmatpush.bf16.msra.mxu0 %v4259
    %4852 = vmatmul.bf16.gmra.mxu0 %v3256
    %v4853 = vpop.f32.mrf.mxu0
    %v4854 = vadd.f32 %v4841, %v4853
    %v4855 = vpop.f32.mrf.mxu0
    %4856 = vdwg.mxu0
    %4857 = vmatpush.bf16.msra.mxu0 %v4064
    %4858 = vmatpush.bf16.msra.mxu0 %v4060
    %4859 = vmatpush.bf16.msra.mxu0 %v4056
    %4860 = vmatpush.bf16.msra.mxu0 %v4052
    %4861 = vmatpush.bf16.msra.mxu0 %v4048
    %4862 = vmatpush.bf16.msra.mxu0 %v4044
    %4863 = vmatpush.bf16.msra.mxu0 %v4040
    %4864 = vmatpush.bf16.msra.mxu0 %v4036
    %4865 = vmatmul.bf16.gmra.mxu0 %v3249
    %v4866 = vpop.f32.mrf.mxu0
    %v4867 = vadd.f32 0.0, %v4866
    %v4868 = vpop.f32.mrf.mxu0
    %4869 = vdwg.mxu0
    %4870 = vmatpush.bf16.msra.mxu0 %v4096
    %4871 = vmatpush.bf16.msra.mxu0 %v4092
    %4872 = vmatpush.bf16.msra.mxu0 %v4088
    %4873 = vmatpush.bf16.msra.mxu0 %v4084
    %4874 = vmatpush.bf16.msra.mxu0 %v4080
    %4875 = vmatpush.bf16.msra.mxu0 %v4076
    %4876 = vmatpush.bf16.msra.mxu0 %v4072
    %4877 = vmatpush.bf16.msra.mxu0 %v4068
    %4878 = vmatmul.bf16.gmra.mxu0 %v3250
    %v4879 = vpop.f32.mrf.mxu0
    %v4880 = vadd.f32 %v4867, %v4879
    %v4881 = vpop.f32.mrf.mxu0
    %4882 = vdwg.mxu0
    %4883 = vmatpush.bf16.msra.mxu0 %v4128
    %4884 = vmatpush.bf16.msra.mxu0 %v4124
    %4885 = vmatpush.bf16.msra.mxu0 %v4120
    %4886 = vmatpush.bf16.msra.mxu0 %v4116
    %4887 = vmatpush.bf16.msra.mxu0 %v4112
    %4888 = vmatpush.bf16.msra.mxu0 %v4108
    %4889 = vmatpush.bf16.msra.mxu0 %v4104
    %4890 = vmatpush.bf16.msra.mxu0 %v4100
    %4891 = vmatmul.bf16.gmra.mxu0 %v3251
    %v4892 = vpop.f32.mrf.mxu0
    %v4893 = vadd.f32 %v4880, %v4892
    %v4894 = vpop.f32.mrf.mxu0
    %4895 = vdwg.mxu0
    %4896 = vmatpush.bf16.msra.mxu0 %v4160
    %4897 = vmatpush.bf16.msra.mxu0 %v4156
    %4898 = vmatpush.bf16.msra.mxu0 %v4152
    %4899 = vmatpush.bf16.msra.mxu0 %v4148
    %4900 = vmatpush.bf16.msra.mxu0 %v4144
    %4901 = vmatpush.bf16.msra.mxu0 %v4140
    %4902 = vmatpush.bf16.msra.mxu0 %v4136
    %4903 = vmatpush.bf16.msra.mxu0 %v4132
    %4904 = vmatmul.bf16.gmra.mxu0 %v3252
    %v4905 = vpop.f32.mrf.mxu0
    %v4906 = vadd.f32 %v4893, %v4905
    %v4907 = vpop.f32.mrf.mxu0
    %4908 = vdwg.mxu0
    %4909 = vmatpush.bf16.msra.mxu0 %v4192
    %4910 = vmatpush.bf16.msra.mxu0 %v4188
    %4911 = vmatpush.bf16.msra.mxu0 %v4184
    %4912 = vmatpush.bf16.msra.mxu0 %v4180
    %4913 = vmatpush.bf16.msra.mxu0 %v4176
    %4914 = vmatpush.bf16.msra.mxu0 %v4172
    %4915 = vmatpush.bf16.msra.mxu0 %v4168
    %4916 = vmatpush.bf16.msra.mxu0 %v4164
    %4917 = vmatmul.bf16.gmra.mxu0 %v3253
    %v4918 = vpop.f32.mrf.mxu0
    %v4919 = vadd.f32 %v4906, %v4918
    %v4920 = vpop.f32.mrf.mxu0
    %4921 = vdwg.mxu0
    %4922 = vmatpush.bf16.msra.mxu0 %v4224
    %4923 = vmatpush.bf16.msra.mxu0 %v4220
    %4924 = vmatpush.bf16.msra.mxu0 %v4216
    %4925 = vmatpush.bf16.msra.mxu0 %v4212
    %4926 = vmatpush.bf16.msra.mxu0 %v4208
    %4927 = vmatpush.bf16.msra.mxu0 %v4204
    %4928 = vmatpush.bf16.msra.mxu0 %v4200
    %4929 = vmatpush.bf16.msra.mxu0 %v4196
    %4930 = vmatmul.bf16.gmra.mxu0 %v3254
    %v4931 = vpop.f32.mrf.mxu0
    %v4932 = vadd.f32 %v4919, %v4931
    %v4933 = vpop.f32.mrf.mxu0
    %4934 = vdwg.mxu0
    %4935 = vmatpush.bf16.msra.mxu0 %v4256
    %4936 = vmatpush.bf16.msra.mxu0 %v4252
    %4937 = vmatpush.bf16.msra.mxu0 %v4248
    %4938 = vmatpush.bf16.msra.mxu0 %v4244
    %4939 = vmatpush.bf16.msra.mxu0 %v4240
    %4940 = vmatpush.bf16.msra.mxu0 %v4236
    %4941 = vmatpush.bf16.msra.mxu0 %v4232
    %4942 = vmatpush.bf16.msra.mxu0 %v4228
    %4943 = vmatmul.bf16.gmra.mxu0 %v3255
    %v4944 = vpop.f32.mrf.mxu0
    %v4945 = vadd.f32 %v4932, %v4944
    %v4946 = vpop.f32.mrf.mxu0
    %4947 = vdwg.mxu0
    %4948 = vmatpush.bf16.msra.mxu0 %v4288
    %4949 = vmatpush.bf16.msra.mxu0 %v4284
    %4950 = vmatpush.bf16.msra.mxu0 %v4280
    %4951 = vmatpush.bf16.msra.mxu0 %v4276
    %4952 = vmatpush.bf16.msra.mxu0 %v4272
    %4953 = vmatpush.bf16.msra.mxu0 %v4268
    %4954 = vmatpush.bf16.msra.mxu0 %v4264
    %4955 = vmatpush.bf16.msra.mxu0 %v4260
    %4956 = vmatmul.bf16.gmra.mxu0 %v3256
    %v4957 = vpop.f32.mrf.mxu0
    %v4958 = vadd.f32 %v4945, %v4957
    %v4959 = vpop.f32.mrf.mxu0
    %4960 = vdwg.mxu0
    %v4993 = vunpack.c.l.b16 %v1364
    %v4994 = vunpack.c.h.b16 %v1364
    %v4995 = vunpack.c.l.b16 %v1365
    %v4996 = vunpack.c.h.b16 %v1365
    %v4997 = vunpack.c.l.b16 %v1366
    %v4998 = vunpack.c.h.b16 %v1366
    %v4999 = vunpack.c.l.b16 %v1367
    %v5000 = vunpack.c.h.b16 %v1367
    %v5001 = vunpack.c.l.b16 %v1368
    %v5002 = vunpack.c.h.b16 %v1368
    %v5003 = vunpack.c.l.b16 %v1369
    %v5004 = vunpack.c.h.b16 %v1369
    %v5005 = vunpack.c.l.b16 %v1370
    %v5006 = vunpack.c.h.b16 %v1370
    %v5007 = vunpack.c.l.b16 %v1371
    %v5008 = vunpack.c.h.b16 %v1371
    %v5009 = vunpack.c.l.b16 %v1372
    %v5010 = vunpack.c.h.b16 %v1372
    %v5011 = vunpack.c.l.b16 %v1373
    %v5012 = vunpack.c.h.b16 %v1373
    %v5013 = vunpack.c.l.b16 %v1374
    %v5014 = vunpack.c.h.b16 %v1374
    %v5015 = vunpack.c.l.b16 %v1375
    %v5016 = vunpack.c.h.b16 %v1375
    %v5017 = vunpack.c.l.b16 %v1376
    %v5018 = vunpack.c.h.b16 %v1376
    %v5019 = vunpack.c.l.b16 %v1377
    %v5020 = vunpack.c.h.b16 %v1377
    %v5021 = vunpack.c.l.b16 %v1378
    %v5022 = vunpack.c.h.b16 %v1378
    %v5023 = vunpack.c.l.b16 %v1379
    %v5024 = vunpack.c.h.b16 %v1379
    %v5025 = vunpack.c.l.b16 %v1380
    %v5026 = vunpack.c.h.b16 %v1380
    %v5027 = vunpack.c.l.b16 %v1381
    %v5028 = vunpack.c.h.b16 %v1381
    %v5029 = vunpack.c.l.b16 %v1382
    %v5030 = vunpack.c.h.b16 %v1382
    %v5031 = vunpack.c.l.b16 %v1383
    %v5032 = vunpack.c.h.b16 %v1383
    %v5033 = vunpack.c.l.b16 %v1384
    %v5034 = vunpack.c.h.b16 %v1384
    %v5035 = vunpack.c.l.b16 %v1385
    %v5036 = vunpack.c.h.b16 %v1385
    %v5037 = vunpack.c.l.b16 %v1386
    %v5038 = vunpack.c.h.b16 %v1386
    %v5039 = vunpack.c.l.b16 %v1387
    %v5040 = vunpack.c.h.b16 %v1387
    %v5041 = vunpack.c.l.b16 %v1388
    %v5042 = vunpack.c.h.b16 %v1388
    %v5043 = vunpack.c.l.b16 %v1389
    %v5044 = vunpack.c.h.b16 %v1389
    %v5045 = vunpack.c.l.b16 %v1390
    %v5046 = vunpack.c.h.b16 %v1390
    %v5047 = vunpack.c.l.b16 %v1391
    %v5048 = vunpack.c.h.b16 %v1391
    %v5049 = vunpack.c.l.b16 %v1392
    %v5050 = vunpack.c.h.b16 %v1392
    %v5051 = vunpack.c.l.b16 %v1393
    %v5052 = vunpack.c.h.b16 %v1393
    %v5053 = vunpack.c.l.b16 %v1394
    %v5054 = vunpack.c.h.b16 %v1394
    %v5055 = vunpack.c.l.b16 %v1395
    %v5056 = vunpack.c.h.b16 %v1395
    %v5057 = vpack.c.b16 %v4997, %v4993
    %v5058 = vpack.c.b16 %v4998, %v4994
    %v5059 = vpack.c.b16 %v4999, %v4995
    %v5060 = vpack.c.b16 %v5000, %v4996
    %v5061 = vpack.c.b16 %v5005, %v5001
    %v5062 = vpack.c.b16 %v5006, %v5002
    %v5063 = vpack.c.b16 %v5007, %v5003
    %v5064 = vpack.c.b16 %v5008, %v5004
    %v5065 = vpack.c.b16 %v5013, %v5009
    %v5066 = vpack.c.b16 %v5014, %v5010
    %v5067 = vpack.c.b16 %v5015, %v5011
    %v5068 = vpack.c.b16 %v5016, %v5012
    %v5069 = vpack.c.b16 %v5021, %v5017
    %v5070 = vpack.c.b16 %v5022, %v5018
    %v5071 = vpack.c.b16 %v5023, %v5019
    %v5072 = vpack.c.b16 %v5024, %v5020
    %v5073 = vpack.c.b16 %v5029, %v5025
    %v5074 = vpack.c.b16 %v5030, %v5026
    %v5075 = vpack.c.b16 %v5031, %v5027
    %v5076 = vpack.c.b16 %v5032, %v5028
    %v5077 = vpack.c.b16 %v5037, %v5033
    %v5078 = vpack.c.b16 %v5038, %v5034
    %v5079 = vpack.c.b16 %v5039, %v5035
    %v5080 = vpack.c.b16 %v5040, %v5036
    %v5081 = vpack.c.b16 %v5045, %v5041
    %v5082 = vpack.c.b16 %v5046, %v5042
    %v5083 = vpack.c.b16 %v5047, %v5043
    %v5084 = vpack.c.b16 %v5048, %v5044
    %v5085 = vpack.c.b16 %v5053, %v5049
    %v5086 = vpack.c.b16 %v5054, %v5050
    %v5087 = vpack.c.b16 %v5055, %v5051
    %v5088 = vpack.c.b16 %v5056, %v5052
    %5121 = vmatpush.bf16.msra.mxu0 %v5085
    %5122 = vmatpush.bf16.msra.mxu0 %v5081
    %5123 = vmatpush.bf16.msra.mxu0 %v5077
    %5124 = vmatpush.bf16.msra.mxu0 %v5073
    %5125 = vmatpush.bf16.msra.mxu0 %v5069
    %5126 = vmatpush.bf16.msra.mxu0 %v5065
    %5127 = vmatpush.bf16.msra.mxu0 %v5061
    %5128 = vmatpush.bf16.msra.mxu0 %v5057
    %5129 = vmatmul.bf16.gmra.mxu0 %v1363
    %v5130 = vpop.f32.mrf.mxu0
    %v5131 = vadd.f32 %v4646, %v5130
    %v5132 = vpop.f32.mrf.mxu0
    %5133 = vdwg.mxu0
    %5134 = vmatpush.bf16.msra.mxu0 %v5086
    %5135 = vmatpush.bf16.msra.mxu0 %v5082
    %5136 = vmatpush.bf16.msra.mxu0 %v5078
    %5137 = vmatpush.bf16.msra.mxu0 %v5074
    %5138 = vmatpush.bf16.msra.mxu0 %v5070
    %5139 = vmatpush.bf16.msra.mxu0 %v5066
    %5140 = vmatpush.bf16.msra.mxu0 %v5062
    %5141 = vmatpush.bf16.msra.mxu0 %v5058
    %5142 = vmatmul.bf16.gmra.mxu0 %v1363
    %v5143 = vpop.f32.mrf.mxu0
    %v5144 = vadd.f32 %v4750, %v5143
    %v5145 = vpop.f32.mrf.mxu0
    %5146 = vdwg.mxu0
    %5147 = vmatpush.bf16.msra.mxu0 %v5087
    %5148 = vmatpush.bf16.msra.mxu0 %v5083
    %5149 = vmatpush.bf16.msra.mxu0 %v5079
    %5150 = vmatpush.bf16.msra.mxu0 %v5075
    %5151 = vmatpush.bf16.msra.mxu0 %v5071
    %5152 = vmatpush.bf16.msra.mxu0 %v5067
    %5153 = vmatpush.bf16.msra.mxu0 %v5063
    %5154 = vmatpush.bf16.msra.mxu0 %v5059
    %5155 = vmatmul.bf16.gmra.mxu0 %v1363
    %v5156 = vpop.f32.mrf.mxu0
    %v5157 = vadd.f32 %v4854, %v5156
    %v5158 = vpop.f32.mrf.mxu0
    %5159 = vdwg.mxu0
    %5160 = vmatpush.bf16.msra.mxu0 %v5088
    %5161 = vmatpush.bf16.msra.mxu0 %v5084
    %5162 = vmatpush.bf16.msra.mxu0 %v5080
    %5163 = vmatpush.bf16.msra.mxu0 %v5076
    %5164 = vmatpush.bf16.msra.mxu0 %v5072
    %5165 = vmatpush.bf16.msra.mxu0 %v5068
    %5166 = vmatpush.bf16.msra.mxu0 %v5064
    %5167 = vmatpush.bf16.msra.mxu0 %v5060
    %5168 = vmatmul.bf16.gmra.mxu0 %v1363
    %v5169 = vpop.f32.mrf.mxu0
    %v5170 = vadd.f32 %v4958, %v5169
    %v5171 = vpop.f32.mrf.mxu0
    %5172 = vdwg.mxu0
    %v5173 = vld [vmem:[%s2] sm:$0xff]
    %5175 = vst [vmem:[#allocation1] ss:$4 sm:$0xff] %v5173
    %v5176 = vld.sshfl [vmem:[#allocation1] sm:$0xff pattern:$0x73625140]
    %v5177 = vld.sshfl [vmem:[#allocation1 + $0x8] sm:$0xff pattern:$0x73625140]
    %v5178 = vld.sshfl [vmem:[#allocation1 + $0x10] sm:$0xff pattern:$0x73625140]
    %v5179 = vld.sshfl [vmem:[#allocation1 + $0x18] sm:$0xff pattern:$0x73625140]
    %v5184 = vadd.f32 %v5131, %v5176
    %v5185 = vadd.f32 %v5144, %v5177
    %v5186 = vadd.f32 %v5157, %v5178
    %v5187 = vadd.f32 %v5170, %v5179
    %v5188 = vld [vmem:[%s17] sm:$0xf]
    %v5190 = vperm.slane %v5188, 0
    %v5191 = vperm.slane %v5188, 1
    %v5192 = vperm.slane %v5188, 2
    %v5193 = vperm.slane %v5188, 3
    %v5198 = vadd.f32 %v5184, %v5190
    %v5199 = vadd.f32 %v5185, %v5191
    %v5200 = vadd.f32 %v5186, %v5192
    %v5201 = vadd.f32 %v5187, %v5193
    %v5202 = vmax.f32 %v5198, 0.0
    %v5203 = vmax.f32 %v5199, 0.0
    %v5204 = vmax.f32 %v5200, 0.0
    %v5205 = vmax.f32 %v5201, 0.0
    %v5206 = vpack.c.bf16 %v5202, %v5202
    %v5207 = vpack.c.bf16 %v5203, %v5203
    %v5208 = vpack.c.bf16 %v5204, %v5204
    %v5209 = vpack.c.bf16 %v5205, %v5205
    %v5210 = vld [vmem:[%s18] sm:$0xff]
    %v5211 = vld [vmem:[%s18 + $0x8] sm:$0xff]
    %v5212 = vld [vmem:[%s18 + $0x10] sm:$0xff]
    %v5213 = vld [vmem:[%s18 + $0x18] sm:$0xff]
    %v5214 = vld [vmem:[%s18 + $0x20] sm:$0xff]
    %v5215 = vld [vmem:[%s18 + $0x28] sm:$0xff]
    %v5216 = vld [vmem:[%s18 + $0x30] sm:$0xff]
    %v5217 = vld [vmem:[%s18 + $0x38] sm:$0xff]
    %v5218 = vld [vmem:[%s18 + $0x40] sm:$0xff]
    %v5219 = vld [vmem:[%s18 + $0x48] sm:$0xff]
    %v5220 = vld [vmem:[%s18 + $0x50] sm:$0xff]
    %v5221 = vld [vmem:[%s18 + $0x58] sm:$0xff]
    %v5222 = vld [vmem:[%s18 + $0x60] sm:$0xff]
    %v5223 = vld [vmem:[%s18 + $0x68] sm:$0xff]
    %v5224 = vld [vmem:[%s18 + $0x70] sm:$0xff]
    %v5225 = vld [vmem:[%s18 + $0x78] sm:$0xff]
    %v5226 = vld [vmem:[%s18 + $0x80] sm:$0xff]
    %v5227 = vld [vmem:[%s18 + $0x88] sm:$0xff]
    %v5228 = vld [vmem:[%s18 + $0x90] sm:$0xff]
    %v5229 = vld [vmem:[%s18 + $0x98] sm:$0xff]
    %v5230 = vld [vmem:[%s18 + $0xa0] sm:$0xff]
    %v5231 = vld [vmem:[%s18 + $0xa8] sm:$0xff]
    %v5232 = vld [vmem:[%s18 + $0xb0] sm:$0xff]
    %v5233 = vld [vmem:[%s18 + $0xb8] sm:$0xff]
    %v5234 = vld [vmem:[%s18 + $0xc0] sm:$0xff]
    %v5235 = vld [vmem:[%s18 + $0xc8] sm:$0xff]
    %v5236 = vld [vmem:[%s18 + $0xd0] sm:$0xff]
    %v5237 = vld [vmem:[%s18 + $0xd8] sm:$0xff]
    %v5238 = vld [vmem:[%s18 + $0xe0] sm:$0xff]
    %v5239 = vld [vmem:[%s18 + $0xe8] sm:$0xff]
    %v5240 = vld [vmem:[%s18 + $0xf0] sm:$0xff]
    %v5241 = vld [vmem:[%s18 + $0xf8] sm:$0xff]
    %v5242 = vld [vmem:[%s18 + $0x100] sm:$0xff]
    %v5243 = vld [vmem:[%s18 + $0x108] sm:$0xff]
    %v5244 = vld [vmem:[%s18 + $0x110] sm:$0xff]
    %v5245 = vld [vmem:[%s18 + $0x118] sm:$0xff]
    %v5246 = vld [vmem:[%s18 + $0x120] sm:$0xff]
    %v5247 = vld [vmem:[%s18 + $0x128] sm:$0xff]
    %v5248 = vld [vmem:[%s18 + $0x130] sm:$0xff]
    %v5249 = vld [vmem:[%s18 + $0x138] sm:$0xff]
    %v5250 = vld [vmem:[%s18 + $0x140] sm:$0xff]
    %v5251 = vld [vmem:[%s18 + $0x148] sm:$0xff]
    %v5252 = vld [vmem:[%s18 + $0x150] sm:$0xff]
    %v5253 = vld [vmem:[%s18 + $0x158] sm:$0xff]
    %v5254 = vld [vmem:[%s18 + $0x160] sm:$0xff]
    %v5255 = vld [vmem:[%s18 + $0x168] sm:$0xff]
    %v5256 = vld [vmem:[%s18 + $0x170] sm:$0xff]
    %v5257 = vld [vmem:[%s18 + $0x178] sm:$0xff]
    %v5258 = vld [vmem:[%s18 + $0x180] sm:$0xff]
    %v5259 = vld [vmem:[%s18 + $0x188] sm:$0xff]
    %v5260 = vld [vmem:[%s18 + $0x190] sm:$0xff]
    %v5261 = vld [vmem:[%s18 + $0x198] sm:$0xff]
    %v5262 = vld [vmem:[%s18 + $0x1a0] sm:$0xff]
    %v5263 = vld [vmem:[%s18 + $0x1a8] sm:$0xff]
    %v5264 = vld [vmem:[%s18 + $0x1b0] sm:$0xff]
    %v5265 = vld [vmem:[%s18 + $0x1b8] sm:$0xff]
    %v5266 = vld [vmem:[%s18 + $0x1c0] sm:$0xff]
    %v5267 = vld [vmem:[%s18 + $0x1c8] sm:$0xff]
    %v5268 = vld [vmem:[%s18 + $0x1d0] sm:$0xff]
    %v5269 = vld [vmem:[%s18 + $0x1d8] sm:$0xff]
    %v5270 = vld [vmem:[%s18 + $0x1e0] sm:$0xff]
    %v5271 = vld [vmem:[%s18 + $0x1e8] sm:$0xff]
    %v5272 = vld [vmem:[%s18 + $0x1f0] sm:$0xff]
    %v5273 = vld [vmem:[%s18 + $0x1f8] sm:$0xff]
    %v5274 = vld [vmem:[%s19] sm:$0x3]
    %v5276 = vperm.slane %v5274, 0
    %v5277 = vperm.slane %v5274, 1
    %v5344 = vunpack.c.l.b16 %v5210
    %v5345 = vunpack.c.h.b16 %v5210
    %v5346 = vunpack.c.l.b16 %v5211
    %v5347 = vunpack.c.h.b16 %v5211
    %v5348 = vunpack.c.l.b16 %v5212
    %v5349 = vunpack.c.h.b16 %v5212
    %v5350 = vunpack.c.l.b16 %v5213
    %v5351 = vunpack.c.h.b16 %v5213
    %v5352 = vunpack.c.l.b16 %v5214
    %v5353 = vunpack.c.h.b16 %v5214
    %v5354 = vunpack.c.l.b16 %v5215
    %v5355 = vunpack.c.h.b16 %v5215
    %v5356 = vunpack.c.l.b16 %v5216
    %v5357 = vunpack.c.h.b16 %v5216
    %v5358 = vunpack.c.l.b16 %v5217
    %v5359 = vunpack.c.h.b16 %v5217
    %v5360 = vunpack.c.l.b16 %v5218
    %v5361 = vunpack.c.h.b16 %v5218
    %v5362 = vunpack.c.l.b16 %v5219
    %v5363 = vunpack.c.h.b16 %v5219
    %v5364 = vunpack.c.l.b16 %v5220
    %v5365 = vunpack.c.h.b16 %v5220
    %v5366 = vunpack.c.l.b16 %v5221
    %v5367 = vunpack.c.h.b16 %v5221
    %v5368 = vunpack.c.l.b16 %v5222
    %v5369 = vunpack.c.h.b16 %v5222
    %v5370 = vunpack.c.l.b16 %v5223
    %v5371 = vunpack.c.h.b16 %v5223
    %v5372 = vunpack.c.l.b16 %v5224
    %v5373 = vunpack.c.h.b16 %v5224
    %v5374 = vunpack.c.l.b16 %v5225
    %v5375 = vunpack.c.h.b16 %v5225
    %v5376 = vunpack.c.l.b16 %v5226
    %v5377 = vunpack.c.h.b16 %v5226
    %v5378 = vunpack.c.l.b16 %v5227
    %v5379 = vunpack.c.h.b16 %v5227
    %v5380 = vunpack.c.l.b16 %v5228
    %v5381 = vunpack.c.h.b16 %v5228
    %v5382 = vunpack.c.l.b16 %v5229
    %v5383 = vunpack.c.h.b16 %v5229
    %v5384 = vunpack.c.l.b16 %v5230
    %v5385 = vunpack.c.h.b16 %v5230
    %v5386 = vunpack.c.l.b16 %v5231
    %v5387 = vunpack.c.h.b16 %v5231
    %v5388 = vunpack.c.l.b16 %v5232
    %v5389 = vunpack.c.h.b16 %v5232
    %v5390 = vunpack.c.l.b16 %v5233
    %v5391 = vunpack.c.h.b16 %v5233
    %v5392 = vunpack.c.l.b16 %v5234
    %v5393 = vunpack.c.h.b16 %v5234
    %v5394 = vunpack.c.l.b16 %v5235
    %v5395 = vunpack.c.h.b16 %v5235
    %v5396 = vunpack.c.l.b16 %v5236
    %v5397 = vunpack.c.h.b16 %v5236
    %v5398 = vunpack.c.l.b16 %v5237
    %v5399 = vunpack.c.h.b16 %v5237
    %v5400 = vunpack.c.l.b16 %v5238
    %v5401 = vunpack.c.h.b16 %v5238
    %v5402 = vunpack.c.l.b16 %v5239
    %v5403 = vunpack.c.h.b16 %v5239
    %v5404 = vunpack.c.l.b16 %v5240
    %v5405 = vunpack.c.h.b16 %v5240
    %v5406 = vunpack.c.l.b16 %v5241
    %v5407 = vunpack.c.h.b16 %v5241
    %v5408 = vunpack.c.l.b16 %v5242
    %v5409 = vunpack.c.h.b16 %v5242
    %v5410 = vunpack.c.l.b16 %v5243
    %v5411 = vunpack.c.h.b16 %v5243
    %v5412 = vunpack.c.l.b16 %v5244
    %v5413 = vunpack.c.h.b16 %v5244
    %v5414 = vunpack.c.l.b16 %v5245
    %v5415 = vunpack.c.h.b16 %v5245
    %v5416 = vunpack.c.l.b16 %v5246
    %v5417 = vunpack.c.h.b16 %v5246
    %v5418 = vunpack.c.l.b16 %v5247
    %v5419 = vunpack.c.h.b16 %v5247
    %v5420 = vunpack.c.l.b16 %v5248
    %v5421 = vunpack.c.h.b16 %v5248
    %v5422 = vunpack.c.l.b16 %v5249
    %v5423 = vunpack.c.h.b16 %v5249
    %v5424 = vunpack.c.l.b16 %v5250
    %v5425 = vunpack.c.h.b16 %v5250
    %v5426 = vunpack.c.l.b16 %v5251
    %v5427 = vunpack.c.h.b16 %v5251
    %v5428 = vunpack.c.l.b16 %v5252
    %v5429 = vunpack.c.h.b16 %v5252
    %v5430 = vunpack.c.l.b16 %v5253
    %v5431 = vunpack.c.h.b16 %v5253
    %v5432 = vunpack.c.l.b16 %v5254
    %v5433 = vunpack.c.h.b16 %v5254
    %v5434 = vunpack.c.l.b16 %v5255
    %v5435 = vunpack.c.h.b16 %v5255
    %v5436 = vunpack.c.l.b16 %v5256
    %v5437 = vunpack.c.h.b16 %v5256
    %v5438 = vunpack.c.l.b16 %v5257
    %v5439 = vunpack.c.h.b16 %v5257
    %v5440 = vunpack.c.l.b16 %v5258
    %v5441 = vunpack.c.h.b16 %v5258
    %v5442 = vunpack.c.l.b16 %v5259
    %v5443 = vunpack.c.h.b16 %v5259
    %v5444 = vunpack.c.l.b16 %v5260
    %v5445 = vunpack.c.h.b16 %v5260
    %v5446 = vunpack.c.l.b16 %v5261
    %v5447 = vunpack.c.h.b16 %v5261
    %v5448 = vunpack.c.l.b16 %v5262
    %v5449 = vunpack.c.h.b16 %v5262
    %v5450 = vunpack.c.l.b16 %v5263
    %v5451 = vunpack.c.h.b16 %v5263
    %v5452 = vunpack.c.l.b16 %v5264
    %v5453 = vunpack.c.h.b16 %v5264
    %v5454 = vunpack.c.l.b16 %v5265
    %v5455 = vunpack.c.h.b16 %v5265
    %v5456 = vunpack.c.l.b16 %v5266
    %v5457 = vunpack.c.h.b16 %v5266
    %v5458 = vunpack.c.l.b16 %v5267
    %v5459 = vunpack.c.h.b16 %v5267
    %v5460 = vunpack.c.l.b16 %v5268
    %v5461 = vunpack.c.h.b16 %v5268
    %v5462 = vunpack.c.l.b16 %v5269
    %v5463 = vunpack.c.h.b16 %v5269
    %v5464 = vunpack.c.l.b16 %v5270
    %v5465 = vunpack.c.h.b16 %v5270
    %v5466 = vunpack.c.l.b16 %v5271
    %v5467 = vunpack.c.h.b16 %v5271
    %v5468 = vunpack.c.l.b16 %v5272
    %v5469 = vunpack.c.h.b16 %v5272
    %v5470 = vunpack.c.l.b16 %v5273
    %v5471 = vunpack.c.h.b16 %v5273
    %v5472 = vpack.c.b16 %v5346, %v5344
    %v5473 = vpack.c.b16 %v5347, %v5345
    %v5474 = vpack.c.b16 %v5350, %v5348
    %v5475 = vpack.c.b16 %v5351, %v5349
    %v5476 = vpack.c.b16 %v5354, %v5352
    %v5477 = vpack.c.b16 %v5355, %v5353
    %v5478 = vpack.c.b16 %v5358, %v5356
    %v5479 = vpack.c.b16 %v5359, %v5357
    %v5480 = vpack.c.b16 %v5362, %v5360
    %v5481 = vpack.c.b16 %v5363, %v5361
    %v5482 = vpack.c.b16 %v5366, %v5364
    %v5483 = vpack.c.b16 %v5367, %v5365
    %v5484 = vpack.c.b16 %v5370, %v5368
    %v5485 = vpack.c.b16 %v5371, %v5369
    %v5486 = vpack.c.b16 %v5374, %v5372
    %v5487 = vpack.c.b16 %v5375, %v5373
    %v5488 = vpack.c.b16 %v5378, %v5376
    %v5489 = vpack.c.b16 %v5379, %v5377
    %v5490 = vpack.c.b16 %v5382, %v5380
    %v5491 = vpack.c.b16 %v5383, %v5381
    %v5492 = vpack.c.b16 %v5386, %v5384
    %v5493 = vpack.c.b16 %v5387, %v5385
    %v5494 = vpack.c.b16 %v5390, %v5388
    %v5495 = vpack.c.b16 %v5391, %v5389
    %v5496 = vpack.c.b16 %v5394, %v5392
    %v5497 = vpack.c.b16 %v5395, %v5393
    %v5498 = vpack.c.b16 %v5398, %v5396
    %v5499 = vpack.c.b16 %v5399, %v5397
    %v5500 = vpack.c.b16 %v5402, %v5400
    %v5501 = vpack.c.b16 %v5403, %v5401
    %v5502 = vpack.c.b16 %v5406, %v5404
    %v5503 = vpack.c.b16 %v5407, %v5405
    %v5504 = vpack.c.b16 %v5410, %v5408
    %v5505 = vpack.c.b16 %v5411, %v5409
    %v5506 = vpack.c.b16 %v5414, %v5412
    %v5507 = vpack.c.b16 %v5415, %v5413
    %v5508 = vpack.c.b16 %v5418, %v5416
    %v5509 = vpack.c.b16 %v5419, %v5417
    %v5510 = vpack.c.b16 %v5422, %v5420
    %v5511 = vpack.c.b16 %v5423, %v5421
    %v5512 = vpack.c.b16 %v5426, %v5424
    %v5513 = vpack.c.b16 %v5427, %v5425
    %v5514 = vpack.c.b16 %v5430, %v5428
    %v5515 = vpack.c.b16 %v5431, %v5429
    %v5516 = vpack.c.b16 %v5434, %v5432
    %v5517 = vpack.c.b16 %v5435, %v5433
    %v5518 = vpack.c.b16 %v5438, %v5436
    %v5519 = vpack.c.b16 %v5439, %v5437
    %v5520 = vpack.c.b16 %v5442, %v5440
    %v5521 = vpack.c.b16 %v5443, %v5441
    %v5522 = vpack.c.b16 %v5446, %v5444
    %v5523 = vpack.c.b16 %v5447, %v5445
    %v5524 = vpack.c.b16 %v5450, %v5448
    %v5525 = vpack.c.b16 %v5451, %v5449
    %v5526 = vpack.c.b16 %v5454, %v5452
    %v5527 = vpack.c.b16 %v5455, %v5453
    %v5528 = vpack.c.b16 %v5458, %v5456
    %v5529 = vpack.c.b16 %v5459, %v5457
    %v5530 = vpack.c.b16 %v5462, %v5460
    %v5531 = vpack.c.b16 %v5463, %v5461
    %v5532 = vpack.c.b16 %v5466, %v5464
    %v5533 = vpack.c.b16 %v5467, %v5465
    %v5534 = vpack.c.b16 %v5470, %v5468
    %v5535 = vpack.c.b16 %v5471, %v5469
    %5600 = vmatpush.bf16.msra.mxu0 %v5486
    %5601 = vmatpush.bf16.msra.mxu0 %v5484
    %5602 = vmatpush.bf16.msra.mxu0 %v5482
    %5603 = vmatpush.bf16.msra.mxu0 %v5480
    %5604 = vmatpush.bf16.msra.mxu0 %v5478
    %5605 = vmatpush.bf16.msra.mxu0 %v5476
    %5606 = vmatpush.bf16.msra.mxu0 %v5474
    %5607 = vmatpush.bf16.msra.mxu0 %v5472
    %5608 = vmatmul.bf16.gmra.mxu0 %v5206
    %v5609 = vpop.f32.mrf.mxu0
    %v5610 = vadd.f32 %v5276, %v5609
    %v5611 = vpop.f32.mrf.mxu0
    %5612 = vdwg.mxu0
    %5613 = vmatpush.bf16.msra.mxu0 %v5502
    %5614 = vmatpush.bf16.msra.mxu0 %v5500
    %5615 = vmatpush.bf16.msra.mxu0 %v5498
    %5616 = vmatpush.bf16.msra.mxu0 %v5496
    %5617 = vmatpush.bf16.msra.mxu0 %v5494
    %5618 = vmatpush.bf16.msra.mxu0 %v5492
    %5619 = vmatpush.bf16.msra.mxu0 %v5490
    %5620 = vmatpush.bf16.msra.mxu0 %v5488
    %5621 = vmatmul.bf16.gmra.mxu0 %v5207
    %v5622 = vpop.f32.mrf.mxu0
    %v5623 = vadd.f32 %v5610, %v5622
    %v5624 = vpop.f32.mrf.mxu0
    %5625 = vdwg.mxu0
    %5626 = vmatpush.bf16.msra.mxu0 %v5518
    %5627 = vmatpush.bf16.msra.mxu0 %v5516
    %5628 = vmatpush.bf16.msra.mxu0 %v5514
    %5629 = vmatpush.bf16.msra.mxu0 %v5512
    %5630 = vmatpush.bf16.msra.mxu0 %v5510
    %5631 = vmatpush.bf16.msra.mxu0 %v5508
    %5632 = vmatpush.bf16.msra.mxu0 %v5506
    %5633 = vmatpush.bf16.msra.mxu0 %v5504
    %5634 = vmatmul.bf16.gmra.mxu0 %v5208
    %v5635 = vpop.f32.mrf.mxu0
    %v5636 = vadd.f32 %v5623, %v5635
    %v5637 = vpop.f32.mrf.mxu0
    %5638 = vdwg.mxu0
    %5639 = vmatpush.bf16.msra.mxu0 %v5534
    %5640 = vmatpush.bf16.msra.mxu0 %v5532
    %5641 = vmatpush.bf16.msra.mxu0 %v5530
    %5642 = vmatpush.bf16.msra.mxu0 %v5528
    %5643 = vmatpush.bf16.msra.mxu0 %v5526
    %5644 = vmatpush.bf16.msra.mxu0 %v5524
    %5645 = vmatpush.bf16.msra.mxu0 %v5522
    %5646 = vmatpush.bf16.msra.mxu0 %v5520
    %5647 = vmatmul.bf16.gmra.mxu0 %v5209
    %v5648 = vpop.f32.mrf.mxu0
    %v5649 = vadd.f32 %v5636, %v5648
    %v5650 = vpop.f32.mrf.mxu0
    %5651 = vdwg.mxu0
    %5652 = vmatpush.bf16.msra.mxu0 %v5487
    %5653 = vmatpush.bf16.msra.mxu0 %v5485
    %5654 = vmatpush.bf16.msra.mxu0 %v5483
    %5655 = vmatpush.bf16.msra.mxu0 %v5481
    %5656 = vmatpush.bf16.msra.mxu0 %v5479
    %5657 = vmatpush.bf16.msra.mxu0 %v5477
    %5658 = vmatpush.bf16.msra.mxu0 %v5475
    %5659 = vmatpush.bf16.msra.mxu0 %v5473
    %5660 = vmatmul.bf16.gmra.mxu0 %v5206
    %v5661 = vpop.f32.mrf.mxu0
    %v5662 = vadd.f32 %v5277, %v5661
    %v5663 = vpop.f32.mrf.mxu0
    %5664 = vdwg.mxu0
    %5665 = vmatpush.bf16.msra.mxu0 %v5503
    %5666 = vmatpush.bf16.msra.mxu0 %v5501
    %5667 = vmatpush.bf16.msra.mxu0 %v5499
    %5668 = vmatpush.bf16.msra.mxu0 %v5497
    %5669 = vmatpush.bf16.msra.mxu0 %v5495
    %5670 = vmatpush.bf16.msra.mxu0 %v5493
    %5671 = vmatpush.bf16.msra.mxu0 %v5491
    %5672 = vmatpush.bf16.msra.mxu0 %v5489
    %5673 = vmatmul.bf16.gmra.mxu0 %v5207
    %v5674 = vpop.f32.mrf.mxu0
    %v5675 = vadd.f32 %v5662, %v5674
    %v5676 = vpop.f32.mrf.mxu0
    %5677 = vdwg.mxu0
    %5678 = vmatpush.bf16.msra.mxu0 %v5519
    %5679 = vmatpush.bf16.msra.mxu0 %v5517
    %5680 = vmatpush.bf16.msra.mxu0 %v5515
    %5681 = vmatpush.bf16.msra.mxu0 %v5513
    %5682 = vmatpush.bf16.msra.mxu0 %v5511
    %5683 = vmatpush.bf16.msra.mxu0 %v5509
    %5684 = vmatpush.bf16.msra.mxu0 %v5507
    %5685 = vmatpush.bf16.msra.mxu0 %v5505
    %5686 = vmatmul.bf16.gmra.mxu0 %v5208
    %v5687 = vpop.f32.mrf.mxu0
    %v5688 = vadd.f32 %v5675, %v5687
    %v5689 = vpop.f32.mrf.mxu0
    %5690 = vdwg.mxu0
    %5691 = vmatpush.bf16.msra.mxu0 %v5535
    %5692 = vmatpush.bf16.msra.mxu0 %v5533
    %5693 = vmatpush.bf16.msra.mxu0 %v5531
    %5694 = vmatpush.bf16.msra.mxu0 %v5529
    %5695 = vmatpush.bf16.msra.mxu0 %v5527
    %5696 = vmatpush.bf16.msra.mxu0 %v5525
    %5697 = vmatpush.bf16.msra.mxu0 %v5523
    %5698 = vmatpush.bf16.msra.mxu0 %v5521
    %5699 = vmatmul.bf16.gmra.mxu0 %v5209
    %v5700 = vpop.f32.mrf.mxu0
    %v5701 = vadd.f32 %v5688, %v5700
    %v5702 = vpop.f32.mrf.mxu0
    %5703 = vdwg.mxu0
    %v5704 = vmax.f32 %v5649, 0.0
    %v5705 = vmax.f32 %v5701, 0.0
    %v5708 = vrot.slane %v5705, 6
    %v5709 = vsel %vm538, %v5704, %v5708
    %5711 = vst [vmem:[#allocation3] sm:$0xf] %v5709
    %v5712 = vld [vmem:[%s20] sm:$0x3]
    %v5714 = vperm.slane %v5712, 0
    %v5715 = vperm.slane %v5712, 1
    %v5718 = vmul.f32 %v5704, %v5714
    %v5719 = vmul.f32 %v5705, %v5715
    %v5720 = vsel %vm538, %v5718, 0.0
    %v5721 = vsel %vm538, %v5719, 0.0
    %v5722 = vadd.f32 %v5720, %v5721
    %5723 = vadd.xlane.f32.xlu0 %v5722
    %v5724 = vpop.xlane.xlu0 %5723
    %v5725 = vld [vmem:[#allocation2] sm:$0x1]
    %v5727 = vperm.slane %v5725, 0
    %v5729 = vadd.f32 %v5724, %v5727
    %vm5730 = vcmask 1024
    %5731 = vst.msk [vmem:[%s23] sm:$0x3] %vm5730, %v5729
    // Predicated region
    $region90: #{rl_explore_policy_forward.5} parent=1 // pred_check
      _
    $region91: #{rl_explore_policy_forward.5} parent=1 // pred_check_branch
      %5733 = sbr.rel (0) target = $region93
    $region92: #{rl_explore_policy_forward.5} parent=1 // pred_region
      %5735 = vsyncadd [#allocation4], 0
      %s5737 = sshll.u32 [#allocation3], 4
      %s5738 = int_to_ptr.vmem [resolvable:$true] %s5737
      %s5739 = sshll.u32 %s22, 4
      %s5740 = int_to_ptr.hbm [resolvable:$true] %s5739
      %5742 = dma.vmem_to_hbm [thread:$0]  %s5738, 64, %s5740, [#allocation4]
    $region93: #{rl_explore_policy_forward.5} parent=1 // pred_fallthru
      _
    // Predicated region
    $region94: #{rl_explore_policy_forward.5} parent=1 // pred_check
      _
    $region95: #{rl_explore_policy_forward.5} parent=1 // pred_check_branch
      %5744 = sbr.rel (0) target = $region97
    $region96: #{rl_explore_policy_forward.5} parent=1 // pred_region
      _
    $region97: #{rl_explore_policy_forward.5} parent=1 // pred_fallthru
      _
    // Predicated region
    $region98: #{rl_explore_policy_forward.5} parent=1 // pred_check
      _
    $region99: #{rl_explore_policy_forward.5} parent=1 // pred_check_branch
      %5746 = sbr.rel (0) target = $region101
    $region100: #{rl_explore_policy_forward.5} parent=1 // pred_region
      %5748 = dma.done [#allocation4], 64
    $region101: #{rl_explore_policy_forward.5} parent=1 // pred_fallthru
      _
    // Predicated region
    $region102: #{rl_explore_policy_forward.5} parent=1 // pred_check
      _
    $region103: #{rl_explore_policy_forward.5} parent=1 // pred_check_branch
      %5750 = sbr.rel (0) target = $region105
    $region104: #{rl_explore_policy_forward.5} parent=1 // pred_region
      _
    $region105: #{rl_explore_policy_forward.5} parent=1 // pred_fallthru
      _
    %5751 = vsyncpa [#allocation4], 1

</llo_original>
